<compile_context>
chip_gen: v5e
topology: v5e:2x2
jax: 0.10.0
libtpu: 0.0.40
codegen_flags: <defaults>
</compile_context>

<pallas_src>
import functools

import jax
import jax.numpy as jnp
from jax.experimental import pallas as pl
from jax.experimental.pallas import tpu as pltpu

BN_EPS = 1e-5
LN_EPS = 1e-5

# Softmax denominator via EUP approximate reciprocal (~1e-3 relative error vs exact
# divide). Set to False for a bit-closer match with the PyTorch reference.
APPROX_SOFTMAX_RECIPROCAL = True

LAYER_KEYS = ("gw1", "gb1", "gw2", "gb2", "n1s", "n1b",
              "wq", "bq", "wk", "bk", "wv", "bv", "wo", "bo",
              "n2s", "n2b", "mw1", "mb1", "mw2", "mb2", "n3s", "n3b")
GRAPH_HEAD_KEYS = ("glns", "glnb", "hw1", "hb1", "hw2", "hb2")
TEXT_HEAD_KEYS = ("tlns", "tlnb", "tw1", "tb1", "tw2", "tb2")
_BF16_WEIGHT_KEYS = ("gw1", "gw2", "wq", "wk", "wv", "wo", "mw1", "mw2",
                     "hw1", "hw2", "tw1", "tw2")


# --------------------------------------------------------------------------
# Graph kernel: 3 x GPSConv (+ inter-layer ReLU) + global_add_pool + readout head
# grid = (graph_block, layer); activations carried per block in VMEM scratch
# --------------------------------------------------------------------------
def gps_graph_kernel(
        # per-block constants
        x_ref, adj_ref, bidr_ref, bidc_ref, hmask_ref,
        # per-layer stacked GPS parameters (leading layer dim selected by the grid)
        gw1_ref, gb1_ref, gw2_ref, gb2_ref, n1s_ref, n1b_ref,
        wq_ref, bq_ref, wk_ref, bk_ref, wv_ref, bv_ref, wo_ref, bo_ref,
        n2s_ref, n2b_ref, mw1_ref, mb1_ref, mw2_ref, mb2_ref, n3s_ref, n3b_ref,
        # graph readout head (LayerNorm + MLP)
        glns_ref, glnb_ref, hw1_ref, hb1_ref, hw2_ref, hb2_ref,
        # output
        gout_ref,
        # scratch: node activations carried across layers (per block / per core)
        h_ref,
        *, num_heads, graphs_per_block):
    f32 = jnp.float32
    bf16 = jnp.bfloat16
    gb = pl.program_id(0)           # graph-block index ("parallel" axis)
    layer = pl.program_id(1)        # layer index ("arbitrary" / carried axis)
    n_layers = pl.num_programs(1)

    @pl.when(layer == 0)
    def _():
        h_ref[...] = x_ref[0]

    x = h_ref[...]                                    # [Nb, C] f32 carried activations
    Nb, C = x.shape
    H = num_heads
    scale = 1.0 / float((C // H) ** 0.5)
    xb = x.astype(bf16)

    # Block-diagonal attention bias rebuilt from per-node graph ids (no [N,N] input).
    # Padded nodes carry id -1: they only attend among themselves and never leak into
    # real rows, real rows mask them out, and pooling (graph ids >= 0) ignores them.
    same_graph = (bidr_ref[0] == bidc_ref[0]).astype(f32)        # [Nb, Nb]
    attn_bias = (same_graph - 1.0) * 1e9                          # 0 same graph, -1e9 across

    # ---- local branch: GINConv (eps=0; self loop folded into adj) + residual + BN ----
    agg = jnp.dot(adj_ref[0], xb, preferred_element_type=f32)     # (A + I) @ x
    g = jnp.dot(agg.astype(bf16), gw1_ref[0], preferred_element_type=f32) + gb1_ref[0]
    g = jnp.maximum(g, 0.0)
    h_local = jnp.dot(g.astype(bf16), gw2_ref[0], preferred_element_type=f32) + gb2_ref[0]
    h_local = (h_local + x) * n1s_ref[0] + n1b_ref[0]

    # ---- global branch: block-diagonal-masked MHA, batched over heads ----------------
    q = jnp.dot(xb, wq_ref[0], preferred_element_type=f32) + bq_ref[0]
    k = jnp.dot(xb, wk_ref[0], preferred_element_type=f32) + bk_ref[0]
    v = jnp.dot(xb, wv_ref[0], preferred_element_type=f32) + bv_ref[0]
    q = q * scale                     # fold 1/sqrt(dh) into q (N*C ops instead of H*N^2)

    # Head-channel-mask trick: heads own contiguous disjoint channel blocks, matching
    # torch MultiheadAttention's packed layout. Fine while C <= 128 (one lane tile);
    # for C > 128 switch to true per-head [H, Nb, dh] slicing to avoid extra K tiles.
    hm = hmask_ref[...]                               # [H, C] 0/1
    q3 = q[None, :, :] * hm[:, None, :]               # [H, Nb, C]
    k3 = k[None, :, :] * hm[:, None, :]               # [H, Nb, C]
    v3 = v[None, :, :] * hm[:, None, :]               # [H, Nb, C]

    s = jax.lax.dot_general(q3.astype(bf16), k3.astype(bf16),
                            (((2,), (2,)), ((0,), (0,))),
                            preferred_element_type=f32)           # [H, Nb, Nb]
    s = s + attn_bias[None, :, :]
    s = s - jnp.max(s, axis=-1, keepdims=True)
    p = jnp.exp(s)
    denom = jnp.sum(p, axis=-1, keepdims=True)
    if APPROX_SOFTMAX_RECIPROCAL:
        p = p * pl.reciprocal(denom, approx=True)
    else:
        p = p / denom
    ctx = jax.lax.dot_general(p.astype(bf16), v3.astype(bf16),
                              (((2,), (1,)), ((0,), (0,))),
                              preferred_element_type=f32)         # [H, Nb, C]
    attn = jnp.sum(ctx, axis=0)                       # disjoint head lanes -> [Nb, C]

    h_attn = jnp.dot(attn.astype(bf16), wo_ref[0], preferred_element_type=f32) + bo_ref[0]
    h_attn = (h_attn + x) * n2s_ref[0] + n2b_ref[0]

    # ---- combine + feed-forward MLP + norm3 ------------------------------------------
    out = h_local + h_attn
    m = jnp.dot(out.astype(bf16), mw1_ref[0], preferred_element_type=f32) + mb1_ref[0]
    m = jnp.maximum(m, 0.0)
    m = jnp.dot(m.astype(bf16), mw2_ref[0], preferred_element_type=f32) + mb2_ref[0]
    out = (out + m) * n3s_ref[0] + n3b_ref[0]

    # ---- inter-layer ReLU (after conv1 / conv2 only), carried in VMEM scratch ---------
    @pl.when(layer < n_layers - 1)
    def _():
        h_ref[...] = jnp.maximum(out, 0.0)

    # ---- last layer: global_add_pool -> LayerNorm(C) -> Linear -> ReLU -> Linear ------
    @pl.when(layer == n_layers - 1)
    def _():
        # pooling matrix rebuilt from per-node graph ids (padded nodes have id -1)
        gids = (jax.lax.broadcasted_iota(jnp.int32, (graphs_per_block, Nb), 0)
                + gb * graphs_per_block)
        pool = (gids == bidc_ref[0]).astype(f32)                   # [GPB, Nb]
        pooled = jnp.dot(pool, out, preferred_element_type=f32)    # [GPB, C]
        mu = jnp.mean(pooled, axis=-1, keepdims=True)
        var = jnp.mean((pooled - mu) ** 2, axis=-1, keepdims=True)
        xn = (pooled - mu) * jax.lax.rsqrt(var + LN_EPS)
        xn = xn * glns_ref[...] + glnb_ref[...]
        hh = jnp.dot(xn.astype(bf16), hw1_ref[...], preferred_element_type=f32) + hb1_ref[...]
        hh = jnp.maximum(hh, 0.0)
        gout_ref[0] = (jnp.dot(hh.astype(bf16), hw2_ref[...],
                               preferred_element_type=f32) + hb2_ref[...])


# --------------------------------------------------------------------------
# Text head kernel (independent of the graph path; runs once, own pallas_call)
# --------------------------------------------------------------------------
def text_head_kernel(txt_ref, tlns_ref, tlnb_ref, tw1_ref, tb1_ref, tw2_ref, tb2_ref,
                     tout_ref):
    f32 = jnp.float32
    bf16 = jnp.bfloat16
    t = txt_ref[...]                                               # [B, 768]
    mu = jnp.mean(t, axis=-1, keepdims=True)
    var = jnp.mean((t - mu) ** 2, axis=-1, keepdims=True)
    tn = (t - mu) * jax.lax.rsqrt(var + LN_EPS)
    tn = tn * tlns_ref[...] + tlnb_ref[...]
    th = jnp.dot(tn.astype(bf16), tw1_ref[...], preferred_element_type=f32) + tb1_ref[...]
    th = jnp.maximum(th, 0.0)
    tout_ref[...] = (jnp.dot(th.astype(bf16), tw2_ref[...],
                             preferred_element_type=f32) + tb2_ref[...])


# --------------------------------------------------------------------------
# pallas_call wrappers
# --------------------------------------------------------------------------
def alignment_graph_forward(params, x_blocks, adj_blocks, bid_row, bid_col, head_mask,
                            *, num_heads, graphs_per_block):
    GB, Nb, C = x_blocks.shape
    L = params["gw1"].shape[0]
    G = GB * graphs_per_block

    block_args = (x_blocks, adj_blocks, bid_row, bid_col)
    layer_args = tuple(params[k] for k in LAYER_KEYS)
    head_args = tuple(params[k] for k in GRAPH_HEAD_KEYS)
    args = block_args + (head_mask,) + layer_args + head_args

    def per_block_spec(shape):
        rest = (0,) * (len(shape) - 1)
        return pl.BlockSpec((1,) + tuple(shape[1:]), lambda gb, l, _r=rest: (gb,) + _r)

    def const_spec(shape):
        zeros = (0,) * len(shape)
        return pl.BlockSpec(tuple(shape), lambda gb, l, _z=zeros: _z)

    def layer_spec(shape):
        rest = (0,) * (len(shape) - 1)
        return pl.BlockSpec((1,) + tuple(shape[1:]), lambda gb, l, _r=rest: (l,) + _r)

    in_specs = ([per_block_spec(a.shape) for a in block_args]
                + [const_spec(head_mask.shape)]
                + [layer_spec(a.shape) for a in layer_args]
                + [const_spec(a.shape) for a in head_args])

    out_shape = jax.ShapeDtypeStruct((GB, graphs_per_block, C), jnp.float32)
    out_specs = pl.BlockSpec((1, graphs_per_block, C), lambda gb, l: (gb, 0, 0))

    # VMEM budget derived from actual resident block sizes (double-buffered) + scratch
    # + live intermediates, capped at 48 MiB so the config also fits v7x (64 MiB VMEM).
    blk = sum(int(a.nbytes) // int(a.shape[0]) for a in block_args + layer_args)
    blk += int(head_mask.nbytes) + sum(int(a.nbytes) for a in head_args)
    blk += graphs_per_block * C * 4
    work = (3 * num_heads * Nb * Nb + 5 * num_heads * Nb * C + 8 * Nb * C) * 4
    scratch_bytes = Nb * C * 4
    vmem_limit = int(min(max(2 * blk + scratch_bytes + 2 * work, 16 * 1024 * 1024),
                         48 * 1024 * 1024))

    # rough, advisory cost model
    flops_layer = 2 * Nb * Nb * C * (1 + 2 * num_heads) + 36 * Nb * C * C
    flops = GB * (L * flops_layer + 2 * graphs_per_block * Nb * C
                  + 4 * graphs_per_block * C * C)
    transcendentals = GB * L * num_heads * Nb * Nb + G * C
    bytes_accessed = int(sum(int(a.nbytes) for a in args)) + G * C * 4

    kernel = functools.partial(gps_graph_kernel, num_heads=num_heads,
                               graphs_per_block=graphs_per_block)
    out = pl.pallas_call(
        kernel,
        out_shape=out_shape,
        grid_spec=pltpu.PrefetchScalarGridSpec(
            num_scalar_prefetch=0,
            grid=(GB, L),
            in_specs=in_specs,
            out_specs=out_specs,
            scratch_shapes=[pltpu.VMEM((Nb, C), jnp.float32)]),
        compiler_params=pltpu.CompilerParams(
            dimension_semantics=("parallel", "arbitrary"),
            vmem_limit_bytes=vmem_limit),
        cost_estimate=pl.CostEstimate(flops=int(flops),
                                      transcendentals=int(transcendentals),
                                      bytes_accessed=int(bytes_accessed)),
    )(*args)
    return out.reshape(G, C)


def alignment_text_forward(params, text_cls):
    B = text_cls.shape[0]
    C = params["tw2"].shape[1]
    args = (text_cls,) + tuple(params[k] for k in TEXT_HEAD_KEYS)
    return pl.pallas_call(
        text_head_kernel,
        out_shape=jax.ShapeDtypeStruct((B, C), jnp.float32),
    )(*args)


def alignment_forward(params, x_blocks, adj_blocks, bid_row, bid_col, head_mask,
                      text_cls, *, num_heads, graphs_per_block):
    graph_out = alignment_graph_forward(
        params, x_blocks, adj_blocks, bid_row, bid_col, head_mask,
        num_heads=num_heads, graphs_per_block=graphs_per_block)
    text_out = alignment_text_forward(params, text_cls)
    return graph_out, text_out


# --------------------------------------------------------------------------
# Deterministic parameter initialization (shapes follow the PyTorch module)
# --------------------------------------------------------------------------
def _init_linear(key, fan_in, fan_out):
    kw, kb = jax.random.split(key)
    bound = 1.0 / (fan_in ** 0.5)
    w = jax.random.uniform(kw, (fan_in, fan_out), jnp.float32, -bound, bound)
    b = jax.random.uniform(kb, (1, fan_out), jnp.float32, -bound, bound)
    return w, b


def _fold_bn(gamma, beta, running_mean, running_var, eps=BN_EPS):
    # eval-mode BatchNorm1d folded to per-channel scale/shift
    scale = gamma / jnp.sqrt(running_var + eps)
    shift = beta - running_mean * scale
    return scale, shift


def _init_gps_layer(key, C):
    ks = jax.random.split(key, 8)
    gw1, gb1 = _init_linear(ks[0], C, C)          # GIN nn: Linear(C, C)
    gw2, gb2 = _init_linear(ks[1], C, C)          # GIN nn: Linear(C, C)
    wq, bq = _init_linear(ks[2], C, C)            # MHA in_proj (q slice)
    wk, bk = _init_linear(ks[3], C, C)            # MHA in_proj (k slice)
    wv, bv = _init_linear(ks[4], C, C)            # MHA in_proj (v slice)
    wo, bo = _init_linear(ks[5], C, C)            # MHA out_proj
    mw1, mb1 = _init_linear(ks[6], C, 2 * C)      # GPS mlp: Linear(C, 2C)
    mw2, mb2 = _init_linear(ks[7], 2 * C, C)      # GPS mlp: Linear(2C, C)
    ones = jnp.ones((1, C), jnp.float32)
    zeros = jnp.zeros((1, C), jnp.float32)
    n1s, n1b = _fold_bn(ones, zeros, zeros, ones)
    n2s, n2b = _fold_bn(ones, zeros, zeros, ones)
    n3s, n3b = _fold_bn(ones, zeros, zeros, ones)
    return dict(gw1=gw1, gb1=gb1, gw2=gw2, gb2=gb2, n1s=n1s, n1b=n1b,
                wq=wq, bq=bq, wk=wk, bk=bk, wv=wv, bv=bv, wo=wo, bo=bo,
                n2s=n2s, n2b=n2b, mw1=mw1, mb1=mb1, mw2=mw2, mb2=mb2,
                n3s=n3s, n3b=n3b)


def init_params(key, C, num_layers=3):
    keys = jax.random.split(key, num_layers + 4)
    layers = [_init_gps_layer(keys[i], C) for i in range(num_layers)]
    params = {k: jnp.stack([lyr[k] for lyr in layers], axis=0) for k in LAYER_KEYS}
    hw1, hb1 = _init_linear(keys[num_layers + 0], C, C)      # graph_forward Linear(C, C)
    hw2, hb2 = _init_linear(keys[num_layers + 1], C, C)
    tw1, tb1 = _init_linear(keys[num_layers + 2], 768, C)    # text_forward Linear(768, C)
    tw2, tb2 = _init_linear(keys[num_layers + 3], C, C)
    params.update(dict(
        glns=jnp.ones((1, C), jnp.float32), glnb=jnp.zeros((1, C), jnp.float32),
        hw1=hw1, hb1=hb1, hw2=hw2, hb2=hb2,
        tlns=jnp.ones((1, 768), jnp.float32), tlnb=jnp.zeros((1, 768), jnp.float32),
        tw1=tw1, tb1=tb1, tw2=tw2, tb2=tb2))
    # MXU-native bf16 weights (biases / norm params stay f32)
    for k in _BF16_WEIGHT_KEYS:
        params[k] = params[k].astype(jnp.bfloat16)
    return params


# --------------------------------------------------------------------------
# Demo / smoke test
# --------------------------------------------------------------------------
if __name__ == "__main__":
    # 2 graphs x 8 nodes; channels = 128 (multiple of 128 so matmul / output lanes are
    # dense; GPS residual requires in_channels == out_channels); 4 heads; batch of 2 texts.
    G, NPG, C, H, B = 2, 8, 128, 4, 2
    GPB = 1                         # graphs per block -> GB independent ("parallel") blocks
    GB = G // GPB
    Nb = GPB * NPG                  # nodes per block (multiple of 8)
    N = G * NPG

    key = jax.random.PRNGKey(0)
    kx, kt, kp = jax.random.split(key, 3)

    node_x = jax.random.normal(kx, (N, C), jnp.float32)
    text_cls = jax.random.normal(kt, (B, 768), jnp.float32)   # SciBERT CLS stand-in

    # deterministic connectivity: bidirectional ring inside each graph
    edges = []
    for g in range(G):
        for i in range(NPG):
            a = g * NPG + i
            b = g * NPG + (i + 1) % NPG
            edges.append((a, b))
            edges.append((b, a))
    edge_index = jnp.array(edges, dtype=jnp.int32).T          # [2, E]
    src, dst = edge_index[0], edge_index[1]

    # blocked inputs (graphs here are contiguous & equal-sized; in general pad each block
    # to Nb nodes, giving padded nodes graph id -1, zero features and no edges)
    x_blocks = node_x.reshape(GB, Nb, C)
    blk_of_edge = dst // Nb
    adj_blocks = jnp.zeros((GB, Nb, Nb), jnp.float32)
    adj_blocks = adj_blocks.at[blk_of_edge, dst % Nb, src % Nb].add(1.0)
    adj_blocks = (adj_blocks
                  + jnp.eye(Nb, dtype=jnp.float32)[None]).astype(jnp.bfloat16)  # + I (GIN self term)

    batch_vec = jnp.repeat(jnp.arange(G, dtype=jnp.int32), NPG)   # graph id per node
    bid = batch_vec.reshape(GB, Nb)
    bid_row = bid[:, :, None]                                      # [GB, Nb, 1]
    bid_col = bid[:, None, :]                                      # [GB, 1, Nb]

    # head-channel mask: head h owns channels [h*dh, (h+1)*dh)
    dh = C // H
    head_mask = ((jnp.arange(C, dtype=jnp.int32) // dh)[None, :] ==
                 jnp.arange(H, dtype=jnp.int32)[:, None]).astype(jnp.float32)   # [H, C]

    params = init_params(kp, C)

    graph_out, text_out = alignment_forward(
        params, x_blocks, adj_blocks, bid_row, bid_col, head_mask, text_cls,
        num_heads=H, graphs_per_block=GPB)
    jax.block_until_ready((graph_out, text_out))

    assert graph_out.shape == (G, C) and text_out.shape == (B, C)
    assert bool(jnp.all(jnp.isfinite(graph_out))) and bool(jnp.all(jnp.isfinite(text_out)))
    print("KERNEL_OK")
</pallas_src>

<mosaic_0001>
module attributes {stable_mosaic.version = 11 : i64} {
  func.func @gps_graph_kernel(%arg0: i32, %arg1: i32, %arg2: memref<1x8x128xf32, #tpu.memory_space<vmem>>, %arg3: memref<1x8x8xbf16, #tpu.memory_space<vmem>>, %arg4: memref<1x8x1xi32, #tpu.memory_space<vmem>>, %arg5: memref<1x1x8xi32, #tpu.memory_space<vmem>>, %arg6: memref<4x128xf32, #tpu.memory_space<vmem>>, %arg7: memref<1x128x128xbf16, #tpu.memory_space<vmem>>, %arg8: memref<1x1x128xf32, #tpu.memory_space<vmem>>, %arg9: memref<1x128x128xbf16, #tpu.memory_space<vmem>>, %arg10: memref<1x1x128xf32, #tpu.memory_space<vmem>>, %arg11: memref<1x1x128xf32, #tpu.memory_space<vmem>>, %arg12: memref<1x1x128xf32, #tpu.memory_space<vmem>>, %arg13: memref<1x128x128xbf16, #tpu.memory_space<vmem>>, %arg14: memref<1x1x128xf32, #tpu.memory_space<vmem>>, %arg15: memref<1x128x128xbf16, #tpu.memory_space<vmem>>, %arg16: memref<1x1x128xf32, #tpu.memory_space<vmem>>, %arg17: memref<1x128x128xbf16, #tpu.memory_space<vmem>>, %arg18: memref<1x1x128xf32, #tpu.memory_space<vmem>>, %arg19: memref<1x128x128xbf16, #tpu.memory_space<vmem>>, %arg20: memref<1x1x128xf32, #tpu.memory_space<vmem>>, %arg21: memref<1x1x128xf32, #tpu.memory_space<vmem>>, %arg22: memref<1x1x128xf32, #tpu.memory_space<vmem>>, %arg23: memref<1x128x256xbf16, #tpu.memory_space<vmem>>, %arg24: memref<1x1x256xf32, #tpu.memory_space<vmem>>, %arg25: memref<1x256x128xbf16, #tpu.memory_space<vmem>>, %arg26: memref<1x1x128xf32, #tpu.memory_space<vmem>>, %arg27: memref<1x1x128xf32, #tpu.memory_space<vmem>>, %arg28: memref<1x1x128xf32, #tpu.memory_space<vmem>>, %arg29: memref<1x128xf32, #tpu.memory_space<vmem>>, %arg30: memref<1x128xf32, #tpu.memory_space<vmem>>, %arg31: memref<128x128xbf16, #tpu.memory_space<vmem>>, %arg32: memref<1x128xf32, #tpu.memory_space<vmem>>, %arg33: memref<128x128xbf16, #tpu.memory_space<vmem>>, %arg34: memref<1x128xf32, #tpu.memory_space<vmem>>, %arg35: memref<1x1x128xf32, #tpu.memory_space<vmem>>, %arg36: memref<8x128xf32, #tpu.memory_space<vmem>>) attributes {dimension_semantics = [#tpu.dimension_semantics<parallel>, #tpu.dimension_semantics<arbitrary>], iteration_bounds = array<i64: 2, 3>, scalar_prefetch = 0 : i64, scratch_operands = 1 : i64, tpu.core_type = #tpu.core_type<tc>, window_params = [{transform_indices = @transform_0, window_bounds = array<i64: 1, 8, 128>}, {transform_indices = @transform_1, window_bounds = array<i64: 1, 8, 8>}, {transform_indices = @transform_2, window_bounds = array<i64: 1, 8, 1>}, {transform_indices = @transform_3, window_bounds = array<i64: 1, 1, 8>}, {pipeline_mode = #tpu.pipeline_mode<synchronous>, transform_indices = @transform_4, window_bounds = array<i64: 4, 128>}, {transform_indices = @transform_5, window_bounds = array<i64: 1, 128, 128>}, {transform_indices = @transform_6, window_bounds = array<i64: 1, 1, 128>}, {transform_indices = @transform_7, window_bounds = array<i64: 1, 128, 128>}, {transform_indices = @transform_8, window_bounds = array<i64: 1, 1, 128>}, {transform_indices = @transform_9, window_bounds = array<i64: 1, 1, 128>}, {transform_indices = @transform_10, window_bounds = array<i64: 1, 1, 128>}, {transform_indices = @transform_11, window_bounds = array<i64: 1, 128, 128>}, {transform_indices = @transform_12, window_bounds = array<i64: 1, 1, 128>}, {transform_indices = @transform_13, window_bounds = array<i64: 1, 128, 128>}, {transform_indices = @transform_14, window_bounds = array<i64: 1, 1, 128>}, {transform_indices = @transform_15, window_bounds = array<i64: 1, 128, 128>}, {transform_indices = @transform_16, window_bounds = array<i64: 1, 1, 128>}, {transform_indices = @transform_17, window_bounds = array<i64: 1, 128, 128>}, {transform_indices = @transform_18, window_bounds = array<i64: 1, 1, 128>}, {transform_indices = @transform_19, window_bounds = array<i64: 1, 1, 128>}, {transform_indices = @transform_20, window_bounds = array<i64: 1, 1, 128>}, {transform_indices = @transform_21, window_bounds = array<i64: 1, 128, 256>}, {transform_indices = @transform_22, window_bounds = array<i64: 1, 1, 256>}, {transform_indices = @transform_23, window_bounds = array<i64: 1, 256, 128>}, {transform_indices = @transform_24, window_bounds = array<i64: 1, 1, 128>}, {transform_indices = @transform_25, window_bounds = array<i64: 1, 1, 128>}, {transform_indices = @transform_26, window_bounds = array<i64: 1, 1, 128>}, {pipeline_mode = #tpu.pipeline_mode<synchronous>, transform_indices = @transform_27, window_bounds = array<i64: 1, 128>}, {pipeline_mode = #tpu.pipeline_mode<synchronous>, transform_indices = @transform_28, window_bounds = array<i64: 1, 128>}, {pipeline_mode = #tpu.pipeline_mode<synchronous>, transform_indices = @transform_29, window_bounds = array<i64: 128, 128>}, {pipeline_mode = #tpu.pipeline_mode<synchronous>, transform_indices = @transform_30, window_bounds = array<i64: 1, 128>}, {pipeline_mode = #tpu.pipeline_mode<synchronous>, transform_indices = @transform_31, window_bounds = array<i64: 128, 128>}, {pipeline_mode = #tpu.pipeline_mode<synchronous>, transform_indices = @transform_32, window_bounds = array<i64: 1, 128>}, {transform_indices = @transform_33, window_bounds = array<i64: 1, 1, 128>}]} {
    %c0_i32 = arith.constant 0 : i32
    %0 = arith.cmpi eq, %arg1, %c0_i32 : i32
    %1 = arith.extui %0 : i1 to i32
    %c0_i32_0 = arith.constant 0 : i32
    %2 = arith.cmpi ne, %1, %c0_i32_0 : i32
    scf.if %2 {
      %c0_100 = arith.constant 0 : index
      %c0_101 = arith.constant 0 : index
      %c0_102 = arith.constant 0 : index
      %158 = vector.load %arg2[%c0_100, %c0_101, %c0_102] : memref<1x8x128xf32, #tpu.memory_space<vmem>>, vector<1x8x128xf32>
      %159 = vector.shape_cast %158 : vector<1x8x128xf32> to vector<8x128xf32>
      %c0_103 = arith.constant 0 : index
      %c0_104 = arith.constant 0 : index
      %160 = vector.load %arg36[%c0_103, %c0_104] : memref<8x128xf32, #tpu.memory_space<vmem>>, vector<8x128xf32>
      tpu.vector_store %arg36[%c0_103, %c0_104], %159 {strides = array<i32>} : memref<8x128xf32, #tpu.memory_space<vmem>>, vector<8x128xf32>,
    } else {
    }
    %c0 = arith.constant 0 : index
    %c0_1 = arith.constant 0 : index
    %3 = vector.load %arg36[%c0, %c0_1] : memref<8x128xf32, #tpu.memory_space<vmem>>, vector<8x128xf32>
    %4 = arith.truncf %3 : vector<8x128xf32> to vector<8x128xbf16>
    %c0_2 = arith.constant 0 : index
    %c0_3 = arith.constant 0 : index
    %c0_4 = arith.constant 0 : index
    %5 = vector.load %arg4[%c0_2, %c0_3, %c0_4] : memref<1x8x1xi32, #tpu.memory_space<vmem>>, vector<1x8x1xi32>
    %6 = vector.shape_cast %5 : vector<1x8x1xi32> to vector<8x1xi32>
    %c0_5 = arith.constant 0 : index
    %c0_6 = arith.constant 0 : index
    %c0_7 = arith.constant 0 : index
    %7 = vector.load %arg5[%c0_5, %c0_6, %c0_7] : memref<1x1x8xi32, #tpu.memory_space<vmem>>, vector<1x1x8xi32>
    %8 = vector.shape_cast %7 : vector<1x1x8xi32> to vector<1x8xi32>
    %9 = vector.broadcast %6 : vector<8x1xi32> to vector<8x8xi32>
    %10 = vector.broadcast %8 : vector<1x8xi32> to vector<8x8xi32>
    %11 = arith.cmpi eq, %9, %10 : vector<8x8xi32>
    %12 = arith.extui %11 : vector<8x8xi1> to vector<8x8xi32>
    %13 = arith.sitofp %12 : vector<8x8xi32> to vector<8x8xf32>
    %cst = arith.constant 1.000000e+00 : f32
    %14 = vector.broadcast %cst : f32 to vector<8x8xf32>
    %15 = arith.subf %13, %14 : vector<8x8xf32>
    %cst_8 = arith.constant 1.000000e+09 : f32
    %16 = vector.broadcast %cst_8 : f32 to vector<8x8xf32>
    %17 = arith.mulf %15, %16 : vector<8x8xf32>
    %c0_9 = arith.constant 0 : index
    %c0_10 = arith.constant 0 : index
    %c0_11 = arith.constant 0 : index
    %18 = vector.load %arg3[%c0_9, %c0_10, %c0_11] : memref<1x8x8xbf16, #tpu.memory_space<vmem>>, vector<1x8x8xbf16>
    %19 = vector.shape_cast %18 : vector<1x8x8xbf16> to vector<8x8xbf16>
    %cst_12 = arith.constant dense<0.000000e+00> : vector<8x128xf32>
    %20 = tpu.matmul %19, %4, %cst_12 {dimension_numbers = #tpu.dot_dimension_numbers<[1], [0], [0], [1], [0, 0, 1, 1], [], []>} : vector<8x8xbf16>, vector<8x128xbf16>, vector<8x128xf32> -> vector<8x128xf32>
    %21 = arith.truncf %20 : vector<8x128xf32> to vector<8x128xbf16>
    %c0_13 = arith.constant 0 : index
    %c0_14 = arith.constant 0 : index
    %c0_15 = arith.constant 0 : index
    %22 = vector.load %arg7[%c0_13, %c0_14, %c0_15] : memref<1x128x128xbf16, #tpu.memory_space<vmem>>, vector<1x128x128xbf16>
    %23 = vector.shape_cast %22 : vector<1x128x128xbf16> to vector<128x128xbf16>
    %cst_16 = arith.constant dense<0.000000e+00> : vector<8x128xf32>
    %24 = tpu.matmul %21, %23, %cst_16 {dimension_numbers = #tpu.dot_dimension_numbers<[1], [0], [0], [1], [0, 0, 1, 1], [], []>} : vector<8x128xbf16>, vector<128x128xbf16>, vector<8x128xf32> -> vector<8x128xf32>
    %c0_17 = arith.constant 0 : index
    %c0_18 = arith.constant 0 : index
    %c0_19 = arith.constant 0 : index
    %25 = vector.load %arg8[%c0_17, %c0_18, %c0_19] : memref<1x1x128xf32, #tpu.memory_space<vmem>>, vector<1x1x128xf32>
    %26 = vector.shape_cast %25 : vector<1x1x128xf32> to vector<1x128xf32>
    %27 = vector.broadcast %26 : vector<1x128xf32> to vector<8x128xf32>
    %28 = arith.addf %24, %27 : vector<8x128xf32>
    %cst_20 = arith.constant 0.000000e+00 : f32
    %29 = vector.broadcast %cst_20 : f32 to vector<8x128xf32>
    %30 = arith.maximumf %28, %29 : vector<8x128xf32>
    %31 = arith.truncf %30 : vector<8x128xf32> to vector<8x128xbf16>
    %c0_21 = arith.constant 0 : index
    %c0_22 = arith.constant 0 : index
    %c0_23 = arith.constant 0 : index
    %32 = vector.load %arg9[%c0_21, %c0_22, %c0_23] : memref<1x128x128xbf16, #tpu.memory_space<vmem>>, vector<1x128x128xbf16>
    %33 = vector.shape_cast %32 : vector<1x128x128xbf16> to vector<128x128xbf16>
    %cst_24 = arith.constant dense<0.000000e+00> : vector<8x128xf32>
    %34 = tpu.matmul %31, %33, %cst_24 {dimension_numbers = #tpu.dot_dimension_numbers<[1], [0], [0], [1], [0, 0, 1, 1], [], []>} : vector<8x128xbf16>, vector<128x128xbf16>, vector<8x128xf32> -> vector<8x128xf32>
    %c0_25 = arith.constant 0 : index
    %c0_26 = arith.constant 0 : index
    %c0_27 = arith.constant 0 : index
    %35 = vector.load %arg10[%c0_25, %c0_26, %c0_27] : memref<1x1x128xf32, #tpu.memory_space<vmem>>, vector<1x1x128xf32>
    %36 = vector.shape_cast %35 : vector<1x1x128xf32> to vector<1x128xf32>
    %37 = vector.broadcast %36 : vector<1x128xf32> to vector<8x128xf32>
    %38 = arith.addf %34, %37 : vector<8x128xf32>
    %39 = arith.addf %38, %3 : vector<8x128xf32>
    %c0_28 = arith.constant 0 : index
    %c0_29 = arith.constant 0 : index
    %c0_30 = arith.constant 0 : index
    %40 = vector.load %arg11[%c0_28, %c0_29, %c0_30] : memref<1x1x128xf32, #tpu.memory_space<vmem>>, vector<1x1x128xf32>
    %41 = vector.shape_cast %40 : vector<1x1x128xf32> to vector<1x128xf32>
    %42 = vector.broadcast %41 : vector<1x128xf32> to vector<8x128xf32>
    %43 = arith.mulf %39, %42 : vector<8x128xf32>
    %c0_31 = arith.constant 0 : index
    %c0_32 = arith.constant 0 : index
    %c0_33 = arith.constant 0 : index
    %44 = vector.load %arg12[%c0_31, %c0_32, %c0_33] : memref<1x1x128xf32, #tpu.memory_space<vmem>>, vector<1x1x128xf32>
    %45 = vector.shape_cast %44 : vector<1x1x128xf32> to vector<1x128xf32>
    %46 = vector.broadcast %45 : vector<1x128xf32> to vector<8x128xf32>
    %47 = arith.addf %43, %46 : vector<8x128xf32>
    %c0_34 = arith.constant 0 : index
    %c0_35 = arith.constant 0 : index
    %c0_36 = arith.constant 0 : index
    %48 = vector.load %arg13[%c0_34, %c0_35, %c0_36] : memref<1x128x128xbf16, #tpu.memory_space<vmem>>, vector<1x128x128xbf16>
    %49 = vector.shape_cast %48 : vector<1x128x128xbf16> to vector<128x128xbf16>
    %cst_37 = arith.constant dense<0.000000e+00> : vector<8x128xf32>
    %50 = tpu.matmul %4, %49, %cst_37 {dimension_numbers = #tpu.dot_dimension_numbers<[1], [0], [0], [1], [0, 0, 1, 1], [], []>} : vector<8x128xbf16>, vector<128x128xbf16>, vector<8x128xf32> -> vector<8x128xf32>
    %c0_38 = arith.constant 0 : index
    %c0_39 = arith.constant 0 : index
    %c0_40 = arith.constant 0 : index
    %51 = vector.load %arg14[%c0_38, %c0_39, %c0_40] : memref<1x1x128xf32, #tpu.memory_space<vmem>>, vector<1x1x128xf32>
    %52 = vector.shape_cast %51 : vector<1x1x128xf32> to vector<1x128xf32>
    %53 = vector.broadcast %52 : vector<1x128xf32> to vector<8x128xf32>
    %54 = arith.addf %50, %53 : vector<8x128xf32>
    %c0_41 = arith.constant 0 : index
    %c0_42 = arith.constant 0 : index
    %c0_43 = arith.constant 0 : index
    %55 = vector.load %arg15[%c0_41, %c0_42, %c0_43] : memref<1x128x128xbf16, #tpu.memory_space<vmem>>, vector<1x128x128xbf16>
    %56 = vector.shape_cast %55 : vector<1x128x128xbf16> to vector<128x128xbf16>
    %cst_44 = arith.constant dense<0.000000e+00> : vector<8x128xf32>
    %57 = tpu.matmul %4, %56, %cst_44 {dimension_numbers = #tpu.dot_dimension_numbers<[1], [0], [0], [1], [0, 0, 1, 1], [], []>} : vector<8x128xbf16>, vector<128x128xbf16>, vector<8x128xf32> -> vector<8x128xf32>
    %c0_45 = arith.constant 0 : index
    %c0_46 = arith.constant 0 : index
    %c0_47 = arith.constant 0 : index
    %58 = vector.load %arg16[%c0_45, %c0_46, %c0_47] : memref<1x1x128xf32, #tpu.memory_space<vmem>>, vector<1x1x128xf32>
    %59 = vector.shape_cast %58 : vector<1x1x128xf32> to vector<1x128xf32>
    %60 = vector.broadcast %59 : vector<1x128xf32> to vector<8x128xf32>
    %61 = arith.addf %57, %60 : vector<8x128xf32>
    %c0_48 = arith.constant 0 : index
    %c0_49 = arith.constant 0 : index
    %c0_50 = arith.constant 0 : index
    %62 = vector.load %arg17[%c0_48, %c0_49, %c0_50] : memref<1x128x128xbf16, #tpu.memory_space<vmem>>, vector<1x128x128xbf16>
    %63 = vector.shape_cast %62 : vector<1x128x128xbf16> to vector<128x128xbf16>
    %cst_51 = arith.constant dense<0.000000e+00> : vector<8x128xf32>
    %64 = tpu.matmul %4, %63, %cst_51 {dimension_numbers = #tpu.dot_dimension_numbers<[1], [0], [0], [1], [0, 0, 1, 1], [], []>} : vector<8x128xbf16>, vector<128x128xbf16>, vector<8x128xf32> -> vector<8x128xf32>
    %c0_52 = arith.constant 0 : index
    %c0_53 = arith.constant 0 : index
    %c0_54 = arith.constant 0 : index
    %65 = vector.load %arg18[%c0_52, %c0_53, %c0_54] : memref<1x1x128xf32, #tpu.memory_space<vmem>>, vector<1x1x128xf32>
    %66 = vector.shape_cast %65 : vector<1x1x128xf32> to vector<1x128xf32>
    %67 = vector.broadcast %66 : vector<1x128xf32> to vector<8x128xf32>
    %68 = arith.addf %64, %67 : vector<8x128xf32>
    %cst_55 = arith.constant 0.176776692 : f32
    %69 = vector.broadcast %cst_55 : f32 to vector<8x128xf32>
    %70 = arith.mulf %54, %69 : vector<8x128xf32>
    %c0_56 = arith.constant 0 : index
    %c0_57 = arith.constant 0 : index
    %71 = vector.load %arg6[%c0_56, %c0_57] : memref<4x128xf32, #tpu.memory_space<vmem>>, vector<4x128xf32>
    %72 = vector.shape_cast %70 : vector<8x128xf32> to vector<1x8x128xf32>
    %73 = vector.shape_cast %71 : vector<4x128xf32> to vector<4x1x128xf32>
    %74 = vector.broadcast %72 : vector<1x8x128xf32> to vector<4x8x128xf32>
    %75 = vector.broadcast %73 : vector<4x1x128xf32> to vector<4x8x128xf32>
    %76 = arith.mulf %74, %75 : vector<4x8x128xf32>
    %77 = vector.shape_cast %61 : vector<8x128xf32> to vector<1x8x128xf32>
    %78 = vector.shape_cast %71 : vector<4x128xf32> to vector<4x1x128xf32>
    %79 = vector.broadcast %77 : vector<1x8x128xf32> to vector<4x8x128xf32>
    %80 = vector.broadcast %78 : vector<4x1x128xf32> to vector<4x8x128xf32>
    %81 = arith.mulf %79, %80 : vector<4x8x128xf32>
    %82 = vector.shape_cast %68 : vector<8x128xf32> to vector<1x8x128xf32>
    %83 = vector.shape_cast %71 : vector<4x128xf32> to vector<4x1x128xf32>
    %84 = vector.broadcast %82 : vector<1x8x128xf32> to vector<4x8x128xf32>
    %85 = vector.broadcast %83 : vector<4x1x128xf32> to vector<4x8x128xf32>
    %86 = arith.mulf %84, %85 : vector<4x8x128xf32>
    %87 = arith.truncf %76 : vector<4x8x128xf32> to vector<4x8x128xbf16>
    %88 = arith.truncf %81 : vector<4x8x128xf32> to vector<4x8x128xbf16>
    %cst_58 = arith.constant dense<0.000000e+00> : vector<4x8x8xf32>
    %89 = tpu.matmul %87, %88, %cst_58 {dimension_numbers = #tpu.dot_dimension_numbers<[2], [2], [1], [1], [0, 0, 0, 1, 1, 1], [0], [0]>} : vector<4x8x128xbf16>, vector<4x8x128xbf16>, vector<4x8x8xf32> -> vector<4x8x8xf32>
    %90 = vector.shape_cast %17 : vector<8x8xf32> to vector<1x8x8xf32>
    %91 = vector.broadcast %90 : vector<1x8x8xf32> to vector<4x8x8xf32>
    %92 = arith.addf %89, %91 : vector<4x8x8xf32>
    %cst_59 = arith.constant dense<0xFF800000> : vector<4x8xf32>
    %93 = vector.multi_reduction <maximumf>, %92, %cst_59 [2] : vector<4x8x8xf32> to vector<4x8xf32>
    %94 = vector.shape_cast %93 : vector<4x8xf32> to vector<4x8x1xf32>
    %95 = vector.broadcast %94 : vector<4x8x1xf32> to vector<4x8x8xf32>
    %96 = arith.subf %92, %95 : vector<4x8x8xf32>
    %97 = math.exp %96 : vector<4x8x8xf32>
    %cst_60 = arith.constant dense<0.000000e+00> : vector<4x8xf32>
    %98 = vector.multi_reduction <add>, %97, %cst_60 [2] : vector<4x8x8xf32> to vector<4x8xf32>
    %99 = vector.shape_cast %98 : vector<4x8xf32> to vector<4x8x1xf32>
    %100 = tpu.reciprocal %99 {approx = true} : vector<4x8x1xf32> -> vector<4x8x1xf32>
    %101 = vector.broadcast %100 : vector<4x8x1xf32> to vector<4x8x8xf32>
    %102 = arith.mulf %97, %101 : vector<4x8x8xf32>
    %103 = arith.truncf %102 : vector<4x8x8xf32> to vector<4x8x8xbf16>
    %104 = arith.truncf %86 : vector<4x8x128xf32> to vector<4x8x128xbf16>
    %cst_61 = arith.constant dense<0.000000e+00> : vector<4x8x128xf32>
    %105 = tpu.matmul %103, %104, %cst_61 {dimension_numbers = #tpu.dot_dimension_numbers<[2], [1], [1], [2], [0, 0, 0, 1, 1, 2], [0], [0]>} : vector<4x8x8xbf16>, vector<4x8x128xbf16>, vector<4x8x128xf32> -> vector<4x8x128xf32>
    %cst_62 = arith.constant dense<0.000000e+00> : vector<8x128xf32>
    %106 = vector.multi_reduction <add>, %105, %cst_62 [0] : vector<4x8x128xf32> to vector<8x128xf32>
    %107 = arith.truncf %106 : vector<8x128xf32> to vector<8x128xbf16>
    %c0_63 = arith.constant 0 : index
    %c0_64 = arith.constant 0 : index
    %c0_65 = arith.constant 0 : index
    %108 = vector.load %arg19[%c0_63, %c0_64, %c0_65] : memref<1x128x128xbf16, #tpu.memory_space<vmem>>, vector<1x128x128xbf16>
    %109 = vector.shape_cast %108 : vector<1x128x128xbf16> to vector<128x128xbf16>
    %cst_66 = arith.constant dense<0.000000e+00> : vector<8x128xf32>
    %110 = tpu.matmul %107, %109, %cst_66 {dimension_numbers = #tpu.dot_dimension_numbers<[1], [0], [0], [1], [0, 0, 1, 1], [], []>} : vector<8x128xbf16>, vector<128x128xbf16>, vector<8x128xf32> -> vector<8x128xf32>
    %c0_67 = arith.constant 0 : index
    %c0_68 = arith.constant 0 : index
    %c0_69 = arith.constant 0 : index
    %111 = vector.load %arg20[%c0_67, %c0_68, %c0_69] : memref<1x1x128xf32, #tpu.memory_space<vmem>>, vector<1x1x128xf32>
    %112 = vector.shape_cast %111 : vector<1x1x128xf32> to vector<1x128xf32>
    %113 = vector.broadcast %112 : vector<1x128xf32> to vector<8x128xf32>
    %114 = arith.addf %110, %113 : vector<8x128xf32>
    %115 = arith.addf %114, %3 : vector<8x128xf32>
    %c0_70 = arith.constant 0 : index
    %c0_71 = arith.constant 0 : index
    %c0_72 = arith.constant 0 : index
    %116 = vector.load %arg21[%c0_70, %c0_71, %c0_72] : memref<1x1x128xf32, #tpu.memory_space<vmem>>, vector<1x1x128xf32>
    %117 = vector.shape_cast %116 : vector<1x1x128xf32> to vector<1x128xf32>
    %118 = vector.broadcast %117 : vector<1x128xf32> to vector<8x128xf32>
    %119 = arith.mulf %115, %118 : vector<8x128xf32>
    %c0_73 = arith.constant 0 : index
    %c0_74 = arith.constant 0 : index
    %c0_75 = arith.constant 0 : index
    %120 = vector.load %arg22[%c0_73, %c0_74, %c0_75] : memref<1x1x128xf32, #tpu.memory_space<vmem>>, vector<1x1x128xf32>
    %121 = vector.shape_cast %120 : vector<1x1x128xf32> to vector<1x128xf32>
    %122 = vector.broadcast %121 : vector<1x128xf32> to vector<8x128xf32>
    %123 = arith.addf %119, %122 : vector<8x128xf32>
    %124 = arith.addf %47, %123 : vector<8x128xf32>
    %125 = arith.truncf %124 : vector<8x128xf32> to vector<8x128xbf16>
    %c0_76 = arith.constant 0 : index
    %c0_77 = arith.constant 0 : index
    %c0_78 = arith.constant 0 : index
    %126 = vector.load %arg23[%c0_76, %c0_77, %c0_78] : memref<1x128x256xbf16, #tpu.memory_space<vmem>>, vector<1x128x256xbf16>
    %127 = vector.shape_cast %126 : vector<1x128x256xbf16> to vector<128x256xbf16>
    %cst_79 = arith.constant dense<0.000000e+00> : vector<8x256xf32>
    %128 = tpu.matmul %125, %127, %cst_79 {dimension_numbers = #tpu.dot_dimension_numbers<[1], [0], [0], [1], [0, 0, 1, 1], [], []>} : vector<8x128xbf16>, vector<128x256xbf16>, vector<8x256xf32> -> vector<8x256xf32>
    %c0_80 = arith.constant 0 : index
    %c0_81 = arith.constant 0 : index
    %c0_82 = arith.constant 0 : index
    %129 = vector.load %arg24[%c0_80, %c0_81, %c0_82] : memref<1x1x256xf32, #tpu.memory_space<vmem>>, vector<1x1x256xf32>
    %130 = vector.shape_cast %129 : vector<1x1x256xf32> to vector<1x256xf32>
    %131 = vector.broadcast %130 : vector<1x256xf32> to vector<8x256xf32>
    %132 = arith.addf %128, %131 : vector<8x256xf32>
    %cst_83 = arith.constant 0.000000e+00 : f32
    %133 = vector.broadcast %cst_83 : f32 to vector<8x256xf32>
    %134 = arith.maximumf %132, %133 : vector<8x256xf32>
    %135 = arith.truncf %134 : vector<8x256xf32> to vector<8x256xbf16>
    %c0_84 = arith.constant 0 : index
    %c0_85 = arith.constant 0 : index
    %c0_86 = arith.constant 0 : index
    %136 = vector.load %arg25[%c0_84, %c0_85, %c0_86] : memref<1x256x128xbf16, #tpu.memory_space<vmem>>, vector<1x256x128xbf16>
    %137 = vector.shape_cast %136 : vector<1x256x128xbf16> to vector<256x128xbf16>
    %cst_87 = arith.constant dense<0.000000e+00> : vector<8x128xf32>
    %138 = tpu.matmul %135, %137, %cst_87 {dimension_numbers = #tpu.dot_dimension_numbers<[1], [0], [0], [1], [0, 0, 1, 1], [], []>} : vector<8x256xbf16>, vector<256x128xbf16>, vector<8x128xf32> -> vector<8x128xf32>
    %c0_88 = arith.constant 0 : index
    %c0_89 = arith.constant 0 : index
    %c0_90 = arith.constant 0 : index
    %139 = vector.load %arg26[%c0_88, %c0_89, %c0_90] : memref<1x1x128xf32, #tpu.memory_space<vmem>>, vector<1x1x128xf32>
    %140 = vector.shape_cast %139 : vector<1x1x128xf32> to vector<1x128xf32>
    %141 = vector.broadcast %140 : vector<1x128xf32> to vector<8x128xf32>
    %142 = arith.addf %138, %141 : vector<8x128xf32>
    %143 = arith.addf %124, %142 : vector<8x128xf32>
    %c0_91 = arith.constant 0 : index
    %c0_92 = arith.constant 0 : index
    %c0_93 = arith.constant 0 : index
    %144 = vector.load %arg27[%c0_91, %c0_92, %c0_93] : memref<1x1x128xf32, #tpu.memory_space<vmem>>, vector<1x1x128xf32>
    %145 = vector.shape_cast %144 : vector<1x1x128xf32> to vector<1x128xf32>
    %146 = vector.broadcast %145 : vector<1x128xf32> to vector<8x128xf32>
    %147 = arith.mulf %143, %146 : vector<8x128xf32>
    %c0_94 = arith.constant 0 : index
    %c0_95 = arith.constant 0 : index
    %c0_96 = arith.constant 0 : index
    %148 = vector.load %arg28[%c0_94, %c0_95, %c0_96] : memref<1x1x128xf32, #tpu.memory_space<vmem>>, vector<1x1x128xf32>
    %149 = vector.shape_cast %148 : vector<1x1x128xf32> to vector<1x128xf32>
    %150 = vector.broadcast %149 : vector<1x128xf32> to vector<8x128xf32>
    %151 = arith.addf %147, %150 : vector<8x128xf32>
    %c2_i32 = arith.constant 2 : i32
    %152 = arith.cmpi slt, %arg1, %c2_i32 : i32
    %153 = arith.extui %152 : i1 to i32
    %c0_i32_97 = arith.constant 0 : i32
    %154 = arith.cmpi ne, %153, %c0_i32_97 : i32
    scf.if %154 {
      %cst_100 = arith.constant 0.000000e+00 : f32
      %158 = vector.broadcast %cst_100 : f32 to vector<8x128xf32>
      %159 = arith.maximumf %151, %158 : vector<8x128xf32>
      %c0_101 = arith.constant 0 : index
      %c0_102 = arith.constant 0 : index
      %160 = vector.load %arg36[%c0_101, %c0_102] : memref<8x128xf32, #tpu.memory_space<vmem>>, vector<8x128xf32>
      tpu.vector_store %arg36[%c0_101, %c0_102], %159 {strides = array<i32>} : memref<8x128xf32, #tpu.memory_space<vmem>>, vector<8x128xf32>,
    } else {
    }
    %c2_i32_98 = arith.constant 2 : i32
    %155 = arith.cmpi eq, %arg1, %c2_i32_98 : i32
    %156 = arith.extui %155 : i1 to i32
    %c0_i32_99 = arith.constant 0 : i32
    %157 = arith.cmpi ne, %156, %c0_i32_99 : i32
    scf.if %157 {
      %158 = tpu.iota {dimensions = array<i32: 0>} : vector<1x8xi32>
      %c1_i32 = arith.constant 1 : i32
      %159 = arith.muli %arg0, %c1_i32 : i32
      %160 = vector.broadcast %159 : i32 to vector<1x8xi32>
      %161 = arith.addi %158, %160 : vector<1x8xi32>
      %c0_100 = arith.constant 0 : index
      %c0_101 = arith.constant 0 : index
      %c0_102 = arith.constant 0 : index
      %162 = vector.load %arg5[%c0_100, %c0_101, %c0_102] : memref<1x1x8xi32, #tpu.memory_space<vmem>>, vector<1x1x8xi32>
      %163 = vector.shape_cast %162 : vector<1x1x8xi32> to vector<1x8xi32>
      %164 = arith.cmpi eq, %161, %163 : vector<1x8xi32>
      %165 = arith.extui %164 : vector<1x8xi1> to vector<1x8xi32>
      %166 = arith.sitofp %165 : vector<1x8xi32> to vector<1x8xf32>
      %cst_103 = arith.constant dense<0.000000e+00> : vector<1x128xf32>
      %167 = tpu.matmul %166, %151, %cst_103 {dimension_numbers = #tpu.dot_dimension_numbers<[1], [0], [0], [1], [0, 0, 1, 1], [], []>} : vector<1x8xf32>, vector<8x128xf32>, vector<1x128xf32> -> vector<1x128xf32>
      %cst_104 = arith.constant dense<0.000000e+00> : vector<1xf32>
      %168 = vector.multi_reduction <add>, %167, %cst_104 [1] : vector<1x128xf32> to vector<1xf32>
      %169 = vector.shape_cast %168 : vector<1xf32> to vector<1x1xf32>
      %cst_105 = arith.constant 1.280000e+02 : f32
      %170 = vector.broadcast %cst_105 : f32 to vector<1x1xf32>
      %171 = arith.divf %169, %170 : vector<1x1xf32>
      %172 = vector.broadcast %171 : vector<1x1xf32> to vector<1x128xf32>
      %173 = arith.subf %167, %172 : vector<1x128xf32>
      %174 = arith.mulf %173, %173 : vector<1x128xf32>
      %cst_106 = arith.constant dense<0.000000e+00> : vector<1xf32>
      %175 = vector.multi_reduction <add>, %174, %cst_106 [1] : vector<1x128xf32> to vector<1xf32>
      %176 = vector.shape_cast %175 : vector<1xf32> to vector<1x1xf32>
      %cst_107 = arith.constant 1.280000e+02 : f32
      %177 = vector.broadcast %cst_107 : f32 to vector<1x1xf32>
      %178 = arith.divf %176, %177 : vector<1x1xf32>
      %179 = vector.broadcast %171 : vector<1x1xf32> to vector<1x128xf32>
      %180 = arith.subf %167, %179 : vector<1x128xf32>
      %cst_108 = arith.constant 9.99999974E-6 : f32
      %181 = vector.broadcast %cst_108 : f32 to vector<1x1xf32>
      %182 = arith.addf %178, %181 : vector<1x1xf32>
      %183 = math.rsqrt %182 : vector<1x1xf32>
      %184 = vector.broadcast %183 : vector<1x1xf32> to vector<1x128xf32>
      %185 = arith.mulf %180, %184 : vector<1x128xf32>
      %c0_109 = arith.constant 0 : index
      %c0_110 = arith.constant 0 : index
      %186 = vector.load %arg29[%c0_109, %c0_110] : memref<1x128xf32, #tpu.memory_space<vmem>>, vector<1x128xf32>
      %187 = arith.mulf %185, %186 : vector<1x128xf32>
      %c0_111 = arith.constant 0 : index
      %c0_112 = arith.constant 0 : index
      %188 = vector.load %arg30[%c0_111, %c0_112] : memref<1x128xf32, #tpu.memory_space<vmem>>, vector<1x128xf32>
      %189 = arith.addf %187, %188 : vector<1x128xf32>
      %190 = arith.truncf %189 : vector<1x128xf32> to vector<1x128xbf16>
      %c0_113 = arith.constant 0 : index
      %c0_114 = arith.constant 0 : index
      %191 = vector.load %arg31[%c0_113, %c0_114] : memref<128x128xbf16, #tpu.memory_space<vmem>>, vector<128x128xbf16>
      %cst_115 = arith.constant dense<0.000000e+00> : vector<1x128xf32>
      %192 = tpu.matmul %190, %191, %cst_115 {dimension_numbers = #tpu.dot_dimension_numbers<[1], [0], [0], [1], [0, 0, 1, 1], [], []>} : vector<1x128xbf16>, vector<128x128xbf16>, vector<1x128xf32> -> vector<1x128xf32>
      %c0_116 = arith.constant 0 : index
      %c0_117 = arith.constant 0 : index
      %193 = vector.load %arg32[%c0_116, %c0_117] : memref<1x128xf32, #tpu.memory_space<vmem>>, vector<1x128xf32>
      %194 = arith.addf %192, %193 : vector<1x128xf32>
      %cst_118 = arith.constant 0.000000e+00 : f32
      %195 = vector.broadcast %cst_118 : f32 to vector<1x128xf32>
      %196 = arith.maximumf %194, %195 : vector<1x128xf32>
      %197 = arith.truncf %196 : vector<1x128xf32> to vector<1x128xbf16>
      %c0_119 = arith.constant 0 : index
      %c0_120 = arith.constant 0 : index
      %198 = vector.load %arg33[%c0_119, %c0_120] : memref<128x128xbf16, #tpu.memory_space<vmem>>, vector<128x128xbf16>
      %cst_121 = arith.constant dense<0.000000e+00> : vector<1x128xf32>
      %199 = tpu.matmul %197, %198, %cst_121 {dimension_numbers = #tpu.dot_dimension_numbers<[1], [0], [0], [1], [0, 0, 1, 1], [], []>} : vector<1x128xbf16>, vector<128x128xbf16>, vector<1x128xf32> -> vector<1x128xf32>
      %c0_122 = arith.constant 0 : index
      %c0_123 = arith.constant 0 : index
      %200 = vector.load %arg34[%c0_122, %c0_123] : memref<1x128xf32, #tpu.memory_space<vmem>>, vector<1x128xf32>
      %201 = arith.addf %199, %200 : vector<1x128xf32>
      %c0_124 = arith.constant 0 : index
      %c0_125 = arith.constant 0 : index
      %c0_126 = arith.constant 0 : index
      %202 = vector.load %arg35[%c0_124, %c0_125, %c0_126] : memref<1x1x128xf32, #tpu.memory_space<vmem>>, vector<1x1x128xf32>
      %203 = vector.shape_cast %202 : vector<1x1x128xf32> to vector<1x128xf32>
      %204 = vector.shape_cast %201 : vector<1x128xf32> to vector<1x1x128xf32>
      tpu.vector_store %arg35[%c0_124, %c0_125, %c0_126], %204 {strides = array<i32>} : memref<1x1x128xf32, #tpu.memory_space<vmem>>, vector<1x1x128xf32>,
    } else {
    }
    return
  }
  func.func @transform_0(%arg0: i32, %arg1: i32) -> (i32, i32, i32) {
    %c0_i32 = arith.constant 0 : i32
    %c0_i32_0 = arith.constant 0 : i32
    %c0_i32_1 = arith.constant 0 : i32
    return %arg0, %c0_i32, %c0_i32_0 : i32, i32, i32
  }
  func.func @transform_1(%arg0: i32, %arg1: i32) -> (i32, i32, i32) {
    %c0_i32 = arith.constant 0 : i32
    %c0_i32_0 = arith.constant 0 : i32
    %c0_i32_1 = arith.constant 0 : i32
    return %arg0, %c0_i32, %c0_i32_0 : i32, i32, i32
  }
  func.func @transform_2(%arg0: i32, %arg1: i32) -> (i32, i32, i32) {
    %c0_i32 = arith.constant 0 : i32
    %c0_i32_0 = arith.constant 0 : i32
    %c0_i32_1 = arith.constant 0 : i32
    return %arg0, %c0_i32, %c0_i32_0 : i32, i32, i32
  }
  func.func @transform_3(%arg0: i32, %arg1: i32) -> (i32, i32, i32) {
    %c0_i32 = arith.constant 0 : i32
    %c0_i32_0 = arith.constant 0 : i32
    %c0_i32_1 = arith.constant 0 : i32
    return %arg0, %c0_i32, %c0_i32_0 : i32, i32, i32
  }
  func.func @transform_4(%arg0: i32, %arg1: i32) -> (i32, i32) {
    %c0_i32 = arith.constant 0 : i32
    %c0_i32_0 = arith.constant 0 : i32
    %c0_i32_1 = arith.constant 0 : i32
    return %c0_i32, %c0_i32_0 : i32, i32
  }
  func.func @transform_5(%arg0: i32, %arg1: i32) -> (i32, i32, i32) {
    %c0_i32 = arith.constant 0 : i32
    %c0_i32_0 = arith.constant 0 : i32
    %c0_i32_1 = arith.constant 0 : i32
    return %arg1, %c0_i32, %c0_i32_0 : i32, i32, i32
  }
  func.func @transform_6(%arg0: i32, %arg1: i32) -> (i32, i32, i32) {
    %c0_i32 = arith.constant 0 : i32
    %c0_i32_0 = arith.constant 0 : i32
    %c0_i32_1 = arith.constant 0 : i32
    return %arg1, %c0_i32, %c0_i32_0 : i32, i32, i32
  }
  func.func @transform_7(%arg0: i32, %arg1: i32) -> (i32, i32, i32) {
    %c0_i32 = arith.constant 0 : i32
    %c0_i32_0 = arith.constant 0 : i32
    %c0_i32_1 = arith.constant 0 : i32
    return %arg1, %c0_i32, %c0_i32_0 : i32, i32, i32
  }
  func.func @transform_8(%arg0: i32, %arg1: i32) -> (i32, i32, i32) {
    %c0_i32 = arith.constant 0 : i32
    %c0_i32_0 = arith.constant 0 : i32
    %c0_i32_1 = arith.constant 0 : i32
    return %arg1, %c0_i32, %c0_i32_0 : i32, i32, i32
  }
  func.func @transform_9(%arg0: i32, %arg1: i32) -> (i32, i32, i32) {
    %c0_i32 = arith.constant 0 : i32
    %c0_i32_0 = arith.constant 0 : i32
    %c0_i32_1 = arith.constant 0 : i32
    return %arg1, %c0_i32, %c0_i32_0 : i32, i32, i32
  }
  func.func @transform_10(%arg0: i32, %arg1: i32) -> (i32, i32, i32) {
    %c0_i32 = arith.constant 0 : i32
    %c0_i32_0 = arith.constant 0 : i32
    %c0_i32_1 = arith.constant 0 : i32
    return %arg1, %c0_i32, %c0_i32_0 : i32, i32, i32
  }
  func.func @transform_11(%arg0: i32, %arg1: i32) -> (i32, i32, i32) {
    %c0_i32 = arith.constant 0 : i32
    %c0_i32_0 = arith.constant 0 : i32
    %c0_i32_1 = arith.constant 0 : i32
    return %arg1, %c0_i32, %c0_i32_0 : i32, i32, i32
  }
  func.func @transform_12(%arg0: i32, %arg1: i32) -> (i32, i32, i32) {
    %c0_i32 = arith.constant 0 : i32
    %c0_i32_0 = arith.constant 0 : i32
    %c0_i32_1 = arith.constant 0 : i32
    return %arg1, %c0_i32, %c0_i32_0 : i32, i32, i32
  }
  func.func @transform_13(%arg0: i32, %arg1: i32) -> (i32, i32, i32) {
    %c0_i32 = arith.constant 0 : i32
    %c0_i32_0 = arith.constant 0 : i32
    %c0_i32_1 = arith.constant 0 : i32
    return %arg1, %c0_i32, %c0_i32_0 : i32, i32, i32
  }
  func.func @transform_14(%arg0: i32, %arg1: i32) -> (i32, i32, i32) {
    %c0_i32 = arith.constant 0 : i32
    %c0_i32_0 = arith.constant 0 : i32
    %c0_i32_1 = arith.constant 0 : i32
    return %arg1, %c0_i32, %c0_i32_0 : i32, i32, i32
  }
  func.func @transform_15(%arg0: i32, %arg1: i32) -> (i32, i32, i32) {
    %c0_i32 = arith.constant 0 : i32
    %c0_i32_0 = arith.constant 0 : i32
    %c0_i32_1 = arith.constant 0 : i32
    return %arg1, %c0_i32, %c0_i32_0 : i32, i32, i32
  }
  func.func @transform_16(%arg0: i32, %arg1: i32) -> (i32, i32, i32) {
    %c0_i32 = arith.constant 0 : i32
    %c0_i32_0 = arith.constant 0 : i32
    %c0_i32_1 = arith.constant 0 : i32
    return %arg1, %c0_i32, %c0_i32_0 : i32, i32, i32
  }
  func.func @transform_17(%arg0: i32, %arg1: i32) -> (i32, i32, i32) {
    %c0_i32 = arith.constant 0 : i32
    %c0_i32_0 = arith.constant 0 : i32
    %c0_i32_1 = arith.constant 0 : i32
    return %arg1, %c0_i32, %c0_i32_0 : i32, i32, i32
  }
  func.func @transform_18(%arg0: i32, %arg1: i32) -> (i32, i32, i32) {
    %c0_i32 = arith.constant 0 : i32
    %c0_i32_0 = arith.constant 0 : i32
    %c0_i32_1 = arith.constant 0 : i32
    return %arg1, %c0_i32, %c0_i32_0 : i32, i32, i32
  }
  func.func @transform_19(%arg0: i32, %arg1: i32) -> (i32, i32, i32) {
    %c0_i32 = arith.constant 0 : i32
    %c0_i32_0 = arith.constant 0 : i32
    %c0_i32_1 = arith.constant 0 : i32
    return %arg1, %c0_i32, %c0_i32_0 : i32, i32, i32
  }
  func.func @transform_20(%arg0: i32, %arg1: i32) -> (i32, i32, i32) {
    %c0_i32 = arith.constant 0 : i32
    %c0_i32_0 = arith.constant 0 : i32
    %c0_i32_1 = arith.constant 0 : i32
    return %arg1, %c0_i32, %c0_i32_0 : i32, i32, i32
  }
  func.func @transform_21(%arg0: i32, %arg1: i32) -> (i32, i32, i32) {
    %c0_i32 = arith.constant 0 : i32
    %c0_i32_0 = arith.constant 0 : i32
    %c0_i32_1 = arith.constant 0 : i32
    return %arg1, %c0_i32, %c0_i32_0 : i32, i32, i32
  }
  func.func @transform_22(%arg0: i32, %arg1: i32) -> (i32, i32, i32) {
    %c0_i32 = arith.constant 0 : i32
    %c0_i32_0 = arith.constant 0 : i32
    %c0_i32_1 = arith.constant 0 : i32
    return %arg1, %c0_i32, %c0_i32_0 : i32, i32, i32
  }
  func.func @transform_23(%arg0: i32, %arg1: i32) -> (i32, i32, i32) {
    %c0_i32 = arith.constant 0 : i32
    %c0_i32_0 = arith.constant 0 : i32
    %c0_i32_1 = arith.constant 0 : i32
    return %arg1, %c0_i32, %c0_i32_0 : i32, i32, i32
  }
  func.func @transform_24(%arg0: i32, %arg1: i32) -> (i32, i32, i32) {
    %c0_i32 = arith.constant 0 : i32
    %c0_i32_0 = arith.constant 0 : i32
    %c0_i32_1 = arith.constant 0 : i32
    return %arg1, %c0_i32, %c0_i32_0 : i32, i32, i32
  }
  func.func @transform_25(%arg0: i32, %arg1: i32) -> (i32, i32, i32) {
    %c0_i32 = arith.constant 0 : i32
    %c0_i32_0 = arith.constant 0 : i32
    %c0_i32_1 = arith.constant 0 : i32
    return %arg1, %c0_i32, %c0_i32_0 : i32, i32, i32
  }
  func.func @transform_26(%arg0: i32, %arg1: i32) -> (i32, i32, i32) {
    %c0_i32 = arith.constant 0 : i32
    %c0_i32_0 = arith.constant 0 : i32
    %c0_i32_1 = arith.constant 0 : i32
    return %arg1, %c0_i32, %c0_i32_0 : i32, i32, i32
  }
  func.func @transform_27(%arg0: i32, %arg1: i32) -> (i32, i32) {
    %c0_i32 = arith.constant 0 : i32
    %c0_i32_0 = arith.constant 0 : i32
    %c0_i32_1 = arith.constant 0 : i32
    return %c0_i32, %c0_i32_0 : i32, i32
  }
  func.func @transform_28(%arg0: i32, %arg1: i32) -> (i32, i32) {
    %c0_i32 = arith.constant 0 : i32
    %c0_i32_0 = arith.constant 0 : i32
    %c0_i32_1 = arith.constant 0 : i32
    return %c0_i32, %c0_i32_0 : i32, i32
  }
  func.func @transform_29(%arg0: i32, %arg1: i32) -> (i32, i32) {
    %c0_i32 = arith.constant 0 : i32
    %c0_i32_0 = arith.constant 0 : i32
    %c0_i32_1 = arith.constant 0 : i32
    return %c0_i32, %c0_i32_0 : i32, i32
  }
  func.func @transform_30(%arg0: i32, %arg1: i32) -> (i32, i32) {
    %c0_i32 = arith.constant 0 : i32
    %c0_i32_0 = arith.constant 0 : i32
    %c0_i32_1 = arith.constant 0 : i32
    return %c0_i32, %c0_i32_0 : i32, i32
  }
  func.func @transform_31(%arg0: i32, %arg1: i32) -> (i32, i32) {
    %c0_i32 = arith.constant 0 : i32
    %c0_i32_0 = arith.constant 0 : i32
    %c0_i32_1 = arith.constant 0 : i32
    return %c0_i32, %c0_i32_0 : i32, i32
  }
  func.func @transform_32(%arg0: i32, %arg1: i32) -> (i32, i32) {
    %c0_i32 = arith.constant 0 : i32
    %c0_i32_0 = arith.constant 0 : i32
    %c0_i32_1 = arith.constant 0 : i32
    return %c0_i32, %c0_i32_0 : i32, i32
  }
  func.func @transform_33(%arg0: i32, %arg1: i32) -> (i32, i32, i32) {
    %c0_i32 = arith.constant 0 : i32
    %c0_i32_0 = arith.constant 0 : i32
    %c0_i32_1 = arith.constant 0 : i32
    return %arg0, %c0_i32, %c0_i32_0 : i32, i32, i32
  }
}

</mosaic_0001>

<llo_original>
// kernel: tpu_custom_call.1
$region0: #{tpu_custom_call.1}
  #allocation0 [shape = 'u32[]', space=smem, size = 0x4, offset = 0x4, fixed_abs, tag = 'smem constant byte address 0x4 - core index']
  #allocation1 [shape = 'u32[72,128]{1,0:T(1,128)}', space=vmem, size = 0x9000, scoped, tag = 'internal scratch']
  #allocation2 [shape = 'f32[8,128]{1,0:T(8,128)}', space=vmem, size = 0x1000, scoped, tag = 'scratch operand']
  %s0 = inlined_call_operand.smem [shape: u32[34], index: -1, kind: input, shape index: {}]
  %s1 = sld [smem:[%s0]]
  %s2 = scalar_lea.smem %s0, 1
  %s3 = sld [smem:[%s2]]
  %s4 = scalar_lea.smem %s0, 2
  %s5 = sld [smem:[%s4]]
  %s6 = scalar_lea.smem %s0, 3
  %s7 = sld [smem:[%s6]]
  %s8 = scalar_lea.smem %s0, 4
  %s9 = sld [smem:[%s8]]
  %s10 = scalar_lea.smem %s0, 5
  %s11 = sld [smem:[%s10]]
  %s12 = scalar_lea.smem %s0, 6
  %s13 = sld [smem:[%s12]]
  %s14 = scalar_lea.smem %s0, 7
  %s15 = sld [smem:[%s14]]
  %s16 = scalar_lea.smem %s0, 8
  %s17 = sld [smem:[%s16]]
  %s18 = scalar_lea.smem %s0, 9
  %s19 = sld [smem:[%s18]]
  %s20 = scalar_lea.smem %s0, 10
  %s21 = sld [smem:[%s20]]
  %s22 = scalar_lea.smem %s0, 11
  %s23 = sld [smem:[%s22]]
  %s24 = scalar_lea.smem %s0, 12
  %s25 = sld [smem:[%s24]]
  %s26 = scalar_lea.smem %s0, 13
  %s27 = sld [smem:[%s26]]
  %s28 = scalar_lea.smem %s0, 14
  %s29 = sld [smem:[%s28]]
  %s30 = scalar_lea.smem %s0, 15
  %s31 = sld [smem:[%s30]]
  %s32 = scalar_lea.smem %s0, 16
  %s33 = sld [smem:[%s32]]
  %s34 = scalar_lea.smem %s0, 17
  %s35 = sld [smem:[%s34]]
  %s36 = scalar_lea.smem %s0, 18
  %s37 = sld [smem:[%s36]]
  %s38 = scalar_lea.smem %s0, 19
  %s39 = sld [smem:[%s38]]
  %s40 = scalar_lea.smem %s0, 20
  %s41 = sld [smem:[%s40]]
  %s42 = scalar_lea.smem %s0, 21
  %s43 = sld [smem:[%s42]]
  %s44 = scalar_lea.smem %s0, 22
  %s45 = sld [smem:[%s44]]
  %s46 = scalar_lea.smem %s0, 23
  %s47 = sld [smem:[%s46]]
  %s48 = scalar_lea.smem %s0, 24
  %s49 = sld [smem:[%s48]]
  %s50 = scalar_lea.smem %s0, 25
  %s51 = sld [smem:[%s50]]
  %s52 = scalar_lea.smem %s0, 26
  %s53 = sld [smem:[%s52]]
  %s54 = scalar_lea.smem %s0, 27
  %s55 = sld [smem:[%s54]]
  %s56 = scalar_lea.smem %s0, 28
  %s57 = sld [smem:[%s56]]
  %s58 = scalar_lea.smem %s0, 29
  %s59 = sld [smem:[%s58]]
  %s60 = scalar_lea.smem %s0, 30
  %s61 = sld [smem:[%s60]]
  %s62 = scalar_lea.smem %s0, 31
  %s63 = sld [smem:[%s62]]
  %s64 = scalar_lea.smem %s0, 32
  %s65 = sld [smem:[%s64]]
  %s66 = scalar_lea.smem %s0, 33
  %s67 = sld [smem:[%s66]]
  %s68 = sld [smem:[#allocation0]]
  $region257: #{tpu_custom_call.1} parent=0
    _
  %s70 = ssub.s32 1, %s68
  %s71 = scalar_select 0, %s70, %s68
  $region1: #{tpu_custom_call.1} parent=0
    #allocation3 [shape = 'u8[4096]{0}', space=vmem, size = 0x1000, scoped, tag = 'input window, operand 1']
    #allocation4 [shape = 's32[2]{0}', space=sflag, size = 0x8, scoped, tag = 'scoped memory for tpu_custom_call.1']
    #allocation5 [shape = 's32[2]{0}', space=sflag, size = 0x8, scoped, tag = 'scoped memory for tpu_custom_call.1']
    #allocation6 [shape = 'u8[1024]{0}', space=vmem, size = 0x400, scoped, tag = 'input window, operand 3']
    #allocation7 [shape = 's32[2]{0}', space=sflag, size = 0x8, scoped, tag = 'scoped memory for tpu_custom_call.1']
    #allocation8 [shape = 'u8[2048]{0}', space=vmem, size = 0x800, scoped, tag = 'input window, operand 4, single buffered']
    #allocation9 [shape = 'u8[65536]{0}', space=vmem, size = 0x10000, scoped, tag = 'input window, operand 5']
    #allocation10 [shape = 's32[2]{0}', space=sflag, size = 0x8, scoped, tag = 'scoped memory for tpu_custom_call.1']
    #allocation11 [shape = 'u8[1024]{0}', space=vmem, size = 0x400, scoped, tag = 'input window, operand 6']
    #allocation12 [shape = 'u8[65536]{0}', space=vmem, size = 0x10000, scoped, tag = 'input window, operand 7']
    #allocation13 [shape = 's32[2]{0}', space=sflag, size = 0x8, scoped, tag = 'scoped memory for tpu_custom_call.1']
    #allocation14 [shape = 'u8[1024]{0}', space=vmem, size = 0x400, scoped, tag = 'input window, operand 9']
    #allocation15 [shape = 'u8[1024]{0}', space=vmem, size = 0x400, scoped, tag = 'input window, operand 10']
    #allocation16 [shape = 's32[2]{0}', space=sflag, size = 0x8, scoped, tag = 'scoped memory for tpu_custom_call.1']
    #allocation17 [shape = 'u8[65536]{0}', space=vmem, size = 0x10000, scoped, tag = 'input window, operand 11']
    #allocation18 [shape = 'u8[65536]{0}', space=vmem, size = 0x10000, scoped, tag = 'input window, operand 13']
    #allocation19 [shape = 's32[2]{0}', space=sflag, size = 0x8, scoped, tag = 'scoped memory for tpu_custom_call.1']
    #allocation20 [shape = 'u8[65536]{0}', space=vmem, size = 0x10000, scoped, tag = 'input window, operand 15']
    #allocation21 [shape = 'u8[1024]{0}', space=vmem, size = 0x400, scoped, tag = 'input window, operand 16']
    #allocation22 [shape = 's32[2]{0}', space=sflag, size = 0x8, scoped, tag = 'scoped memory for tpu_custom_call.1']
    #allocation23 [shape = 'u8[65536]{0}', space=vmem, size = 0x10000, scoped, tag = 'input window, operand 17']
    #allocation24 [shape = 'u8[1024]{0}', space=vmem, size = 0x400, scoped, tag = 'input window, operand 19']
    #allocation25 [shape = 's32[2]{0}', space=sflag, size = 0x8, scoped, tag = 'scoped memory for tpu_custom_call.1']
    #allocation26 [shape = 'u8[131072]{0}', space=vmem, size = 0x20000, scoped, tag = 'input window, operand 21']
    #allocation27 [shape = 'u8[131072]{0}', space=vmem, size = 0x20000, scoped, tag = 'input window, operand 23']
    #allocation28 [shape = 's32[2]{0}', space=sflag, size = 0x8, scoped, tag = 'scoped memory for tpu_custom_call.1']
    #allocation29 [shape = 'u8[1024]{0}', space=vmem, size = 0x400, scoped, tag = 'input window, operand 25']
    #allocation30 [shape = 'u8[1024]{0}', space=vmem, size = 0x400, scoped, tag = 'input window, operand 26']
    #allocation31 [shape = 's32[2]{0}', space=sflag, size = 0x8, scoped, tag = 'scoped memory for tpu_custom_call.1']
    #allocation32 [shape = 'u8[32768]{0}', space=vmem, size = 0x8000, scoped, tag = 'input window, operand 29, single buffered']
    #allocation33 [shape = 'u8[32768]{0}', space=vmem, size = 0x8000, scoped, tag = 'input window, operand 31, single buffered']
    #allocation34 [shape = 's32[1]{0}', space=sflag, size = 0x4, scoped, tag = 'scoped memory for tpu_custom_call.1']
    #allocation35 [shape = 'u8[1024]{0}', space=vmem, size = 0x400, scoped, tag = 'output window, operand 0']
    %72 = vsyncpa [#allocation4], 0
    %s73 = scalar_lea.sflag [#allocation4], 1
    %74 = vsyncpa %s73, 0
    %75 = vsyncpa [#allocation7], 0
    %s76 = scalar_lea.sflag [#allocation7], 1
    %77 = vsyncpa %s76, 0
    %78 = vsyncpa [#allocation10], 0
    %s79 = scalar_lea.sflag [#allocation10], 1
    %80 = vsyncpa %s79, 0
    %81 = vsyncpa [#allocation13], 0
    %s82 = scalar_lea.sflag [#allocation13], 1
    %83 = vsyncpa %s82, 0
    %84 = vsyncpa [#allocation16], 0
    %s85 = scalar_lea.sflag [#allocation16], 1
    %86 = vsyncpa %s85, 0
    %87 = vsyncpa [#allocation19], 0
    %s88 = scalar_lea.sflag [#allocation19], 1
    %89 = vsyncpa %s88, 0
    %90 = vsyncpa [#allocation22], 0
    %s91 = scalar_lea.sflag [#allocation22], 1
    %92 = vsyncpa %s91, 0
    %93 = vsyncpa [#allocation25], 0
    %s94 = scalar_lea.sflag [#allocation25], 1
    %95 = vsyncpa %s94, 0
    %96 = vsyncpa [#allocation28], 0
    %s97 = scalar_lea.sflag [#allocation28], 1
    %98 = vsyncpa %s97, 0
    %99 = vsyncpa [#allocation31], 0
    %s100 = scalar_lea.sflag [#allocation31], 1
    %101 = vsyncpa %s100, 0
    %102 = vsyncpa [#allocation34], 0
    %103 = vsyncpa [#allocation5], 0
    %s104 = scalar_lea.sflag [#allocation5], 1
    %105 = vsyncpa %s104, 0
    loop: start=0, step=1, limit=8
    $region2: #{tpu_custom_call.1} parent=1 // loop_pre_header
      _
    $region3: #{tpu_custom_call.1} parent=1 // loop_header
      %s107 = sphi 0, %s111
      %p108 = scmp.ge.s32.totalorder %s107, 8
      %s114 = sphi 0, %s126
      %s115 = sphi 0, %s122
      %s116 = sphi 0, %s114
      %s117 = sphi 0, %s115
      %s118 = sphi 0, %s116
      %s119 = sphi 0, %s117
      %s129 = sphi 0, %s131
      %s132 = sphi 0, %s129
      %s133 = sphi 0, %s132
      %s149 = sphi 0, %s133
      %s155 = sphi 0, %s157
      %s158 = sphi 0, %s155
      %s159 = sphi 0, %s158
      %s175 = sphi 0, %s159
      %s181 = sphi 0, %s183
      %s184 = sphi 0, %s181
      %s185 = sphi 0, %s184
      %s201 = sphi 0, %s185
      %s207 = sphi 0, %s209
      %s210 = sphi 0, %s207
      %s211 = sphi 0, %s210
      %s227 = sphi 0, %s211
      %s231 = sphi 0, %s231
      %s233 = sphi 0, %s231
      %s234 = sphi 0, %s233
      %s248 = sphi 0, %s234
      %s254 = sphi 0, %s256
      %s257 = sphi 0, %s254
      %s258 = sphi 0, %s257
      %s274 = sphi 0, %s258
      %s280 = sphi 0, %s282
      %s283 = sphi 0, %s280
      %s284 = sphi 0, %s283
      %s300 = sphi 0, %s284
      %s306 = sphi 0, %s308
      %s309 = sphi 0, %s306
      %s310 = sphi 0, %s309
      %s326 = sphi 0, %s310
      %s332 = sphi 0, %s334
      %s335 = sphi 0, %s332
      %s336 = sphi 0, %s335
      %s352 = sphi 0, %s336
      %s358 = sphi 0, %s360
      %s361 = sphi 0, %s358
      %s362 = sphi 0, %s361
      %s378 = sphi 0, %s362
      %s384 = sphi 0, %s386
      %s387 = sphi 0, %s384
      %s388 = sphi 0, %s387
      %s404 = sphi 0, %s388
      %s410 = sphi 0, %s412
      %s413 = sphi 0, %s410
      %s414 = sphi 0, %s413
      %s430 = sphi 0, %s414
      %s436 = sphi 0, %s438
      %s439 = sphi 0, %s436
      %s440 = sphi 0, %s439
      %s456 = sphi 0, %s440
      %s462 = sphi 0, %s464
      %s465 = sphi 0, %s462
      %s466 = sphi 0, %s465
      %s482 = sphi 0, %s466
      %s488 = sphi 0, %s490
      %s491 = sphi 0, %s488
      %s492 = sphi 0, %s491
      %s508 = sphi 0, %s492
      %s514 = sphi 0, %s516
      %s517 = sphi 0, %s514
      %s518 = sphi 0, %s517
      %s534 = sphi 0, %s518
      %s540 = sphi 0, %s542
      %s543 = sphi 0, %s540
      %s544 = sphi 0, %s543
      %s560 = sphi 0, %s544
      %s566 = sphi 0, %s568
      %s569 = sphi 0, %s566
      %s570 = sphi 0, %s569
      %s586 = sphi 0, %s570
      %s592 = sphi 0, %s594
      %s595 = sphi 0, %s592
      %s596 = sphi 0, %s595
      %s612 = sphi 0, %s596
      %s618 = sphi 0, %s620
      %s621 = sphi 0, %s618
      %s622 = sphi 0, %s621
      %s638 = sphi 0, %s622
      %s644 = sphi 0, %s646
      %s647 = sphi 0, %s644
      %s648 = sphi 0, %s647
      %s664 = sphi 0, %s648
      %s670 = sphi 0, %s672
      %s673 = sphi 0, %s670
      %s674 = sphi 0, %s673
      %s690 = sphi 0, %s674
      %s696 = sphi 0, %s698
      %s699 = sphi 0, %s696
      %s700 = sphi 0, %s699
      %s716 = sphi 0, %s700
      %s722 = sphi 0, %s724
      %s725 = sphi 0, %s722
      %s726 = sphi 0, %s725
      %s742 = sphi 0, %s726
      %s748 = sphi 0, %s750
      %s751 = sphi 0, %s748
      %s752 = sphi 0, %s751
      %s768 = sphi 0, %s752
      %s774 = sphi 0, %s776
      %s777 = sphi 0, %s774
      %s778 = sphi 0, %s777
      %s794 = sphi 0, %s778
      %s800 = sphi 0, %s802
      %s803 = sphi 0, %s800
      %s804 = sphi 0, %s803
      %s820 = sphi 0, %s804
      %s824 = sphi 0, %s824
      %s826 = sphi 0, %s824
      %s827 = sphi 0, %s826
      %s841 = sphi 0, %s827
      %s845 = sphi 0, %s845
      %s847 = sphi 0, %s845
      %s848 = sphi 0, %s847
      %s862 = sphi 0, %s848
      %s866 = sphi 0, %s866
      %s868 = sphi 0, %s866
      %s869 = sphi 0, %s868
      %s883 = sphi 0, %s869
      %s887 = sphi 0, %s887
      %s889 = sphi 0, %s887
      %s890 = sphi 0, %s889
      %s904 = sphi 0, %s890
      %s908 = sphi 0, %s908
      %s910 = sphi 0, %s908
      %s911 = sphi 0, %s910
      %s925 = sphi 0, %s911
      %s929 = sphi 0, %s929
      %s931 = sphi 0, %s929
      %s932 = sphi 0, %s931
      %s946 = sphi 0, %s932
      %s952 = sphi 0, %s954
      %s955 = sphi 0, %s952
      %s956 = sphi 0, %s955
      %s972 = sphi 0, %s956
    $region4: #{tpu_custom_call.1} parent=1 // loop_header_branch
      %110 = sbr.rel (%p108) target = $region8
    $region5: #{tpu_custom_call.1} parent=1 // loop_body
      %s112 = ssub.s32 %s107, 1
      %s113 = ssub.s32 %s107, 2
      %s120 = sadd.s32 1, %s115
      %p121 = scmp.ge.s32.totalorder %s120, 3
      %s122 = scalar_select %p121, 0, %s120
      %s123 = sadd.s32 1, %s114
      %s124 = scalar_select %p121, %s123, %s114
      %p125 = scmp.ge.s32.totalorder %s124, 2
      %s126 = scalar_select %p125, 0, %s124
      %s127 = ssub.s32 %s114, %s126
      %p128 = scmp.eq.s32.totalorder %s127, 0
      %s130 = sadd.s32 %s129, 1
      %s131 = scalar_select %p128, %s129, %s130
      %p134 = pneg %p128
      %p135 = scmp.eq.s32.totalorder %s107, 5
      %p136 = por %p134, %p135
      %p137 = scmp.ne.s32.totalorder %s129, %s132
      %p138 = scmp.eq.s32.totalorder %s107, 0
      %p139 = por %p137, %p138
      %p140 = scmp.ne.s32.totalorder %s129, %s132
      %p141 = scmp.eq.s32.totalorder %s112, 5
      %p142 = por %p140, %p141
      %p143 = scmp.ne.s32.totalorder %s132, %s133
      %p144 = scmp.eq.s32.totalorder %s112, 0
      %p145 = por %p143, %p144
      %p146 = scmp.ne.s32.totalorder %s132, %s133
      %p147 = scmp.eq.s32.totalorder %s113, 5
      %p148 = por %p146, %p147
      %p150 = scmp.ne.s32.totalorder %s133, %s149
      %p151 = scmp.eq.s32.totalorder %s113, 0
      %p152 = por %p150, %p151
      %s153 = ssub.s32 %s114, %s126
      %p154 = scmp.eq.s32.totalorder %s153, 0
      %s156 = sadd.s32 %s155, 1
      %s157 = scalar_select %p154, %s155, %s156
      %p160 = pneg %p154
      %p161 = scmp.eq.s32.totalorder %s107, 5
      %p162 = por %p160, %p161
      %p163 = scmp.ne.s32.totalorder %s155, %s158
      %p164 = scmp.eq.s32.totalorder %s107, 0
      %p165 = por %p163, %p164
      %p166 = scmp.ne.s32.totalorder %s155, %s158
      %p167 = scmp.eq.s32.totalorder %s112, 5
      %p168 = por %p166, %p167
      %p169 = scmp.ne.s32.totalorder %s158, %s159
      %p170 = scmp.eq.s32.totalorder %s112, 0
      %p171 = por %p169, %p170
      %p172 = scmp.ne.s32.totalorder %s158, %s159
      %p173 = scmp.eq.s32.totalorder %s113, 5
      %p174 = por %p172, %p173
      %p176 = scmp.ne.s32.totalorder %s159, %s175
      %p177 = scmp.eq.s32.totalorder %s113, 0
      %p178 = por %p176, %p177
      %s179 = ssub.s32 %s114, %s126
      %p180 = scmp.eq.s32.totalorder %s179, 0
      %s182 = sadd.s32 %s181, 1
      %s183 = scalar_select %p180, %s181, %s182
      %p186 = pneg %p180
      %p187 = scmp.eq.s32.totalorder %s107, 5
      %p188 = por %p186, %p187
      %p189 = scmp.ne.s32.totalorder %s181, %s184
      %p190 = scmp.eq.s32.totalorder %s107, 0
      %p191 = por %p189, %p190
      %p192 = scmp.ne.s32.totalorder %s181, %s184
      %p193 = scmp.eq.s32.totalorder %s112, 5
      %p194 = por %p192, %p193
      %p195 = scmp.ne.s32.totalorder %s184, %s185
      %p196 = scmp.eq.s32.totalorder %s112, 0
      %p197 = por %p195, %p196
      %p198 = scmp.ne.s32.totalorder %s184, %s185
      %p199 = scmp.eq.s32.totalorder %s113, 5
      %p200 = por %p198, %p199
      %p202 = scmp.ne.s32.totalorder %s185, %s201
      %p203 = scmp.eq.s32.totalorder %s113, 0
      %p204 = por %p202, %p203
      %s205 = ssub.s32 %s114, %s126
      %p206 = scmp.eq.s32.totalorder %s205, 0
      %s208 = sadd.s32 %s207, 1
      %s209 = scalar_select %p206, %s207, %s208
      %p212 = pneg %p206
      %p213 = scmp.eq.s32.totalorder %s107, 5
      %p214 = por %p212, %p213
      %p215 = scmp.ne.s32.totalorder %s207, %s210
      %p216 = scmp.eq.s32.totalorder %s107, 0
      %p217 = por %p215, %p216
      %p218 = scmp.ne.s32.totalorder %s207, %s210
      %p219 = scmp.eq.s32.totalorder %s112, 5
      %p220 = por %p218, %p219
      %p221 = scmp.ne.s32.totalorder %s210, %s211
      %p222 = scmp.eq.s32.totalorder %s112, 0
      %p223 = por %p221, %p222
      %p224 = scmp.ne.s32.totalorder %s210, %s211
      %p225 = scmp.eq.s32.totalorder %s113, 5
      %p226 = por %p224, %p225
      %p228 = scmp.ne.s32.totalorder %s211, %s227
      %p229 = scmp.eq.s32.totalorder %s113, 0
      %p230 = por %p228, %p229
      %s232 = sadd.s32 %s231, 1
      %p235 = scmp.eq.s32.totalorder %s107, 5
      %p236 = scmp.ne.s32.totalorder %s231, %s233
      %p237 = scmp.eq.s32.totalorder %s107, 0
      %p238 = por %p236, %p237
      %p239 = scmp.ne.s32.totalorder %s231, %s233
      %p240 = scmp.eq.s32.totalorder %s112, 5
      %p241 = por %p239, %p240
      %p242 = scmp.ne.s32.totalorder %s233, %s234
      %p243 = scmp.eq.s32.totalorder %s112, 0
      %p244 = por %p242, %p243
      %p245 = scmp.ne.s32.totalorder %s233, %s234
      %p246 = scmp.eq.s32.totalorder %s113, 5
      %p247 = por %p245, %p246
      %p249 = scmp.ne.s32.totalorder %s234, %s248
      %p250 = scmp.eq.s32.totalorder %s113, 0
      %p251 = por %p249, %p250
      %s252 = ssub.s32 %s115, %s122
      %p253 = scmp.eq.s32.totalorder %s252, 0
      %s255 = sadd.s32 %s254, 1
      %s256 = scalar_select %p253, %s254, %s255
      %p259 = pneg %p253
      %p260 = scmp.eq.s32.totalorder %s107, 5
      %p261 = por %p259, %p260
      %p262 = scmp.ne.s32.totalorder %s254, %s257
      %p263 = scmp.eq.s32.totalorder %s107, 0
      %p264 = por %p262, %p263
      %p265 = scmp.ne.s32.totalorder %s254, %s257
      %p266 = scmp.eq.s32.totalorder %s112, 5
      %p267 = por %p265, %p266
      %p268 = scmp.ne.s32.totalorder %s257, %s258
      %p269 = scmp.eq.s32.totalorder %s112, 0
      %p270 = por %p268, %p269
      %p271 = scmp.ne.s32.totalorder %s257, %s258
      %p272 = scmp.eq.s32.totalorder %s113, 5
      %p273 = por %p271, %p272
      %p275 = scmp.ne.s32.totalorder %s258, %s274
      %p276 = scmp.eq.s32.totalorder %s113, 0
      %p277 = por %p275, %p276
      %s278 = ssub.s32 %s115, %s122
      %p279 = scmp.eq.s32.totalorder %s278, 0
      %s281 = sadd.s32 %s280, 1
      %s282 = scalar_select %p279, %s280, %s281
      %p285 = pneg %p279
      %p286 = scmp.eq.s32.totalorder %s107, 5
      %p287 = por %p285, %p286
      %p288 = scmp.ne.s32.totalorder %s280, %s283
      %p289 = scmp.eq.s32.totalorder %s107, 0
      %p290 = por %p288, %p289
      %p291 = scmp.ne.s32.totalorder %s280, %s283
      %p292 = scmp.eq.s32.totalorder %s112, 5
      %p293 = por %p291, %p292
      %p294 = scmp.ne.s32.totalorder %s283, %s284
      %p295 = scmp.eq.s32.totalorder %s112, 0
      %p296 = por %p294, %p295
      %p297 = scmp.ne.s32.totalorder %s283, %s284
      %p298 = scmp.eq.s32.totalorder %s113, 5
      %p299 = por %p297, %p298
      %p301 = scmp.ne.s32.totalorder %s284, %s300
      %p302 = scmp.eq.s32.totalorder %s113, 0
      %p303 = por %p301, %p302
      %s304 = ssub.s32 %s115, %s122
      %p305 = scmp.eq.s32.totalorder %s304, 0
      %s307 = sadd.s32 %s306, 1
      %s308 = scalar_select %p305, %s306, %s307
      %p311 = pneg %p305
      %p312 = scmp.eq.s32.totalorder %s107, 5
      %p313 = por %p311, %p312
      %p314 = scmp.ne.s32.totalorder %s306, %s309
      %p315 = scmp.eq.s32.totalorder %s107, 0
      %p316 = por %p314, %p315
      %p317 = scmp.ne.s32.totalorder %s306, %s309
      %p318 = scmp.eq.s32.totalorder %s112, 5
      %p319 = por %p317, %p318
      %p320 = scmp.ne.s32.totalorder %s309, %s310
      %p321 = scmp.eq.s32.totalorder %s112, 0
      %p322 = por %p320, %p321
      %p323 = scmp.ne.s32.totalorder %s309, %s310
      %p324 = scmp.eq.s32.totalorder %s113, 5
      %p325 = por %p323, %p324
      %p327 = scmp.ne.s32.totalorder %s310, %s326
      %p328 = scmp.eq.s32.totalorder %s113, 0
      %p329 = por %p327, %p328
      %s330 = ssub.s32 %s115, %s122
      %p331 = scmp.eq.s32.totalorder %s330, 0
      %s333 = sadd.s32 %s332, 1
      %s334 = scalar_select %p331, %s332, %s333
      %p337 = pneg %p331
      %p338 = scmp.eq.s32.totalorder %s107, 5
      %p339 = por %p337, %p338
      %p340 = scmp.ne.s32.totalorder %s332, %s335
      %p341 = scmp.eq.s32.totalorder %s107, 0
      %p342 = por %p340, %p341
      %p343 = scmp.ne.s32.totalorder %s332, %s335
      %p344 = scmp.eq.s32.totalorder %s112, 5
      %p345 = por %p343, %p344
      %p346 = scmp.ne.s32.totalorder %s335, %s336
      %p347 = scmp.eq.s32.totalorder %s112, 0
      %p348 = por %p346, %p347
      %p349 = scmp.ne.s32.totalorder %s335, %s336
      %p350 = scmp.eq.s32.totalorder %s113, 5
      %p351 = por %p349, %p350
      %p353 = scmp.ne.s32.totalorder %s336, %s352
      %p354 = scmp.eq.s32.totalorder %s113, 0
      %p355 = por %p353, %p354
      %s356 = ssub.s32 %s115, %s122
      %p357 = scmp.eq.s32.totalorder %s356, 0
      %s359 = sadd.s32 %s358, 1
      %s360 = scalar_select %p357, %s358, %s359
      %p363 = pneg %p357
      %p364 = scmp.eq.s32.totalorder %s107, 5
      %p365 = por %p363, %p364
      %p366 = scmp.ne.s32.totalorder %s358, %s361
      %p367 = scmp.eq.s32.totalorder %s107, 0
      %p368 = por %p366, %p367
      %p369 = scmp.ne.s32.totalorder %s358, %s361
      %p370 = scmp.eq.s32.totalorder %s112, 5
      %p371 = por %p369, %p370
      %p372 = scmp.ne.s32.totalorder %s361, %s362
      %p373 = scmp.eq.s32.totalorder %s112, 0
      %p374 = por %p372, %p373
      %p375 = scmp.ne.s32.totalorder %s361, %s362
      %p376 = scmp.eq.s32.totalorder %s113, 5
      %p377 = por %p375, %p376
      %p379 = scmp.ne.s32.totalorder %s362, %s378
      %p380 = scmp.eq.s32.totalorder %s113, 0
      %p381 = por %p379, %p380
      %s382 = ssub.s32 %s115, %s122
      %p383 = scmp.eq.s32.totalorder %s382, 0
      %s385 = sadd.s32 %s384, 1
      %s386 = scalar_select %p383, %s384, %s385
      %p389 = pneg %p383
      %p390 = scmp.eq.s32.totalorder %s107, 5
      %p391 = por %p389, %p390
      %p392 = scmp.ne.s32.totalorder %s384, %s387
      %p393 = scmp.eq.s32.totalorder %s107, 0
      %p394 = por %p392, %p393
      %p395 = scmp.ne.s32.totalorder %s384, %s387
      %p396 = scmp.eq.s32.totalorder %s112, 5
      %p397 = por %p395, %p396
      %p398 = scmp.ne.s32.totalorder %s387, %s388
      %p399 = scmp.eq.s32.totalorder %s112, 0
      %p400 = por %p398, %p399
      %p401 = scmp.ne.s32.totalorder %s387, %s388
      %p402 = scmp.eq.s32.totalorder %s113, 5
      %p403 = por %p401, %p402
      %p405 = scmp.ne.s32.totalorder %s388, %s404
      %p406 = scmp.eq.s32.totalorder %s113, 0
      %p407 = por %p405, %p406
      %s408 = ssub.s32 %s115, %s122
      %p409 = scmp.eq.s32.totalorder %s408, 0
      %s411 = sadd.s32 %s410, 1
      %s412 = scalar_select %p409, %s410, %s411
      %p415 = pneg %p409
      %p416 = scmp.eq.s32.totalorder %s107, 5
      %p417 = por %p415, %p416
      %p418 = scmp.ne.s32.totalorder %s410, %s413
      %p419 = scmp.eq.s32.totalorder %s107, 0
      %p420 = por %p418, %p419
      %p421 = scmp.ne.s32.totalorder %s410, %s413
      %p422 = scmp.eq.s32.totalorder %s112, 5
      %p423 = por %p421, %p422
      %p424 = scmp.ne.s32.totalorder %s413, %s414
      %p425 = scmp.eq.s32.totalorder %s112, 0
      %p426 = por %p424, %p425
      %p427 = scmp.ne.s32.totalorder %s413, %s414
      %p428 = scmp.eq.s32.totalorder %s113, 5
      %p429 = por %p427, %p428
      %p431 = scmp.ne.s32.totalorder %s414, %s430
      %p432 = scmp.eq.s32.totalorder %s113, 0
      %p433 = por %p431, %p432
      %s434 = ssub.s32 %s115, %s122
      %p435 = scmp.eq.s32.totalorder %s434, 0
      %s437 = sadd.s32 %s436, 1
      %s438 = scalar_select %p435, %s436, %s437
      %p441 = pneg %p435
      %p442 = scmp.eq.s32.totalorder %s107, 5
      %p443 = por %p441, %p442
      %p444 = scmp.ne.s32.totalorder %s436, %s439
      %p445 = scmp.eq.s32.totalorder %s107, 0
      %p446 = por %p444, %p445
      %p447 = scmp.ne.s32.totalorder %s436, %s439
      %p448 = scmp.eq.s32.totalorder %s112, 5
      %p449 = por %p447, %p448
      %p450 = scmp.ne.s32.totalorder %s439, %s440
      %p451 = scmp.eq.s32.totalorder %s112, 0
      %p452 = por %p450, %p451
      %p453 = scmp.ne.s32.totalorder %s439, %s440
      %p454 = scmp.eq.s32.totalorder %s113, 5
      %p455 = por %p453, %p454
      %p457 = scmp.ne.s32.totalorder %s440, %s456
      %p458 = scmp.eq.s32.totalorder %s113, 0
      %p459 = por %p457, %p458
      %s460 = ssub.s32 %s115, %s122
      %p461 = scmp.eq.s32.totalorder %s460, 0
      %s463 = sadd.s32 %s462, 1
      %s464 = scalar_select %p461, %s462, %s463
      %p467 = pneg %p461
      %p468 = scmp.eq.s32.totalorder %s107, 5
      %p469 = por %p467, %p468
      %p470 = scmp.ne.s32.totalorder %s462, %s465
      %p471 = scmp.eq.s32.totalorder %s107, 0
      %p472 = por %p470, %p471
      %p473 = scmp.ne.s32.totalorder %s462, %s465
      %p474 = scmp.eq.s32.totalorder %s112, 5
      %p475 = por %p473, %p474
      %p476 = scmp.ne.s32.totalorder %s465, %s466
      %p477 = scmp.eq.s32.totalorder %s112, 0
      %p478 = por %p476, %p477
      %p479 = scmp.ne.s32.totalorder %s465, %s466
      %p480 = scmp.eq.s32.totalorder %s113, 5
      %p481 = por %p479, %p480
      %p483 = scmp.ne.s32.totalorder %s466, %s482
      %p484 = scmp.eq.s32.totalorder %s113, 0
      %p485 = por %p483, %p484
      %s486 = ssub.s32 %s115, %s122
      %p487 = scmp.eq.s32.totalorder %s486, 0
      %s489 = sadd.s32 %s488, 1
      %s490 = scalar_select %p487, %s488, %s489
      %p493 = pneg %p487
      %p494 = scmp.eq.s32.totalorder %s107, 5
      %p495 = por %p493, %p494
      %p496 = scmp.ne.s32.totalorder %s488, %s491
      %p497 = scmp.eq.s32.totalorder %s107, 0
      %p498 = por %p496, %p497
      %p499 = scmp.ne.s32.totalorder %s488, %s491
      %p500 = scmp.eq.s32.totalorder %s112, 5
      %p501 = por %p499, %p500
      %p502 = scmp.ne.s32.totalorder %s491, %s492
      %p503 = scmp.eq.s32.totalorder %s112, 0
      %p504 = por %p502, %p503
      %p505 = scmp.ne.s32.totalorder %s491, %s492
      %p506 = scmp.eq.s32.totalorder %s113, 5
      %p507 = por %p505, %p506
      %p509 = scmp.ne.s32.totalorder %s492, %s508
      %p510 = scmp.eq.s32.totalorder %s113, 0
      %p511 = por %p509, %p510
      %s512 = ssub.s32 %s115, %s122
      %p513 = scmp.eq.s32.totalorder %s512, 0
      %s515 = sadd.s32 %s514, 1
      %s516 = scalar_select %p513, %s514, %s515
      %p519 = pneg %p513
      %p520 = scmp.eq.s32.totalorder %s107, 5
      %p521 = por %p519, %p520
      %p522 = scmp.ne.s32.totalorder %s514, %s517
      %p523 = scmp.eq.s32.totalorder %s107, 0
      %p524 = por %p522, %p523
      %p525 = scmp.ne.s32.totalorder %s514, %s517
      %p526 = scmp.eq.s32.totalorder %s112, 5
      %p527 = por %p525, %p526
      %p528 = scmp.ne.s32.totalorder %s517, %s518
      %p529 = scmp.eq.s32.totalorder %s112, 0
      %p530 = por %p528, %p529
      %p531 = scmp.ne.s32.totalorder %s517, %s518
      %p532 = scmp.eq.s32.totalorder %s113, 5
      %p533 = por %p531, %p532
      %p535 = scmp.ne.s32.totalorder %s518, %s534
      %p536 = scmp.eq.s32.totalorder %s113, 0
      %p537 = por %p535, %p536
      %s538 = ssub.s32 %s115, %s122
      %p539 = scmp.eq.s32.totalorder %s538, 0
      %s541 = sadd.s32 %s540, 1
      %s542 = scalar_select %p539, %s540, %s541
      %p545 = pneg %p539
      %p546 = scmp.eq.s32.totalorder %s107, 5
      %p547 = por %p545, %p546
      %p548 = scmp.ne.s32.totalorder %s540, %s543
      %p549 = scmp.eq.s32.totalorder %s107, 0
      %p550 = por %p548, %p549
      %p551 = scmp.ne.s32.totalorder %s540, %s543
      %p552 = scmp.eq.s32.totalorder %s112, 5
      %p553 = por %p551, %p552
      %p554 = scmp.ne.s32.totalorder %s543, %s544
      %p555 = scmp.eq.s32.totalorder %s112, 0
      %p556 = por %p554, %p555
      %p557 = scmp.ne.s32.totalorder %s543, %s544
      %p558 = scmp.eq.s32.totalorder %s113, 5
      %p559 = por %p557, %p558
      %p561 = scmp.ne.s32.totalorder %s544, %s560
      %p562 = scmp.eq.s32.totalorder %s113, 0
      %p563 = por %p561, %p562
      %s564 = ssub.s32 %s115, %s122
      %p565 = scmp.eq.s32.totalorder %s564, 0
      %s567 = sadd.s32 %s566, 1
      %s568 = scalar_select %p565, %s566, %s567
      %p571 = pneg %p565
      %p572 = scmp.eq.s32.totalorder %s107, 5
      %p573 = por %p571, %p572
      %p574 = scmp.ne.s32.totalorder %s566, %s569
      %p575 = scmp.eq.s32.totalorder %s107, 0
      %p576 = por %p574, %p575
      %p577 = scmp.ne.s32.totalorder %s566, %s569
      %p578 = scmp.eq.s32.totalorder %s112, 5
      %p579 = por %p577, %p578
      %p580 = scmp.ne.s32.totalorder %s569, %s570
      %p581 = scmp.eq.s32.totalorder %s112, 0
      %p582 = por %p580, %p581
      %p583 = scmp.ne.s32.totalorder %s569, %s570
      %p584 = scmp.eq.s32.totalorder %s113, 5
      %p585 = por %p583, %p584
      %p587 = scmp.ne.s32.totalorder %s570, %s586
      %p588 = scmp.eq.s32.totalorder %s113, 0
      %p589 = por %p587, %p588
      %s590 = ssub.s32 %s115, %s122
      %p591 = scmp.eq.s32.totalorder %s590, 0
      %s593 = sadd.s32 %s592, 1
      %s594 = scalar_select %p591, %s592, %s593
      %p597 = pneg %p591
      %p598 = scmp.eq.s32.totalorder %s107, 5
      %p599 = por %p597, %p598
      %p600 = scmp.ne.s32.totalorder %s592, %s595
      %p601 = scmp.eq.s32.totalorder %s107, 0
      %p602 = por %p600, %p601
      %p603 = scmp.ne.s32.totalorder %s592, %s595
      %p604 = scmp.eq.s32.totalorder %s112, 5
      %p605 = por %p603, %p604
      %p606 = scmp.ne.s32.totalorder %s595, %s596
      %p607 = scmp.eq.s32.totalorder %s112, 0
      %p608 = por %p606, %p607
      %p609 = scmp.ne.s32.totalorder %s595, %s596
      %p610 = scmp.eq.s32.totalorder %s113, 5
      %p611 = por %p609, %p610
      %p613 = scmp.ne.s32.totalorder %s596, %s612
      %p614 = scmp.eq.s32.totalorder %s113, 0
      %p615 = por %p613, %p614
      %s616 = ssub.s32 %s115, %s122
      %p617 = scmp.eq.s32.totalorder %s616, 0
      %s619 = sadd.s32 %s618, 1
      %s620 = scalar_select %p617, %s618, %s619
      %p623 = pneg %p617
      %p624 = scmp.eq.s32.totalorder %s107, 5
      %p625 = por %p623, %p624
      %p626 = scmp.ne.s32.totalorder %s618, %s621
      %p627 = scmp.eq.s32.totalorder %s107, 0
      %p628 = por %p626, %p627
      %p629 = scmp.ne.s32.totalorder %s618, %s621
      %p630 = scmp.eq.s32.totalorder %s112, 5
      %p631 = por %p629, %p630
      %p632 = scmp.ne.s32.totalorder %s621, %s622
      %p633 = scmp.eq.s32.totalorder %s112, 0
      %p634 = por %p632, %p633
      %p635 = scmp.ne.s32.totalorder %s621, %s622
      %p636 = scmp.eq.s32.totalorder %s113, 5
      %p637 = por %p635, %p636
      %p639 = scmp.ne.s32.totalorder %s622, %s638
      %p640 = scmp.eq.s32.totalorder %s113, 0
      %p641 = por %p639, %p640
      %s642 = ssub.s32 %s115, %s122
      %p643 = scmp.eq.s32.totalorder %s642, 0
      %s645 = sadd.s32 %s644, 1
      %s646 = scalar_select %p643, %s644, %s645
      %p649 = pneg %p643
      %p650 = scmp.eq.s32.totalorder %s107, 5
      %p651 = por %p649, %p650
      %p652 = scmp.ne.s32.totalorder %s644, %s647
      %p653 = scmp.eq.s32.totalorder %s107, 0
      %p654 = por %p652, %p653
      %p655 = scmp.ne.s32.totalorder %s644, %s647
      %p656 = scmp.eq.s32.totalorder %s112, 5
      %p657 = por %p655, %p656
      %p658 = scmp.ne.s32.totalorder %s647, %s648
      %p659 = scmp.eq.s32.totalorder %s112, 0
      %p660 = por %p658, %p659
      %p661 = scmp.ne.s32.totalorder %s647, %s648
      %p662 = scmp.eq.s32.totalorder %s113, 5
      %p663 = por %p661, %p662
      %p665 = scmp.ne.s32.totalorder %s648, %s664
      %p666 = scmp.eq.s32.totalorder %s113, 0
      %p667 = por %p665, %p666
      %s668 = ssub.s32 %s115, %s122
      %p669 = scmp.eq.s32.totalorder %s668, 0
      %s671 = sadd.s32 %s670, 1
      %s672 = scalar_select %p669, %s670, %s671
      %p675 = pneg %p669
      %p676 = scmp.eq.s32.totalorder %s107, 5
      %p677 = por %p675, %p676
      %p678 = scmp.ne.s32.totalorder %s670, %s673
      %p679 = scmp.eq.s32.totalorder %s107, 0
      %p680 = por %p678, %p679
      %p681 = scmp.ne.s32.totalorder %s670, %s673
      %p682 = scmp.eq.s32.totalorder %s112, 5
      %p683 = por %p681, %p682
      %p684 = scmp.ne.s32.totalorder %s673, %s674
      %p685 = scmp.eq.s32.totalorder %s112, 0
      %p686 = por %p684, %p685
      %p687 = scmp.ne.s32.totalorder %s673, %s674
      %p688 = scmp.eq.s32.totalorder %s113, 5
      %p689 = por %p687, %p688
      %p691 = scmp.ne.s32.totalorder %s674, %s690
      %p692 = scmp.eq.s32.totalorder %s113, 0
      %p693 = por %p691, %p692
      %s694 = ssub.s32 %s115, %s122
      %p695 = scmp.eq.s32.totalorder %s694, 0
      %s697 = sadd.s32 %s696, 1
      %s698 = scalar_select %p695, %s696, %s697
      %p701 = pneg %p695
      %p702 = scmp.eq.s32.totalorder %s107, 5
      %p703 = por %p701, %p702
      %p704 = scmp.ne.s32.totalorder %s696, %s699
      %p705 = scmp.eq.s32.totalorder %s107, 0
      %p706 = por %p704, %p705
      %p707 = scmp.ne.s32.totalorder %s696, %s699
      %p708 = scmp.eq.s32.totalorder %s112, 5
      %p709 = por %p707, %p708
      %p710 = scmp.ne.s32.totalorder %s699, %s700
      %p711 = scmp.eq.s32.totalorder %s112, 0
      %p712 = por %p710, %p711
      %p713 = scmp.ne.s32.totalorder %s699, %s700
      %p714 = scmp.eq.s32.totalorder %s113, 5
      %p715 = por %p713, %p714
      %p717 = scmp.ne.s32.totalorder %s700, %s716
      %p718 = scmp.eq.s32.totalorder %s113, 0
      %p719 = por %p717, %p718
      %s720 = ssub.s32 %s115, %s122
      %p721 = scmp.eq.s32.totalorder %s720, 0
      %s723 = sadd.s32 %s722, 1
      %s724 = scalar_select %p721, %s722, %s723
      %p727 = pneg %p721
      %p728 = scmp.eq.s32.totalorder %s107, 5
      %p729 = por %p727, %p728
      %p730 = scmp.ne.s32.totalorder %s722, %s725
      %p731 = scmp.eq.s32.totalorder %s107, 0
      %p732 = por %p730, %p731
      %p733 = scmp.ne.s32.totalorder %s722, %s725
      %p734 = scmp.eq.s32.totalorder %s112, 5
      %p735 = por %p733, %p734
      %p736 = scmp.ne.s32.totalorder %s725, %s726
      %p737 = scmp.eq.s32.totalorder %s112, 0
      %p738 = por %p736, %p737
      %p739 = scmp.ne.s32.totalorder %s725, %s726
      %p740 = scmp.eq.s32.totalorder %s113, 5
      %p741 = por %p739, %p740
      %p743 = scmp.ne.s32.totalorder %s726, %s742
      %p744 = scmp.eq.s32.totalorder %s113, 0
      %p745 = por %p743, %p744
      %s746 = ssub.s32 %s115, %s122
      %p747 = scmp.eq.s32.totalorder %s746, 0
      %s749 = sadd.s32 %s748, 1
      %s750 = scalar_select %p747, %s748, %s749
      %p753 = pneg %p747
      %p754 = scmp.eq.s32.totalorder %s107, 5
      %p755 = por %p753, %p754
      %p756 = scmp.ne.s32.totalorder %s748, %s751
      %p757 = scmp.eq.s32.totalorder %s107, 0
      %p758 = por %p756, %p757
      %p759 = scmp.ne.s32.totalorder %s748, %s751
      %p760 = scmp.eq.s32.totalorder %s112, 5
      %p761 = por %p759, %p760
      %p762 = scmp.ne.s32.totalorder %s751, %s752
      %p763 = scmp.eq.s32.totalorder %s112, 0
      %p764 = por %p762, %p763
      %p765 = scmp.ne.s32.totalorder %s751, %s752
      %p766 = scmp.eq.s32.totalorder %s113, 5
      %p767 = por %p765, %p766
      %p769 = scmp.ne.s32.totalorder %s752, %s768
      %p770 = scmp.eq.s32.totalorder %s113, 0
      %p771 = por %p769, %p770
      %s772 = ssub.s32 %s115, %s122
      %p773 = scmp.eq.s32.totalorder %s772, 0
      %s775 = sadd.s32 %s774, 1
      %s776 = scalar_select %p773, %s774, %s775
      %p779 = pneg %p773
      %p780 = scmp.eq.s32.totalorder %s107, 5
      %p781 = por %p779, %p780
      %p782 = scmp.ne.s32.totalorder %s774, %s777
      %p783 = scmp.eq.s32.totalorder %s107, 0
      %p784 = por %p782, %p783
      %p785 = scmp.ne.s32.totalorder %s774, %s777
      %p786 = scmp.eq.s32.totalorder %s112, 5
      %p787 = por %p785, %p786
      %p788 = scmp.ne.s32.totalorder %s777, %s778
      %p789 = scmp.eq.s32.totalorder %s112, 0
      %p790 = por %p788, %p789
      %p791 = scmp.ne.s32.totalorder %s777, %s778
      %p792 = scmp.eq.s32.totalorder %s113, 5
      %p793 = por %p791, %p792
      %p795 = scmp.ne.s32.totalorder %s778, %s794
      %p796 = scmp.eq.s32.totalorder %s113, 0
      %p797 = por %p795, %p796
      %s798 = ssub.s32 %s115, %s122
      %p799 = scmp.eq.s32.totalorder %s798, 0
      %s801 = sadd.s32 %s800, 1
      %s802 = scalar_select %p799, %s800, %s801
      %p805 = pneg %p799
      %p806 = scmp.eq.s32.totalorder %s107, 5
      %p807 = por %p805, %p806
      %p808 = scmp.ne.s32.totalorder %s800, %s803
      %p809 = scmp.eq.s32.totalorder %s107, 0
      %p810 = por %p808, %p809
      %p811 = scmp.ne.s32.totalorder %s800, %s803
      %p812 = scmp.eq.s32.totalorder %s112, 5
      %p813 = por %p811, %p812
      %p814 = scmp.ne.s32.totalorder %s803, %s804
      %p815 = scmp.eq.s32.totalorder %s112, 0
      %p816 = por %p814, %p815
      %p817 = scmp.ne.s32.totalorder %s803, %s804
      %p818 = scmp.eq.s32.totalorder %s113, 5
      %p819 = por %p817, %p818
      %p821 = scmp.ne.s32.totalorder %s804, %s820
      %p822 = scmp.eq.s32.totalorder %s113, 0
      %p823 = por %p821, %p822
      %s825 = sadd.s32 %s824, 1
      %p828 = scmp.eq.s32.totalorder %s107, 5
      %p829 = scmp.ne.s32.totalorder %s824, %s826
      %p830 = scmp.eq.s32.totalorder %s107, 0
      %p831 = por %p829, %p830
      %p832 = scmp.ne.s32.totalorder %s824, %s826
      %p833 = scmp.eq.s32.totalorder %s112, 5
      %p834 = por %p832, %p833
      %p835 = scmp.ne.s32.totalorder %s826, %s827
      %p836 = scmp.eq.s32.totalorder %s112, 0
      %p837 = por %p835, %p836
      %p838 = scmp.ne.s32.totalorder %s826, %s827
      %p839 = scmp.eq.s32.totalorder %s113, 5
      %p840 = por %p838, %p839
      %p842 = scmp.ne.s32.totalorder %s827, %s841
      %p843 = scmp.eq.s32.totalorder %s113, 0
      %p844 = por %p842, %p843
      %s846 = sadd.s32 %s845, 1
      %p849 = scmp.eq.s32.totalorder %s107, 5
      %p850 = scmp.ne.s32.totalorder %s845, %s847
      %p851 = scmp.eq.s32.totalorder %s107, 0
      %p852 = por %p850, %p851
      %p853 = scmp.ne.s32.totalorder %s845, %s847
      %p854 = scmp.eq.s32.totalorder %s112, 5
      %p855 = por %p853, %p854
      %p856 = scmp.ne.s32.totalorder %s847, %s848
      %p857 = scmp.eq.s32.totalorder %s112, 0
      %p858 = por %p856, %p857
      %p859 = scmp.ne.s32.totalorder %s847, %s848
      %p860 = scmp.eq.s32.totalorder %s113, 5
      %p861 = por %p859, %p860
      %p863 = scmp.ne.s32.totalorder %s848, %s862
      %p864 = scmp.eq.s32.totalorder %s113, 0
      %p865 = por %p863, %p864
      %s867 = sadd.s32 %s866, 1
      %p870 = scmp.eq.s32.totalorder %s107, 5
      %p871 = scmp.ne.s32.totalorder %s866, %s868
      %p872 = scmp.eq.s32.totalorder %s107, 0
      %p873 = por %p871, %p872
      %p874 = scmp.ne.s32.totalorder %s866, %s868
      %p875 = scmp.eq.s32.totalorder %s112, 5
      %p876 = por %p874, %p875
      %p877 = scmp.ne.s32.totalorder %s868, %s869
      %p878 = scmp.eq.s32.totalorder %s112, 0
      %p879 = por %p877, %p878
      %p880 = scmp.ne.s32.totalorder %s868, %s869
      %p881 = scmp.eq.s32.totalorder %s113, 5
      %p882 = por %p880, %p881
      %p884 = scmp.ne.s32.totalorder %s869, %s883
      %p885 = scmp.eq.s32.totalorder %s113, 0
      %p886 = por %p884, %p885
      %s888 = sadd.s32 %s887, 1
      %p891 = scmp.eq.s32.totalorder %s107, 5
      %p892 = scmp.ne.s32.totalorder %s887, %s889
      %p893 = scmp.eq.s32.totalorder %s107, 0
      %p894 = por %p892, %p893
      %p895 = scmp.ne.s32.totalorder %s887, %s889
      %p896 = scmp.eq.s32.totalorder %s112, 5
      %p897 = por %p895, %p896
      %p898 = scmp.ne.s32.totalorder %s889, %s890
      %p899 = scmp.eq.s32.totalorder %s112, 0
      %p900 = por %p898, %p899
      %p901 = scmp.ne.s32.totalorder %s889, %s890
      %p902 = scmp.eq.s32.totalorder %s113, 5
      %p903 = por %p901, %p902
      %p905 = scmp.ne.s32.totalorder %s890, %s904
      %p906 = scmp.eq.s32.totalorder %s113, 0
      %p907 = por %p905, %p906
      %s909 = sadd.s32 %s908, 1
      %p912 = scmp.eq.s32.totalorder %s107, 5
      %p913 = scmp.ne.s32.totalorder %s908, %s910
      %p914 = scmp.eq.s32.totalorder %s107, 0
      %p915 = por %p913, %p914
      %p916 = scmp.ne.s32.totalorder %s908, %s910
      %p917 = scmp.eq.s32.totalorder %s112, 5
      %p918 = por %p916, %p917
      %p919 = scmp.ne.s32.totalorder %s910, %s911
      %p920 = scmp.eq.s32.totalorder %s112, 0
      %p921 = por %p919, %p920
      %p922 = scmp.ne.s32.totalorder %s910, %s911
      %p923 = scmp.eq.s32.totalorder %s113, 5
      %p924 = por %p922, %p923
      %p926 = scmp.ne.s32.totalorder %s911, %s925
      %p927 = scmp.eq.s32.totalorder %s113, 0
      %p928 = por %p926, %p927
      %s930 = sadd.s32 %s929, 1
      %p933 = scmp.eq.s32.totalorder %s107, 5
      %p934 = scmp.ne.s32.totalorder %s929, %s931
      %p935 = scmp.eq.s32.totalorder %s107, 0
      %p936 = por %p934, %p935
      %p937 = scmp.ne.s32.totalorder %s929, %s931
      %p938 = scmp.eq.s32.totalorder %s112, 5
      %p939 = por %p937, %p938
      %p940 = scmp.ne.s32.totalorder %s931, %s932
      %p941 = scmp.eq.s32.totalorder %s112, 0
      %p942 = por %p940, %p941
      %p943 = scmp.ne.s32.totalorder %s931, %s932
      %p944 = scmp.eq.s32.totalorder %s113, 5
      %p945 = por %p943, %p944
      %p947 = scmp.ne.s32.totalorder %s932, %s946
      %p948 = scmp.eq.s32.totalorder %s113, 0
      %p949 = por %p947, %p948
      %s950 = ssub.s32 %s114, %s126
      %p951 = scmp.eq.s32.totalorder %s950, 0
      %s953 = sadd.s32 %s952, 1
      %s954 = scalar_select %p951, %s952, %s953
      %p957 = pneg %p951
      %p958 = scmp.eq.s32.totalorder %s107, 5
      %p959 = por %p957, %p958
      %p960 = scmp.ne.s32.totalorder %s952, %s955
      %p961 = scmp.eq.s32.totalorder %s107, 0
      %p962 = por %p960, %p961
      %p963 = scmp.ne.s32.totalorder %s952, %s955
      %p964 = scmp.eq.s32.totalorder %s112, 5
      %p965 = por %p963, %p964
      %p966 = scmp.ne.s32.totalorder %s955, %s956
      %p967 = scmp.eq.s32.totalorder %s112, 0
      %p968 = por %p966, %p967
      %p969 = scmp.ne.s32.totalorder %s955, %s956
      %p970 = scmp.eq.s32.totalorder %s113, 5
      %p971 = por %p969, %p970
      %p973 = scmp.ne.s32.totalorder %s956, %s972
      %p974 = scmp.eq.s32.totalorder %s113, 0
      %p975 = por %p973, %p974
      %p976 = scmp.le.s32.totalorder 1, %s107
      %p977 = scmp.lt.s32.totalorder %s107, 7
      %p978 = pnand %p976, %p977
      %p979 = pneg %p978
      // Predicated region
      $region9: #{tpu_custom_call.1} parent=5 // pred_check
        _
      $region10: #{tpu_custom_call.1} parent=5 // pred_check_branch
        %981 = sbr.rel (%p978) target = $region12
      $region11: #{tpu_custom_call.1} parent=5 // pred_region
        %s982 = ssub.s32 %s107, 1
        // Predicated region
        $region13: #{tpu_custom_call.1} parent=11 // pred_check
          %p983 = pneg %p244
        $region14: #{tpu_custom_call.1} parent=11 // pred_check_branch
          %985 = sbr.rel (%p983) target = $region16
        $region15: #{tpu_custom_call.1} parent=11 // pred_region
          %987 = vsyncadd [#allocation7], 0
          %s989 = sshll.u32 %s9, 4
          %s990 = int_to_ptr.hbm [resolvable:$true] %s989
          %s991 = sshll.u32 [#allocation8], 4
          %s992 = int_to_ptr.vmem [resolvable:$true] %s991
          %994 = dma.hbm_to_vmem [thread:$0]  %s990, 64, %s992, [#allocation7]
        $region16: #{tpu_custom_call.1} parent=11 // pred_fallthru
          _
        // Predicated region
        $region17: #{tpu_custom_call.1} parent=11 // pred_check
          %p995 = pneg %p837
        $region18: #{tpu_custom_call.1} parent=11 // pred_check_branch
          %997 = sbr.rel (%p995) target = $region20
        $region19: #{tpu_custom_call.1} parent=11 // pred_region
          _
        $region20: #{tpu_custom_call.1} parent=11 // pred_fallthru
          _
        // Predicated region
        $region21: #{tpu_custom_call.1} parent=11 // pred_check
          %p998 = pneg %p858
        $region22: #{tpu_custom_call.1} parent=11 // pred_check_branch
          %1000 = sbr.rel (%p998) target = $region24
        $region23: #{tpu_custom_call.1} parent=11 // pred_region
          _
        $region24: #{tpu_custom_call.1} parent=11 // pred_fallthru
          _
        // Predicated region
        $region25: #{tpu_custom_call.1} parent=11 // pred_check
          %p1001 = pneg %p879
        $region26: #{tpu_custom_call.1} parent=11 // pred_check_branch
          %1003 = sbr.rel (%p1001) target = $region28
        $region27: #{tpu_custom_call.1} parent=11 // pred_region
          %1005 = vsyncadd [#allocation31], 0
          %s1006 = sshll.u32 %s59, 4
          %s1007 = int_to_ptr.hbm [resolvable:$true] %s1006
          %s1008 = sshll.u32 [#allocation32], 4
          %s1009 = int_to_ptr.vmem [resolvable:$true] %s1008
          %1014 = dma.hbm_to_vmem [thread:$0]  %s1007, 1024, %s1009, [#allocation31], 64, 64, 4
        $region28: #{tpu_custom_call.1} parent=11 // pred_fallthru
          _
        // Predicated region
        $region29: #{tpu_custom_call.1} parent=11 // pred_check
          %p1015 = pneg %p900
        $region30: #{tpu_custom_call.1} parent=11 // pred_check_branch
          %1017 = sbr.rel (%p1015) target = $region32
        $region31: #{tpu_custom_call.1} parent=11 // pred_region
          _
        $region32: #{tpu_custom_call.1} parent=11 // pred_fallthru
          _
        // Predicated region
        $region33: #{tpu_custom_call.1} parent=11 // pred_check
          %p1018 = pneg %p921
        $region34: #{tpu_custom_call.1} parent=11 // pred_check_branch
          %1020 = sbr.rel (%p1018) target = $region36
        $region35: #{tpu_custom_call.1} parent=11 // pred_region
          %1022 = vsyncadd [#allocation34], 0
          %s1023 = sshll.u32 %s63, 4
          %s1024 = int_to_ptr.hbm [resolvable:$true] %s1023
          %s1025 = sshll.u32 [#allocation33], 4
          %s1026 = int_to_ptr.vmem [resolvable:$true] %s1025
          %1031 = dma.hbm_to_vmem [thread:$0]  %s1024, 1024, %s1026, [#allocation34], 64, 64, 4
        $region36: #{tpu_custom_call.1} parent=11 // pred_fallthru
          _
        // Predicated region
        $region37: #{tpu_custom_call.1} parent=11 // pred_check
          %p1032 = pneg %p942
        $region38: #{tpu_custom_call.1} parent=11 // pred_check_branch
          %1034 = sbr.rel (%p1032) target = $region40
        $region39: #{tpu_custom_call.1} parent=11 // pred_region
          _
        $region40: #{tpu_custom_call.1} parent=11 // pred_fallthru
          _
      $region12: #{tpu_custom_call.1} parent=5 // pred_fallthru
        _
      %p1035 = scmp.lt.s32.totalorder %s107, 6
      // Predicated region
      $region41: #{tpu_custom_call.1} parent=5 // pred_check
        %p1036 = pneg %p1035
      $region42: #{tpu_custom_call.1} parent=5 // pred_check_branch
        %1038 = sbr.rel (%p1036) target = $region44
      $region43: #{tpu_custom_call.1} parent=5 // pred_region
        // Predicated region
        $region45: #{tpu_custom_call.1} parent=43 // pred_check
          %p1039 = pneg %p139
        $region46: #{tpu_custom_call.1} parent=43 // pred_check_branch
          %1041 = sbr.rel (%p1039) target = $region48
        $region47: #{tpu_custom_call.1} parent=43 // pred_region
          %p1042 = scmp.lt.s32.totalorder %s114, 1
          %s1043 = scalar_select %p1042, %s114, 1
          %s1044 = smul.addr %s1043, 8
          %s1045 = scalar_lea.vmem %s1, %s1044
        $region48: #{tpu_custom_call.1} parent=43 // pred_fallthru
          _
        // Predicated region
        $region49: #{tpu_custom_call.1} parent=43 // pred_check
          %p1046 = pneg %p165
        $region50: #{tpu_custom_call.1} parent=43 // pred_check_branch
          %1048 = sbr.rel (%p1046) target = $region52
        $region51: #{tpu_custom_call.1} parent=43 // pred_region
          %s1049 = sand.u32 %s155, 1
          %s1050 = scalar_lea.sflag [#allocation4], %s1049
          %s1051 = sand.u32 %s155, 1
          %s1052 = smul.addr %s1051, 4
          %s1053 = scalar_lea.vmem [#allocation3], %s1052
          %1055 = vsyncadd %s1050, 0
          %s1056 = smul.addr %s114, 4
          %s1057 = scalar_lea.hbm %s3, %s1056
          %s1059 = sshll.u32 %s1057, 4
          %s1060 = int_to_ptr.hbm [resolvable:$true] %s1059
          %s1061 = sshll.u32 %s1053, 4
          %s1062 = int_to_ptr.vmem [resolvable:$true] %s1061
          %1064 = dma.hbm_to_vmem [thread:$0]  %s1060, 64, %s1062, %s1050
        $region52: #{tpu_custom_call.1} parent=43 // pred_fallthru
          _
        // Predicated region
        $region53: #{tpu_custom_call.1} parent=43 // pred_check
          %p1065 = pneg %p191
        $region54: #{tpu_custom_call.1} parent=43 // pred_check_branch
          %1067 = sbr.rel (%p1065) target = $region56
        $region55: #{tpu_custom_call.1} parent=43 // pred_region
          %p1068 = scmp.lt.s32.totalorder %s114, 1
          %s1069 = scalar_select %p1068, %s114, 1
          %s1070 = smul.addr %s1069, 8
          %s1071 = scalar_lea.vmem %s5, %s1070
        $region56: #{tpu_custom_call.1} parent=43 // pred_fallthru
          _
        // Predicated region
        $region57: #{tpu_custom_call.1} parent=43 // pred_check
          %p1072 = pneg %p217
        $region58: #{tpu_custom_call.1} parent=43 // pred_check_branch
          %1074 = sbr.rel (%p1072) target = $region60
        $region59: #{tpu_custom_call.1} parent=43 // pred_region
          %s1075 = sand.u32 %s107, 1
          %s1076 = scalar_lea.sflag [#allocation7], %s1075
          %s1077 = sand.u32 %s207, 1
          %s1078 = scalar_lea.vmem [#allocation6], %s1077
          %1080 = vsyncadd %s1076, 0
          %s1081 = scalar_lea.hbm %s7, %s114
          %s1083 = sshll.u32 %s1081, 4
          %s1084 = int_to_ptr.hbm [resolvable:$true] %s1083
          %s1085 = sshll.u32 %s1078, 4
          %s1086 = int_to_ptr.vmem [resolvable:$true] %s1085
          %1088 = dma.hbm_to_vmem [thread:$0]  %s1084, 16, %s1086, %s1076
        $region60: #{tpu_custom_call.1} parent=43 // pred_fallthru
          _
        // Predicated region
        $region61: #{tpu_custom_call.1} parent=43 // pred_check
          %p1089 = pneg %p264
        $region62: #{tpu_custom_call.1} parent=43 // pred_check_branch
          %1091 = sbr.rel (%p1089) target = $region64
        $region63: #{tpu_custom_call.1} parent=43 // pred_region
          %s1092 = sand.u32 %s107, 1
          %s1093 = scalar_lea.sflag [#allocation10], %s1092
          %s1094 = sand.u32 %s254, 1
          %s1095 = smul.addr %s1094, 64
          %s1096 = scalar_lea.vmem [#allocation9], %s1095
          %1098 = vsyncadd %s1093, 0
          %s1099 = smul.addr %s115, 16
          %s1100 = smul.addr %s1099, 4
          %s1101 = scalar_lea.hbm %s11, %s1100
          %s1102 = sshll.u32 %s1101, 4
          %s1103 = int_to_ptr.hbm [resolvable:$true] %s1102
          %s1104 = sshll.u32 %s1096, 4
          %s1105 = int_to_ptr.vmem [resolvable:$true] %s1104
          %1110 = dma.hbm_to_vmem [thread:$0]  %s1103, 1024, %s1105, %s1093, 64, 64, 4
        $region64: #{tpu_custom_call.1} parent=43 // pred_fallthru
          _
        // Predicated region
        $region65: #{tpu_custom_call.1} parent=43 // pred_check
          %p1111 = pneg %p290
        $region66: #{tpu_custom_call.1} parent=43 // pred_check_branch
          %1113 = sbr.rel (%p1111) target = $region68
        $region67: #{tpu_custom_call.1} parent=43 // pred_region
          %s1114 = sand.u32 %s107, 1
          %s1115 = scalar_lea.sflag [#allocation10], %s1114
          %s1116 = sand.u32 %s280, 1
          %s1117 = scalar_lea.vmem [#allocation11], %s1116
          %1119 = vsyncadd %s1115, 0
          %s1120 = scalar_lea.hbm %s13, %s115
          %s1122 = sshll.u32 %s1120, 4
          %s1123 = int_to_ptr.hbm [resolvable:$true] %s1122
          %s1124 = sshll.u32 %s1117, 4
          %s1125 = int_to_ptr.vmem [resolvable:$true] %s1124
          %1127 = dma.hbm_to_vmem [thread:$0]  %s1123, 16, %s1125, %s1115
        $region68: #{tpu_custom_call.1} parent=43 // pred_fallthru
          _
        // Predicated region
        $region69: #{tpu_custom_call.1} parent=43 // pred_check
          %p1128 = pneg %p316
        $region70: #{tpu_custom_call.1} parent=43 // pred_check_branch
          %1130 = sbr.rel (%p1128) target = $region72
        $region71: #{tpu_custom_call.1} parent=43 // pred_region
          %s1131 = sand.u32 %s107, 1
          %s1132 = scalar_lea.sflag [#allocation13], %s1131
          %s1133 = sand.u32 %s306, 1
          %s1134 = smul.addr %s1133, 64
          %s1135 = scalar_lea.vmem [#allocation12], %s1134
          %1137 = vsyncadd %s1132, 0
          %s1138 = smul.addr %s115, 16
          %s1139 = smul.addr %s1138, 4
          %s1140 = scalar_lea.hbm %s15, %s1139
          %s1141 = sshll.u32 %s1140, 4
          %s1142 = int_to_ptr.hbm [resolvable:$true] %s1141
          %s1143 = sshll.u32 %s1135, 4
          %s1144 = int_to_ptr.vmem [resolvable:$true] %s1143
          %1149 = dma.hbm_to_vmem [thread:$0]  %s1142, 1024, %s1144, %s1132, 64, 64, 4
        $region72: #{tpu_custom_call.1} parent=43 // pred_fallthru
          _
        // Predicated region
        $region73: #{tpu_custom_call.1} parent=43 // pred_check
          %p1150 = pneg %p342
        $region74: #{tpu_custom_call.1} parent=43 // pred_check_branch
          %1152 = sbr.rel (%p1150) target = $region76
        $region75: #{tpu_custom_call.1} parent=43 // pred_region
          %p1153 = scmp.lt.s32.totalorder %s115, 2
          %s1154 = scalar_select %p1153, %s115, 2
          %s1155 = scalar_lea.vmem %s17, %s1154
        $region76: #{tpu_custom_call.1} parent=43 // pred_fallthru
          _
        // Predicated region
        $region77: #{tpu_custom_call.1} parent=43 // pred_check
          %p1156 = pneg %p368
        $region78: #{tpu_custom_call.1} parent=43 // pred_check_branch
          %1158 = sbr.rel (%p1156) target = $region80
        $region79: #{tpu_custom_call.1} parent=43 // pred_region
          %s1159 = sand.u32 %s107, 1
          %s1160 = scalar_lea.sflag [#allocation13], %s1159
          %s1161 = sand.u32 %s358, 1
          %s1162 = scalar_lea.vmem [#allocation14], %s1161
          %1164 = vsyncadd %s1160, 0
          %s1165 = scalar_lea.hbm %s19, %s115
          %s1167 = sshll.u32 %s1165, 4
          %s1168 = int_to_ptr.hbm [resolvable:$true] %s1167
          %s1169 = sshll.u32 %s1162, 4
          %s1170 = int_to_ptr.vmem [resolvable:$true] %s1169
          %1172 = dma.hbm_to_vmem [thread:$0]  %s1168, 16, %s1170, %s1160
        $region80: #{tpu_custom_call.1} parent=43 // pred_fallthru
          _
        // Predicated region
        $region81: #{tpu_custom_call.1} parent=43 // pred_check
          %p1173 = pneg %p394
        $region82: #{tpu_custom_call.1} parent=43 // pred_check_branch
          %1175 = sbr.rel (%p1173) target = $region84
        $region83: #{tpu_custom_call.1} parent=43 // pred_region
          %s1176 = sand.u32 %s107, 1
          %s1177 = scalar_lea.sflag [#allocation16], %s1176
          %s1178 = sand.u32 %s384, 1
          %s1179 = scalar_lea.vmem [#allocation15], %s1178
          %1181 = vsyncadd %s1177, 0
          %s1182 = scalar_lea.hbm %s21, %s115
          %s1184 = sshll.u32 %s1182, 4
          %s1185 = int_to_ptr.hbm [resolvable:$true] %s1184
          %s1186 = sshll.u32 %s1179, 4
          %s1187 = int_to_ptr.vmem [resolvable:$true] %s1186
          %1189 = dma.hbm_to_vmem [thread:$0]  %s1185, 16, %s1187, %s1177
        $region84: #{tpu_custom_call.1} parent=43 // pred_fallthru
          _
        // Predicated region
        $region85: #{tpu_custom_call.1} parent=43 // pred_check
          %p1190 = pneg %p420
        $region86: #{tpu_custom_call.1} parent=43 // pred_check_branch
          %1192 = sbr.rel (%p1190) target = $region88
        $region87: #{tpu_custom_call.1} parent=43 // pred_region
          %s1193 = sand.u32 %s107, 1
          %s1194 = scalar_lea.sflag [#allocation16], %s1193
          %s1195 = sand.u32 %s410, 1
          %s1196 = smul.addr %s1195, 64
          %s1197 = scalar_lea.vmem [#allocation17], %s1196
          %1199 = vsyncadd %s1194, 0
          %s1200 = smul.addr %s115, 16
          %s1201 = smul.addr %s1200, 4
          %s1202 = scalar_lea.hbm %s23, %s1201
          %s1203 = sshll.u32 %s1202, 4
          %s1204 = int_to_ptr.hbm [resolvable:$true] %s1203
          %s1205 = sshll.u32 %s1197, 4
          %s1206 = int_to_ptr.vmem [resolvable:$true] %s1205
          %1211 = dma.hbm_to_vmem [thread:$0]  %s1204, 1024, %s1206, %s1194, 64, 64, 4
        $region88: #{tpu_custom_call.1} parent=43 // pred_fallthru
          _
        // Predicated region
        $region89: #{tpu_custom_call.1} parent=43 // pred_check
          %p1212 = pneg %p446
        $region90: #{tpu_custom_call.1} parent=43 // pred_check_branch
          %1214 = sbr.rel (%p1212) target = $region92
        $region91: #{tpu_custom_call.1} parent=43 // pred_region
          %p1215 = scmp.lt.s32.totalorder %s115, 2
          %s1216 = scalar_select %p1215, %s115, 2
          %s1217 = scalar_lea.vmem %s25, %s1216
        $region92: #{tpu_custom_call.1} parent=43 // pred_fallthru
          _
        // Predicated region
        $region93: #{tpu_custom_call.1} parent=43 // pred_check
          %p1218 = pneg %p472
        $region94: #{tpu_custom_call.1} parent=43 // pred_check_branch
          %1220 = sbr.rel (%p1218) target = $region96
        $region95: #{tpu_custom_call.1} parent=43 // pred_region
          %s1221 = sand.u32 %s107, 1
          %s1222 = scalar_lea.sflag [#allocation19], %s1221
          %s1223 = sand.u32 %s462, 1
          %s1224 = smul.addr %s1223, 64
          %s1225 = scalar_lea.vmem [#allocation18], %s1224
          %1227 = vsyncadd %s1222, 0
          %s1228 = smul.addr %s115, 16
          %s1229 = smul.addr %s1228, 4
          %s1230 = scalar_lea.hbm %s27, %s1229
          %s1231 = sshll.u32 %s1230, 4
          %s1232 = int_to_ptr.hbm [resolvable:$true] %s1231
          %s1233 = sshll.u32 %s1225, 4
          %s1234 = int_to_ptr.vmem [resolvable:$true] %s1233
          %1239 = dma.hbm_to_vmem [thread:$0]  %s1232, 1024, %s1234, %s1222, 64, 64, 4
        $region96: #{tpu_custom_call.1} parent=43 // pred_fallthru
          _
        // Predicated region
        $region97: #{tpu_custom_call.1} parent=43 // pred_check
          %p1240 = pneg %p498
        $region98: #{tpu_custom_call.1} parent=43 // pred_check_branch
          %1242 = sbr.rel (%p1240) target = $region100
        $region99: #{tpu_custom_call.1} parent=43 // pred_region
          %p1243 = scmp.lt.s32.totalorder %s115, 2
          %s1244 = scalar_select %p1243, %s115, 2
          %s1245 = scalar_lea.vmem %s29, %s1244
        $region100: #{tpu_custom_call.1} parent=43 // pred_fallthru
          _
        // Predicated region
        $region101: #{tpu_custom_call.1} parent=43 // pred_check
          %p1246 = pneg %p524
        $region102: #{tpu_custom_call.1} parent=43 // pred_check_branch
          %1248 = sbr.rel (%p1246) target = $region104
        $region103: #{tpu_custom_call.1} parent=43 // pred_region
          %s1249 = sand.u32 %s107, 1
          %s1250 = scalar_lea.sflag [#allocation19], %s1249
          %s1251 = sand.u32 %s514, 1
          %s1252 = smul.addr %s1251, 64
          %s1253 = scalar_lea.vmem [#allocation20], %s1252
          %1255 = vsyncadd %s1250, 0
          %s1256 = smul.addr %s115, 16
          %s1257 = smul.addr %s1256, 4
          %s1258 = scalar_lea.hbm %s31, %s1257
          %s1259 = sshll.u32 %s1258, 4
          %s1260 = int_to_ptr.hbm [resolvable:$true] %s1259
          %s1261 = sshll.u32 %s1253, 4
          %s1262 = int_to_ptr.vmem [resolvable:$true] %s1261
          %1267 = dma.hbm_to_vmem [thread:$0]  %s1260, 1024, %s1262, %s1250, 64, 64, 4
        $region104: #{tpu_custom_call.1} parent=43 // pred_fallthru
          _
        // Predicated region
        $region105: #{tpu_custom_call.1} parent=43 // pred_check
          %p1268 = pneg %p550
        $region106: #{tpu_custom_call.1} parent=43 // pred_check_branch
          %1270 = sbr.rel (%p1268) target = $region108
        $region107: #{tpu_custom_call.1} parent=43 // pred_region
          %s1271 = sand.u32 %s107, 1
          %s1272 = scalar_lea.sflag [#allocation22], %s1271
          %s1273 = sand.u32 %s540, 1
          %s1274 = scalar_lea.vmem [#allocation21], %s1273
          %1276 = vsyncadd %s1272, 0
          %s1277 = scalar_lea.hbm %s33, %s115
          %s1279 = sshll.u32 %s1277, 4
          %s1280 = int_to_ptr.hbm [resolvable:$true] %s1279
          %s1281 = sshll.u32 %s1274, 4
          %s1282 = int_to_ptr.vmem [resolvable:$true] %s1281
          %1284 = dma.hbm_to_vmem [thread:$0]  %s1280, 16, %s1282, %s1272
        $region108: #{tpu_custom_call.1} parent=43 // pred_fallthru
          _
        // Predicated region
        $region109: #{tpu_custom_call.1} parent=43 // pred_check
          %p1285 = pneg %p576
        $region110: #{tpu_custom_call.1} parent=43 // pred_check_branch
          %1287 = sbr.rel (%p1285) target = $region112
        $region111: #{tpu_custom_call.1} parent=43 // pred_region
          %s1288 = sand.u32 %s107, 1
          %s1289 = scalar_lea.sflag [#allocation22], %s1288
          %s1290 = sand.u32 %s566, 1
          %s1291 = smul.addr %s1290, 64
          %s1292 = scalar_lea.vmem [#allocation23], %s1291
          %1294 = vsyncadd %s1289, 0
          %s1295 = smul.addr %s115, 16
          %s1296 = smul.addr %s1295, 4
          %s1297 = scalar_lea.hbm %s35, %s1296
          %s1298 = sshll.u32 %s1297, 4
          %s1299 = int_to_ptr.hbm [resolvable:$true] %s1298
          %s1300 = sshll.u32 %s1292, 4
          %s1301 = int_to_ptr.vmem [resolvable:$true] %s1300
          %1306 = dma.hbm_to_vmem [thread:$0]  %s1299, 1024, %s1301, %s1289, 64, 64, 4
        $region112: #{tpu_custom_call.1} parent=43 // pred_fallthru
          _
        // Predicated region
        $region113: #{tpu_custom_call.1} parent=43 // pred_check
          %p1307 = pneg %p602
        $region114: #{tpu_custom_call.1} parent=43 // pred_check_branch
          %1309 = sbr.rel (%p1307) target = $region116
        $region115: #{tpu_custom_call.1} parent=43 // pred_region
          %p1310 = scmp.lt.s32.totalorder %s115, 2
          %s1311 = scalar_select %p1310, %s115, 2
          %s1312 = scalar_lea.vmem %s37, %s1311
        $region116: #{tpu_custom_call.1} parent=43 // pred_fallthru
          _
        // Predicated region
        $region117: #{tpu_custom_call.1} parent=43 // pred_check
          %p1313 = pneg %p628
        $region118: #{tpu_custom_call.1} parent=43 // pred_check_branch
          %1315 = sbr.rel (%p1313) target = $region120
        $region119: #{tpu_custom_call.1} parent=43 // pred_region
          %s1316 = sand.u32 %s107, 1
          %s1317 = scalar_lea.sflag [#allocation25], %s1316
          %s1318 = sand.u32 %s618, 1
          %s1319 = scalar_lea.vmem [#allocation24], %s1318
          %1321 = vsyncadd %s1317, 0
          %s1322 = scalar_lea.hbm %s39, %s115
          %s1324 = sshll.u32 %s1322, 4
          %s1325 = int_to_ptr.hbm [resolvable:$true] %s1324
          %s1326 = sshll.u32 %s1319, 4
          %s1327 = int_to_ptr.vmem [resolvable:$true] %s1326
          %1329 = dma.hbm_to_vmem [thread:$0]  %s1325, 16, %s1327, %s1317
        $region120: #{tpu_custom_call.1} parent=43 // pred_fallthru
          _
        // Predicated region
        $region121: #{tpu_custom_call.1} parent=43 // pred_check
          %p1330 = pneg %p654
        $region122: #{tpu_custom_call.1} parent=43 // pred_check_branch
          %1332 = sbr.rel (%p1330) target = $region124
        $region123: #{tpu_custom_call.1} parent=43 // pred_region
          %p1333 = scmp.lt.s32.totalorder %s115, 2
          %s1334 = scalar_select %p1333, %s115, 2
          %s1335 = scalar_lea.vmem %s41, %s1334
        $region124: #{tpu_custom_call.1} parent=43 // pred_fallthru
          _
        // Predicated region
        $region125: #{tpu_custom_call.1} parent=43 // pred_check
          %p1336 = pneg %p680
        $region126: #{tpu_custom_call.1} parent=43 // pred_check_branch
          %1338 = sbr.rel (%p1336) target = $region128
        $region127: #{tpu_custom_call.1} parent=43 // pred_region
          %s1339 = sand.u32 %s107, 1
          %s1340 = scalar_lea.sflag [#allocation25], %s1339
          %s1341 = sand.u32 %s670, 1
          %s1342 = smul.addr %s1341, 128
          %s1343 = scalar_lea.vmem [#allocation26], %s1342
          %1345 = vsyncadd %s1340, 0
          %s1346 = smul.addr %s115, 32
          %s1347 = smul.addr %s1346, 4
          %s1348 = scalar_lea.hbm %s43, %s1347
          %s1349 = sshll.u32 %s1348, 4
          %s1350 = int_to_ptr.hbm [resolvable:$true] %s1349
          %s1351 = sshll.u32 %s1343, 4
          %s1352 = int_to_ptr.vmem [resolvable:$true] %s1351
          %1357 = dma.hbm_to_vmem [thread:$0]  %s1350, 2048, %s1352, %s1340, 128, 128, 8
        $region128: #{tpu_custom_call.1} parent=43 // pred_fallthru
          _
        // Predicated region
        $region129: #{tpu_custom_call.1} parent=43 // pred_check
          %p1358 = pneg %p706
        $region130: #{tpu_custom_call.1} parent=43 // pred_check_branch
          %1360 = sbr.rel (%p1358) target = $region132
        $region131: #{tpu_custom_call.1} parent=43 // pred_region
          %p1361 = scmp.lt.s32.totalorder %s115, 2
          %s1362 = scalar_select %p1361, %s115, 2
          %s1363 = smul.addr %s1362, 2
          %s1364 = scalar_lea.vmem %s45, %s1363
        $region132: #{tpu_custom_call.1} parent=43 // pred_fallthru
          _
        // Predicated region
        $region133: #{tpu_custom_call.1} parent=43 // pred_check
          %p1365 = pneg %p732
        $region134: #{tpu_custom_call.1} parent=43 // pred_check_branch
          %1367 = sbr.rel (%p1365) target = $region136
        $region135: #{tpu_custom_call.1} parent=43 // pred_region
          %s1368 = sand.u32 %s107, 1
          %s1369 = scalar_lea.sflag [#allocation28], %s1368
          %s1370 = sand.u32 %s722, 1
          %s1371 = smul.addr %s1370, 128
          %s1372 = scalar_lea.vmem [#allocation27], %s1371
          %1374 = vsyncadd %s1369, 0
          %s1375 = smul.addr %s115, 32
          %s1376 = smul.addr %s1375, 4
          %s1377 = scalar_lea.hbm %s47, %s1376
          %s1378 = sshll.u32 %s1377, 4
          %s1379 = int_to_ptr.hbm [resolvable:$true] %s1378
          %s1380 = sshll.u32 %s1372, 4
          %s1381 = int_to_ptr.vmem [resolvable:$true] %s1380
          %1386 = dma.hbm_to_vmem [thread:$0]  %s1379, 2048, %s1381, %s1369, 64, 64, 4
        $region136: #{tpu_custom_call.1} parent=43 // pred_fallthru
          _
        // Predicated region
        $region137: #{tpu_custom_call.1} parent=43 // pred_check
          %p1387 = pneg %p758
        $region138: #{tpu_custom_call.1} parent=43 // pred_check_branch
          %1389 = sbr.rel (%p1387) target = $region140
        $region139: #{tpu_custom_call.1} parent=43 // pred_region
          %p1390 = scmp.lt.s32.totalorder %s115, 2
          %s1391 = scalar_select %p1390, %s115, 2
          %s1392 = scalar_lea.vmem %s49, %s1391
        $region140: #{tpu_custom_call.1} parent=43 // pred_fallthru
          _
        // Predicated region
        $region141: #{tpu_custom_call.1} parent=43 // pred_check
          %p1393 = pneg %p784
        $region142: #{tpu_custom_call.1} parent=43 // pred_check_branch
          %1395 = sbr.rel (%p1393) target = $region144
        $region143: #{tpu_custom_call.1} parent=43 // pred_region
          %s1396 = sand.u32 %s107, 1
          %s1397 = scalar_lea.sflag [#allocation28], %s1396
          %s1398 = sand.u32 %s774, 1
          %s1399 = scalar_lea.vmem [#allocation29], %s1398
          %1401 = vsyncadd %s1397, 0
          %s1402 = scalar_lea.hbm %s51, %s115
          %s1404 = sshll.u32 %s1402, 4
          %s1405 = int_to_ptr.hbm [resolvable:$true] %s1404
          %s1406 = sshll.u32 %s1399, 4
          %s1407 = int_to_ptr.vmem [resolvable:$true] %s1406
          %1409 = dma.hbm_to_vmem [thread:$0]  %s1405, 16, %s1407, %s1397
        $region144: #{tpu_custom_call.1} parent=43 // pred_fallthru
          _
        // Predicated region
        $region145: #{tpu_custom_call.1} parent=43 // pred_check
          %p1410 = pneg %p810
        $region146: #{tpu_custom_call.1} parent=43 // pred_check_branch
          %1412 = sbr.rel (%p1410) target = $region148
        $region147: #{tpu_custom_call.1} parent=43 // pred_region
          %s1413 = sand.u32 %s107, 1
          %s1414 = scalar_lea.sflag [#allocation31], %s1413
          %s1415 = sand.u32 %s800, 1
          %s1416 = scalar_lea.vmem [#allocation30], %s1415
          %1418 = vsyncadd %s1414, 0
          %s1419 = scalar_lea.hbm %s53, %s115
          %s1421 = sshll.u32 %s1419, 4
          %s1422 = int_to_ptr.hbm [resolvable:$true] %s1421
          %s1423 = sshll.u32 %s1416, 4
          %s1424 = int_to_ptr.vmem [resolvable:$true] %s1423
          %1426 = dma.hbm_to_vmem [thread:$0]  %s1422, 16, %s1424, %s1414
        $region148: #{tpu_custom_call.1} parent=43 // pred_fallthru
          _
      $region44: #{tpu_custom_call.1} parent=5 // pred_fallthru
        _
      %p1427 = scmp.le.s32.totalorder 1, %s107
      %p1428 = scmp.lt.s32.totalorder %s107, 7
      %p1429 = pnand %p1427, %p1428
      %p1430 = pneg %p1429
      // Predicated region
      $region149: #{tpu_custom_call.1} parent=5 // pred_check
        _
      $region150: #{tpu_custom_call.1} parent=5 // pred_check_branch
        %1432 = sbr.rel (%p1429) target = $region152
      $region151: #{tpu_custom_call.1} parent=5 // pred_region
        %s1433 = ssub.s32 %s107, 1
        %s1434 = sand.u32 %s158, 1
        %s1435 = scalar_lea.sflag [#allocation4], %s1434
        %s1436 = sand.u32 %s158, 1
        %s1437 = smul.addr %s1436, 4
        %s1438 = scalar_lea.vmem [#allocation3], %s1437
        // Predicated region
        $region153: #{tpu_custom_call.1} parent=151 // pred_check
          %p1439 = pneg %p171
        $region154: #{tpu_custom_call.1} parent=151 // pred_check_branch
          %1441 = sbr.rel (%p1439) target = $region156
        $region155: #{tpu_custom_call.1} parent=151 // pred_region
          %1443 = dma.done %s1435, 64
        $region156: #{tpu_custom_call.1} parent=151 // pred_fallthru
          _
        %s1444 = sand.u32 %s112, 1
        %s1445 = scalar_lea.sflag [#allocation7], %s1444
        %s1446 = sand.u32 %s210, 1
        %s1447 = scalar_lea.vmem [#allocation6], %s1446
        // Predicated region
        $region157: #{tpu_custom_call.1} parent=151 // pred_check
          %p1448 = pneg %p223
        $region158: #{tpu_custom_call.1} parent=151 // pred_check_branch
          %1450 = sbr.rel (%p1448) target = $region160
        $region159: #{tpu_custom_call.1} parent=151 // pred_region
          %1452 = dma.done %s1445, 16
        $region160: #{tpu_custom_call.1} parent=151 // pred_fallthru
          _
        // Predicated region
        $region161: #{tpu_custom_call.1} parent=151 // pred_check
          %p1453 = pneg %p244
        $region162: #{tpu_custom_call.1} parent=151 // pred_check_branch
          %1455 = sbr.rel (%p1453) target = $region164
        $region163: #{tpu_custom_call.1} parent=151 // pred_region
          %1457 = dma.done [#allocation7], 64
        $region164: #{tpu_custom_call.1} parent=151 // pred_fallthru
          _
        %s1458 = sand.u32 %s112, 1
        %s1459 = scalar_lea.sflag [#allocation10], %s1458
        %s1460 = sand.u32 %s257, 1
        %s1461 = smul.addr %s1460, 64
        %s1462 = scalar_lea.vmem [#allocation9], %s1461
        // Predicated region
        $region165: #{tpu_custom_call.1} parent=151 // pred_check
          %p1463 = pneg %p270
        $region166: #{tpu_custom_call.1} parent=151 // pred_check_branch
          %1465 = sbr.rel (%p1463) target = $region168
        $region167: #{tpu_custom_call.1} parent=151 // pred_region
          %1467 = dma.done %s1459, 1024
        $region168: #{tpu_custom_call.1} parent=151 // pred_fallthru
          _
        %s1468 = sand.u32 %s112, 1
        %s1469 = scalar_lea.sflag [#allocation10], %s1468
        %s1470 = sand.u32 %s283, 1
        %s1471 = scalar_lea.vmem [#allocation11], %s1470
        // Predicated region
        $region169: #{tpu_custom_call.1} parent=151 // pred_check
          %p1472 = pneg %p296
        $region170: #{tpu_custom_call.1} parent=151 // pred_check_branch
          %1474 = sbr.rel (%p1472) target = $region172
        $region171: #{tpu_custom_call.1} parent=151 // pred_region
          %1476 = dma.done %s1469, 16
        $region172: #{tpu_custom_call.1} parent=151 // pred_fallthru
          _
        %s1477 = sand.u32 %s112, 1
        %s1478 = scalar_lea.sflag [#allocation13], %s1477
        %s1479 = sand.u32 %s309, 1
        %s1480 = smul.addr %s1479, 64
        %s1481 = scalar_lea.vmem [#allocation12], %s1480
        // Predicated region
        $region173: #{tpu_custom_call.1} parent=151 // pred_check
          %p1482 = pneg %p322
        $region174: #{tpu_custom_call.1} parent=151 // pred_check_branch
          %1484 = sbr.rel (%p1482) target = $region176
        $region175: #{tpu_custom_call.1} parent=151 // pred_region
          %1486 = dma.done %s1478, 1024
        $region176: #{tpu_custom_call.1} parent=151 // pred_fallthru
          _
        %s1487 = sand.u32 %s112, 1
        %s1488 = scalar_lea.sflag [#allocation13], %s1487
        %s1489 = sand.u32 %s361, 1
        %s1490 = scalar_lea.vmem [#allocation14], %s1489
        // Predicated region
        $region177: #{tpu_custom_call.1} parent=151 // pred_check
          %p1491 = pneg %p374
        $region178: #{tpu_custom_call.1} parent=151 // pred_check_branch
          %1493 = sbr.rel (%p1491) target = $region180
        $region179: #{tpu_custom_call.1} parent=151 // pred_region
          %1495 = dma.done %s1488, 16
        $region180: #{tpu_custom_call.1} parent=151 // pred_fallthru
          _
        %s1496 = sand.u32 %s112, 1
        %s1497 = scalar_lea.sflag [#allocation16], %s1496
        %s1498 = sand.u32 %s387, 1
        %s1499 = scalar_lea.vmem [#allocation15], %s1498
        // Predicated region
        $region181: #{tpu_custom_call.1} parent=151 // pred_check
          %p1500 = pneg %p400
        $region182: #{tpu_custom_call.1} parent=151 // pred_check_branch
          %1502 = sbr.rel (%p1500) target = $region184
        $region183: #{tpu_custom_call.1} parent=151 // pred_region
          %1504 = dma.done %s1497, 16
        $region184: #{tpu_custom_call.1} parent=151 // pred_fallthru
          _
        %s1505 = sand.u32 %s112, 1
        %s1506 = scalar_lea.sflag [#allocation16], %s1505
        %s1507 = sand.u32 %s413, 1
        %s1508 = smul.addr %s1507, 64
        %s1509 = scalar_lea.vmem [#allocation17], %s1508
        // Predicated region
        $region185: #{tpu_custom_call.1} parent=151 // pred_check
          %p1510 = pneg %p426
        $region186: #{tpu_custom_call.1} parent=151 // pred_check_branch
          %1512 = sbr.rel (%p1510) target = $region188
        $region187: #{tpu_custom_call.1} parent=151 // pred_region
          %1514 = dma.done %s1506, 1024
        $region188: #{tpu_custom_call.1} parent=151 // pred_fallthru
          _
        %s1515 = sand.u32 %s112, 1
        %s1516 = scalar_lea.sflag [#allocation19], %s1515
        %s1517 = sand.u32 %s465, 1
        %s1518 = smul.addr %s1517, 64
        %s1519 = scalar_lea.vmem [#allocation18], %s1518
        // Predicated region
        $region189: #{tpu_custom_call.1} parent=151 // pred_check
          %p1520 = pneg %p478
        $region190: #{tpu_custom_call.1} parent=151 // pred_check_branch
          %1522 = sbr.rel (%p1520) target = $region192
        $region191: #{tpu_custom_call.1} parent=151 // pred_region
          %1524 = dma.done %s1516, 1024
        $region192: #{tpu_custom_call.1} parent=151 // pred_fallthru
          _
        %s1525 = sand.u32 %s112, 1
        %s1526 = scalar_lea.sflag [#allocation19], %s1525
        %s1527 = sand.u32 %s517, 1
        %s1528 = smul.addr %s1527, 64
        %s1529 = scalar_lea.vmem [#allocation20], %s1528
        // Predicated region
        $region193: #{tpu_custom_call.1} parent=151 // pred_check
          %p1530 = pneg %p530
        $region194: #{tpu_custom_call.1} parent=151 // pred_check_branch
          %1532 = sbr.rel (%p1530) target = $region196
        $region195: #{tpu_custom_call.1} parent=151 // pred_region
          %1534 = dma.done %s1526, 1024
        $region196: #{tpu_custom_call.1} parent=151 // pred_fallthru
          _
        %s1535 = sand.u32 %s112, 1
        %s1536 = scalar_lea.sflag [#allocation22], %s1535
        %s1537 = sand.u32 %s543, 1
        %s1538 = scalar_lea.vmem [#allocation21], %s1537
        // Predicated region
        $region197: #{tpu_custom_call.1} parent=151 // pred_check
          %p1539 = pneg %p556
        $region198: #{tpu_custom_call.1} parent=151 // pred_check_branch
          %1541 = sbr.rel (%p1539) target = $region200
        $region199: #{tpu_custom_call.1} parent=151 // pred_region
          %1543 = dma.done %s1536, 16
        $region200: #{tpu_custom_call.1} parent=151 // pred_fallthru
          _
        %s1544 = sand.u32 %s112, 1
        %s1545 = scalar_lea.sflag [#allocation22], %s1544
        %s1546 = sand.u32 %s569, 1
        %s1547 = smul.addr %s1546, 64
        %s1548 = scalar_lea.vmem [#allocation23], %s1547
        // Predicated region
        $region201: #{tpu_custom_call.1} parent=151 // pred_check
          %p1549 = pneg %p582
        $region202: #{tpu_custom_call.1} parent=151 // pred_check_branch
          %1551 = sbr.rel (%p1549) target = $region204
        $region203: #{tpu_custom_call.1} parent=151 // pred_region
          %1553 = dma.done %s1545, 1024
        $region204: #{tpu_custom_call.1} parent=151 // pred_fallthru
          _
        %s1554 = sand.u32 %s112, 1
        %s1555 = scalar_lea.sflag [#allocation25], %s1554
        %s1556 = sand.u32 %s621, 1
        %s1557 = scalar_lea.vmem [#allocation24], %s1556
        // Predicated region
        $region205: #{tpu_custom_call.1} parent=151 // pred_check
          %p1558 = pneg %p634
        $region206: #{tpu_custom_call.1} parent=151 // pred_check_branch
          %1560 = sbr.rel (%p1558) target = $region208
        $region207: #{tpu_custom_call.1} parent=151 // pred_region
          %1562 = dma.done %s1555, 16
        $region208: #{tpu_custom_call.1} parent=151 // pred_fallthru
          _
        %s1563 = sand.u32 %s112, 1
        %s1564 = scalar_lea.sflag [#allocation25], %s1563
        %s1565 = sand.u32 %s673, 1
        %s1566 = smul.addr %s1565, 128
        %s1567 = scalar_lea.vmem [#allocation26], %s1566
        // Predicated region
        $region209: #{tpu_custom_call.1} parent=151 // pred_check
          %p1568 = pneg %p686
        $region210: #{tpu_custom_call.1} parent=151 // pred_check_branch
          %1570 = sbr.rel (%p1568) target = $region212
        $region211: #{tpu_custom_call.1} parent=151 // pred_region
          %1572 = dma.done %s1564, 2048
        $region212: #{tpu_custom_call.1} parent=151 // pred_fallthru
          _
        %s1573 = sand.u32 %s112, 1
        %s1574 = scalar_lea.sflag [#allocation28], %s1573
        %s1575 = sand.u32 %s725, 1
        %s1576 = smul.addr %s1575, 128
        %s1577 = scalar_lea.vmem [#allocation27], %s1576
        // Predicated region
        $region213: #{tpu_custom_call.1} parent=151 // pred_check
          %p1578 = pneg %p738
        $region214: #{tpu_custom_call.1} parent=151 // pred_check_branch
          %1580 = sbr.rel (%p1578) target = $region216
        $region215: #{tpu_custom_call.1} parent=151 // pred_region
          %1582 = dma.done %s1574, 2048
        $region216: #{tpu_custom_call.1} parent=151 // pred_fallthru
          _
        %s1583 = sand.u32 %s112, 1
        %s1584 = scalar_lea.sflag [#allocation28], %s1583
        %s1585 = sand.u32 %s777, 1
        %s1586 = scalar_lea.vmem [#allocation29], %s1585
        // Predicated region
        $region217: #{tpu_custom_call.1} parent=151 // pred_check
          %p1587 = pneg %p790
        $region218: #{tpu_custom_call.1} parent=151 // pred_check_branch
          %1589 = sbr.rel (%p1587) target = $region220
        $region219: #{tpu_custom_call.1} parent=151 // pred_region
          %1591 = dma.done %s1584, 16
        $region220: #{tpu_custom_call.1} parent=151 // pred_fallthru
          _
        %s1592 = sand.u32 %s112, 1
        %s1593 = scalar_lea.sflag [#allocation31], %s1592
        %s1594 = sand.u32 %s803, 1
        %s1595 = scalar_lea.vmem [#allocation30], %s1594
        // Predicated region
        $region221: #{tpu_custom_call.1} parent=151 // pred_check
          %p1596 = pneg %p816
        $region222: #{tpu_custom_call.1} parent=151 // pred_check_branch
          %1598 = sbr.rel (%p1596) target = $region224
        $region223: #{tpu_custom_call.1} parent=151 // pred_region
          %1600 = dma.done %s1593, 16
        $region224: #{tpu_custom_call.1} parent=151 // pred_fallthru
          _
        // Predicated region
        $region225: #{tpu_custom_call.1} parent=151 // pred_check
          %p1601 = pneg %p879
        $region226: #{tpu_custom_call.1} parent=151 // pred_check_branch
          %1603 = sbr.rel (%p1601) target = $region228
        $region227: #{tpu_custom_call.1} parent=151 // pred_region
          %1605 = dma.done [#allocation31], 1024
        $region228: #{tpu_custom_call.1} parent=151 // pred_fallthru
          _
        // Predicated region
        $region229: #{tpu_custom_call.1} parent=151 // pred_check
          %p1606 = pneg %p921
        $region230: #{tpu_custom_call.1} parent=151 // pred_check_branch
          %1608 = sbr.rel (%p1606) target = $region232
        $region231: #{tpu_custom_call.1} parent=151 // pred_region
          %1610 = dma.done [#allocation34], 1024
        $region232: #{tpu_custom_call.1} parent=151 // pred_fallthru
          _
        %p1611 = scmp.lt.s32.totalorder %s116, 1
        %s1612 = scalar_select %p1611, %s116, 1
        %s1613 = smul.addr %s1612, 8
        %s1614 = scalar_lea.vmem %s1, %s1613
        %p1615 = pneg %p145
        %p1616 = pneg %p142
        %s1617 = sand.u32 %s158, 1
        %s1618 = scalar_lea.sflag [#allocation4], %s1617
        %s1619 = sand.u32 %s158, 1
        %s1620 = smul.addr %s1619, 4
        %s1621 = scalar_lea.vmem [#allocation3], %s1620
        %p1622 = pneg %p171
        %p1623 = pneg %p168
        %p1624 = scmp.lt.s32.totalorder %s116, 1
        %s1625 = scalar_select %p1624, %s116, 1
        %s1626 = smul.addr %s1625, 8
        %s1627 = scalar_lea.vmem %s5, %s1626
        %p1628 = pneg %p197
        %p1629 = pneg %p194
        %s1630 = sand.u32 %s112, 1
        %s1631 = scalar_lea.sflag [#allocation7], %s1630
        %s1632 = sand.u32 %s210, 1
        %s1633 = scalar_lea.vmem [#allocation6], %s1632
        %p1634 = pneg %p223
        %p1635 = pneg %p220
        %p1636 = pneg %p244
        %p1637 = pneg %p241
        %s1638 = sand.u32 %s112, 1
        %s1639 = scalar_lea.sflag [#allocation10], %s1638
        %s1640 = sand.u32 %s257, 1
        %s1641 = smul.addr %s1640, 64
        %s1642 = scalar_lea.vmem [#allocation9], %s1641
        %p1643 = pneg %p270
        %p1644 = pneg %p267
        %s1645 = sand.u32 %s112, 1
        %s1646 = scalar_lea.sflag [#allocation10], %s1645
        %s1647 = sand.u32 %s283, 1
        %s1648 = scalar_lea.vmem [#allocation11], %s1647
        %p1649 = pneg %p296
        %p1650 = pneg %p293
        %s1651 = sand.u32 %s112, 1
        %s1652 = scalar_lea.sflag [#allocation13], %s1651
        %s1653 = sand.u32 %s309, 1
        %s1654 = smul.addr %s1653, 64
        %s1655 = scalar_lea.vmem [#allocation12], %s1654
        %p1656 = pneg %p322
        %p1657 = pneg %p319
        %p1658 = scmp.lt.s32.totalorder %s117, 2
        %s1659 = scalar_select %p1658, %s117, 2
        %s1660 = scalar_lea.vmem %s17, %s1659
        %p1661 = pneg %p348
        %p1662 = pneg %p345
        %s1663 = sand.u32 %s112, 1
        %s1664 = scalar_lea.sflag [#allocation13], %s1663
        %s1665 = sand.u32 %s361, 1
        %s1666 = scalar_lea.vmem [#allocation14], %s1665
        %p1667 = pneg %p374
        %p1668 = pneg %p371
        %s1669 = sand.u32 %s112, 1
        %s1670 = scalar_lea.sflag [#allocation16], %s1669
        %s1671 = sand.u32 %s387, 1
        %s1672 = scalar_lea.vmem [#allocation15], %s1671
        %p1673 = pneg %p400
        %p1674 = pneg %p397
        %s1675 = sand.u32 %s112, 1
        %s1676 = scalar_lea.sflag [#allocation16], %s1675
        %s1677 = sand.u32 %s413, 1
        %s1678 = smul.addr %s1677, 64
        %s1679 = scalar_lea.vmem [#allocation17], %s1678
        %p1680 = pneg %p426
        %p1681 = pneg %p423
        %p1682 = scmp.lt.s32.totalorder %s117, 2
        %s1683 = scalar_select %p1682, %s117, 2
        %s1684 = scalar_lea.vmem %s25, %s1683
        %p1685 = pneg %p452
        %p1686 = pneg %p449
        %s1687 = sand.u32 %s112, 1
        %s1688 = scalar_lea.sflag [#allocation19], %s1687
        %s1689 = sand.u32 %s465, 1
        %s1690 = smul.addr %s1689, 64
        %s1691 = scalar_lea.vmem [#allocation18], %s1690
        %p1692 = pneg %p478
        %p1693 = pneg %p475
        %p1694 = scmp.lt.s32.totalorder %s117, 2
        %s1695 = scalar_select %p1694, %s117, 2
        %s1696 = scalar_lea.vmem %s29, %s1695
        %p1697 = pneg %p504
        %p1698 = pneg %p501
        %s1699 = sand.u32 %s112, 1
        %s1700 = scalar_lea.sflag [#allocation19], %s1699
        %s1701 = sand.u32 %s517, 1
        %s1702 = smul.addr %s1701, 64
        %s1703 = scalar_lea.vmem [#allocation20], %s1702
        %p1704 = pneg %p530
        %p1705 = pneg %p527
        %s1706 = sand.u32 %s112, 1
        %s1707 = scalar_lea.sflag [#allocation22], %s1706
        %s1708 = sand.u32 %s543, 1
        %s1709 = scalar_lea.vmem [#allocation21], %s1708
        %p1710 = pneg %p556
        %p1711 = pneg %p553
        %s1712 = sand.u32 %s112, 1
        %s1713 = scalar_lea.sflag [#allocation22], %s1712
        %s1714 = sand.u32 %s569, 1
        %s1715 = smul.addr %s1714, 64
        %s1716 = scalar_lea.vmem [#allocation23], %s1715
        %p1717 = pneg %p582
        %p1718 = pneg %p579
        %p1719 = scmp.lt.s32.totalorder %s117, 2
        %s1720 = scalar_select %p1719, %s117, 2
        %s1721 = scalar_lea.vmem %s37, %s1720
        %p1722 = pneg %p608
        %p1723 = pneg %p605
        %s1724 = sand.u32 %s112, 1
        %s1725 = scalar_lea.sflag [#allocation25], %s1724
        %s1726 = sand.u32 %s621, 1
        %s1727 = scalar_lea.vmem [#allocation24], %s1726
        %p1728 = pneg %p634
        %p1729 = pneg %p631
        %p1730 = scmp.lt.s32.totalorder %s117, 2
        %s1731 = scalar_select %p1730, %s117, 2
        %s1732 = scalar_lea.vmem %s41, %s1731
        %p1733 = pneg %p660
        %p1734 = pneg %p657
        %s1735 = sand.u32 %s112, 1
        %s1736 = scalar_lea.sflag [#allocation25], %s1735
        %s1737 = sand.u32 %s673, 1
        %s1738 = smul.addr %s1737, 128
        %s1739 = scalar_lea.vmem [#allocation26], %s1738
        %p1740 = pneg %p686
        %p1741 = pneg %p683
        %p1742 = scmp.lt.s32.totalorder %s117, 2
        %s1743 = scalar_select %p1742, %s117, 2
        %s1744 = smul.addr %s1743, 2
        %s1745 = scalar_lea.vmem %s45, %s1744
        %p1746 = pneg %p712
        %p1747 = pneg %p709
        %s1748 = sand.u32 %s112, 1
        %s1749 = scalar_lea.sflag [#allocation28], %s1748
        %s1750 = sand.u32 %s725, 1
        %s1751 = smul.addr %s1750, 128
        %s1752 = scalar_lea.vmem [#allocation27], %s1751
        %p1753 = pneg %p738
        %p1754 = pneg %p735
        %p1755 = scmp.lt.s32.totalorder %s117, 2
        %s1756 = scalar_select %p1755, %s117, 2
        %s1757 = scalar_lea.vmem %s49, %s1756
        %p1758 = pneg %p764
        %p1759 = pneg %p761
        %s1760 = sand.u32 %s112, 1
        %s1761 = scalar_lea.sflag [#allocation28], %s1760
        %s1762 = sand.u32 %s777, 1
        %s1763 = scalar_lea.vmem [#allocation29], %s1762
        %p1764 = pneg %p790
        %p1765 = pneg %p787
        %s1766 = sand.u32 %s112, 1
        %s1767 = scalar_lea.sflag [#allocation31], %s1766
        %s1768 = sand.u32 %s803, 1
        %s1769 = scalar_lea.vmem [#allocation30], %s1768
        %p1770 = pneg %p816
        %p1771 = pneg %p813
        %p1772 = pneg %p837
        %p1773 = pneg %p834
        %p1774 = pneg %p858
        %p1775 = pneg %p855
        %p1776 = pneg %p879
        %p1777 = pneg %p876
        %p1778 = pneg %p900
        %p1779 = pneg %p897
        %p1780 = pneg %p921
        %p1781 = pneg %p918
        %p1782 = pneg %p942
        %p1783 = pneg %p939
        %p1784 = pneg %p968
        %p1785 = pneg %p965
        %s1786 = sand.u32 %s955, 1
        %s1787 = scalar_lea.sflag [#allocation5], %s1786
        %s1788 = sand.u32 %s955, 1
        %s1789 = scalar_lea.vmem [#allocation35], %s1788
        %p1790 = scmp.lt.s32.totalorder %s116, 1
        %s1791 = scalar_select %p1790, %s116, 1
        %s1792 = smul.addr %s1791, 8
        %s1793 = scalar_lea.vmem %s1, %s1792
        %p1794 = scmp.lt.s32.totalorder %s116, 1
        %s1795 = scalar_select %p1794, %s116, 1
        %s1796 = smul.addr %s1795, 8
        %s1797 = scalar_lea.vmem %s5, %s1796
        %p1798 = scmp.lt.s32.totalorder %s117, 2
        %s1799 = scalar_select %p1798, %s117, 2
        %s1800 = scalar_lea.vmem %s17, %s1799
        %p1801 = scmp.lt.s32.totalorder %s117, 2
        %s1802 = scalar_select %p1801, %s117, 2
        %s1803 = scalar_lea.vmem %s25, %s1802
        %p1804 = scmp.lt.s32.totalorder %s117, 2
        %s1805 = scalar_select %p1804, %s117, 2
        %s1806 = scalar_lea.vmem %s29, %s1805
        %p1807 = scmp.lt.s32.totalorder %s117, 2
        %s1808 = scalar_select %p1807, %s117, 2
        %s1809 = scalar_lea.vmem %s37, %s1808
        %p1810 = scmp.lt.s32.totalorder %s117, 2
        %s1811 = scalar_select %p1810, %s117, 2
        %s1812 = scalar_lea.vmem %s41, %s1811
        %p1813 = scmp.lt.s32.totalorder %s117, 2
        %s1814 = scalar_select %p1813, %s117, 2
        %s1815 = smul.addr %s1814, 2
        %s1816 = scalar_lea.vmem %s45, %s1815
        %p1817 = scmp.lt.s32.totalorder %s117, 2
        %s1818 = scalar_select %p1817, %s117, 2
        %s1819 = scalar_lea.vmem %s49, %s1818
        %p1821 = scmp.eq.s32.totalorder %s117, 0
        // Predicated region
        $region233: #{tpu_custom_call.1} parent=151 // pred_check
          %p1822 = pneg %p1821
        $region234: #{tpu_custom_call.1} parent=151 // pred_check_branch
          %1824 = sbr.rel (%p1822) target = $region236
        $region235: #{tpu_custom_call.1} parent=151 // pred_region
          %v1825 = vld [vmem:[%s1793] sm:$0xff]
          %1826 = vst [vmem:[#allocation2] sm:$0xff] %v1825
        $region236: #{tpu_custom_call.1} parent=151 // pred_fallthru
          _
        %v1827 = vld [vmem:[#allocation2] sm:$0xff]
        %v1828 = vpack.c.bf16 %v1827, %v1827
        %v1829 = vld [vmem:[%s1797] sm:$0xff]
        %v1830 = vld [vmem:[%s1447] sm:$0x1]
        %1831 = vset.pattern.permute.xlu0 0
        %1832 = vperm.xlu0 %1831, %v1829
        %v1833 = vpop.permute.xlu0 %1832
        %v1834 = vperm.slane %v1830, 0
        %vm1835 = vcmp.eq.s32.totalorder %v1833, %v1834
        %v1836 = vsel %vm1835, 1, 0
        %v1837 = vcvt.s32.f32 %v1836
        %v1838 = vsub.f32 %v1837, 1.0
        %v1839 = vmul.f32 %v1838, 1e+09
        %v1840 = vld [vmem:[%s1438] sm:$0xf]
        %vm1841 = vcmask 64512
        %v1843 = vsel %vm1841, %v1840, 0
        %vm1845 = vcmask 1043456
        %v1847 = vsel %vm1845, %v1828, 0
        %1849 = vmatpush.bf16.msra.mxu0 0
        %1850 = vmatpush.bf16.msra.mxu0 0
        %1851 = vmatpush.bf16.msra.mxu0 0
        %1852 = vmatpush.bf16.msra.mxu0 0
        %1853 = vmatpush.bf16.msra.mxu0 0
        %1854 = vmatpush.bf16.msra.mxu0 0
        %1855 = vmatpush.bf16.msra.mxu0 0
        %1856 = vmatpush.bf16.msra.mxu0 %v1847
        %1857 = vmatmul.bf16.gmra.mxu0 %v1843
        %v1858 = vpop.f32.mrf.mxu0
        %v1859 = vadd.f32 0.0, %v1858
        %v1860 = vpop.f32.mrf.mxu0
        %1861 = vdwg.mxu0
        %v1862 = vpack.c.bf16 %v1859, %v1859
        %v1863 = vld [vmem:[%s1462] sm:$0xf]
        %v1864 = vld [vmem:[%s1462 + $0x4] sm:$0xf]
        %v1865 = vld [vmem:[%s1462 + $0x8] sm:$0xf]
        %v1866 = vld [vmem:[%s1462 + $0xc] sm:$0xf]
        %v1867 = vld [vmem:[%s1462 + $0x10] sm:$0xf]
        %v1868 = vld [vmem:[%s1462 + $0x14] sm:$0xf]
        %v1869 = vld [vmem:[%s1462 + $0x18] sm:$0xf]
        %v1870 = vld [vmem:[%s1462 + $0x1c] sm:$0xf]
        %v1871 = vld [vmem:[%s1462 + $0x20] sm:$0xf]
        %v1872 = vld [vmem:[%s1462 + $0x24] sm:$0xf]
        %v1873 = vld [vmem:[%s1462 + $0x28] sm:$0xf]
        %v1874 = vld [vmem:[%s1462 + $0x2c] sm:$0xf]
        %v1875 = vld [vmem:[%s1462 + $0x30] sm:$0xf]
        %v1876 = vld [vmem:[%s1462 + $0x34] sm:$0xf]
        %v1877 = vld [vmem:[%s1462 + $0x38] sm:$0xf]
        %v1878 = vld [vmem:[%s1462 + $0x3c] sm:$0xf]
        %v1879 = vld [vmem:[%s1471] sm:$0x1]
        %v1881 = vperm.slane %v1879, 0
        %v1899 = vunpack.c.l.b16 %v1863
        %v1900 = vunpack.c.l.b16 %v1864
        %v1901 = vunpack.c.l.b16 %v1865
        %v1902 = vunpack.c.l.b16 %v1866
        %v1903 = vunpack.c.l.b16 %v1867
        %v1904 = vunpack.c.l.b16 %v1868
        %v1905 = vunpack.c.l.b16 %v1869
        %v1906 = vunpack.c.l.b16 %v1870
        %v1907 = vunpack.c.l.b16 %v1871
        %v1908 = vunpack.c.l.b16 %v1872
        %v1909 = vunpack.c.l.b16 %v1873
        %v1910 = vunpack.c.l.b16 %v1874
        %v1911 = vunpack.c.l.b16 %v1875
        %v1912 = vunpack.c.l.b16 %v1876
        %v1913 = vunpack.c.l.b16 %v1877
        %v1914 = vunpack.c.l.b16 %v1878
        %v1915 = vpack.c.b16 %v1900, %v1899
        %v1916 = vpack.c.b16 %v1902, %v1901
        %v1917 = vpack.c.b16 %v1904, %v1903
        %v1918 = vpack.c.b16 %v1906, %v1905
        %v1919 = vpack.c.b16 %v1908, %v1907
        %v1920 = vpack.c.b16 %v1910, %v1909
        %v1921 = vpack.c.b16 %v1912, %v1911
        %v1922 = vpack.c.b16 %v1914, %v1913
        %1931 = vmatpush.bf16.msra.mxu0 %v1922
        %1932 = vmatpush.bf16.msra.mxu0 %v1921
        %1933 = vmatpush.bf16.msra.mxu0 %v1920
        %1934 = vmatpush.bf16.msra.mxu0 %v1919
        %1935 = vmatpush.bf16.msra.mxu0 %v1918
        %1936 = vmatpush.bf16.msra.mxu0 %v1917
        %1937 = vmatpush.bf16.msra.mxu0 %v1916
        %1938 = vmatpush.bf16.msra.mxu0 %v1915
        %1939 = vmatmul.bf16.gmra.mxu0 %v1862
        %v1940 = vpop.f32.mrf.mxu0
        %v1941 = vadd.f32 %v1881, %v1940
        %v1942 = vpop.f32.mrf.mxu0
        %1943 = vdwg.mxu0
        %v1944 = vmax.f32 %v1941, 0.0
        %v1945 = vpack.c.bf16 %v1944, %v1944
        %v1946 = vld [vmem:[%s1481] sm:$0xf]
        %v1947 = vld [vmem:[%s1481 + $0x4] sm:$0xf]
        %v1948 = vld [vmem:[%s1481 + $0x8] sm:$0xf]
        %v1949 = vld [vmem:[%s1481 + $0xc] sm:$0xf]
        %v1950 = vld [vmem:[%s1481 + $0x10] sm:$0xf]
        %v1951 = vld [vmem:[%s1481 + $0x14] sm:$0xf]
        %v1952 = vld [vmem:[%s1481 + $0x18] sm:$0xf]
        %v1953 = vld [vmem:[%s1481 + $0x1c] sm:$0xf]
        %v1954 = vld [vmem:[%s1481 + $0x20] sm:$0xf]
        %v1955 = vld [vmem:[%s1481 + $0x24] sm:$0xf]
        %v1956 = vld [vmem:[%s1481 + $0x28] sm:$0xf]
        %v1957 = vld [vmem:[%s1481 + $0x2c] sm:$0xf]
        %v1958 = vld [vmem:[%s1481 + $0x30] sm:$0xf]
        %v1959 = vld [vmem:[%s1481 + $0x34] sm:$0xf]
        %v1960 = vld [vmem:[%s1481 + $0x38] sm:$0xf]
        %v1961 = vld [vmem:[%s1481 + $0x3c] sm:$0xf]
        %v1962 = vld [vmem:[%s1800] sm:$0x1]
        %v1964 = vperm.slane %v1962, 0
        %v1982 = vunpack.c.l.b16 %v1946
        %v1983 = vunpack.c.l.b16 %v1947
        %v1984 = vunpack.c.l.b16 %v1948
        %v1985 = vunpack.c.l.b16 %v1949
        %v1986 = vunpack.c.l.b16 %v1950
        %v1987 = vunpack.c.l.b16 %v1951
        %v1988 = vunpack.c.l.b16 %v1952
        %v1989 = vunpack.c.l.b16 %v1953
        %v1990 = vunpack.c.l.b16 %v1954
        %v1991 = vunpack.c.l.b16 %v1955
        %v1992 = vunpack.c.l.b16 %v1956
        %v1993 = vunpack.c.l.b16 %v1957
        %v1994 = vunpack.c.l.b16 %v1958
        %v1995 = vunpack.c.l.b16 %v1959
        %v1996 = vunpack.c.l.b16 %v1960
        %v1997 = vunpack.c.l.b16 %v1961
        %v1998 = vpack.c.b16 %v1983, %v1982
        %v1999 = vpack.c.b16 %v1985, %v1984
        %v2000 = vpack.c.b16 %v1987, %v1986
        %v2001 = vpack.c.b16 %v1989, %v1988
        %v2002 = vpack.c.b16 %v1991, %v1990
        %v2003 = vpack.c.b16 %v1993, %v1992
        %v2004 = vpack.c.b16 %v1995, %v1994
        %v2005 = vpack.c.b16 %v1997, %v1996
        %2014 = vmatpush.bf16.msra.mxu0 %v2005
        %2015 = vmatpush.bf16.msra.mxu0 %v2004
        %2016 = vmatpush.bf16.msra.mxu0 %v2003
        %2017 = vmatpush.bf16.msra.mxu0 %v2002
        %2018 = vmatpush.bf16.msra.mxu0 %v2001
        %2019 = vmatpush.bf16.msra.mxu0 %v2000
        %2020 = vmatpush.bf16.msra.mxu0 %v1999
        %2021 = vmatpush.bf16.msra.mxu0 %v1998
        %2022 = vmatmul.bf16.gmra.mxu0 %v1945
        %v2023 = vpop.f32.mrf.mxu0
        %v2024 = vadd.f32 %v1964, %v2023
        %v2025 = vpop.f32.mrf.mxu0
        %2026 = vdwg.mxu0
        %v2027 = vadd.f32 %v2024, %v1827
        %v2028 = vld [vmem:[%s1490] sm:$0x1]
        %v2030 = vperm.slane %v2028, 0
        %v2032 = vmul.f32 %v2027, %v2030
        %v2033 = vld [vmem:[%s1499] sm:$0x1]
        %v2035 = vperm.slane %v2033, 0
        %v2037 = vadd.f32 %v2032, %v2035
        %v2038 = vld [vmem:[%s1509] sm:$0xf]
        %v2039 = vld [vmem:[%s1509 + $0x4] sm:$0xf]
        %v2040 = vld [vmem:[%s1509 + $0x8] sm:$0xf]
        %v2041 = vld [vmem:[%s1509 + $0xc] sm:$0xf]
        %v2042 = vld [vmem:[%s1509 + $0x10] sm:$0xf]
        %v2043 = vld [vmem:[%s1509 + $0x14] sm:$0xf]
        %v2044 = vld [vmem:[%s1509 + $0x18] sm:$0xf]
        %v2045 = vld [vmem:[%s1509 + $0x1c] sm:$0xf]
        %v2046 = vld [vmem:[%s1509 + $0x20] sm:$0xf]
        %v2047 = vld [vmem:[%s1509 + $0x24] sm:$0xf]
        %v2048 = vld [vmem:[%s1509 + $0x28] sm:$0xf]
        %v2049 = vld [vmem:[%s1509 + $0x2c] sm:$0xf]
        %v2050 = vld [vmem:[%s1509 + $0x30] sm:$0xf]
        %v2051 = vld [vmem:[%s1509 + $0x34] sm:$0xf]
        %v2052 = vld [vmem:[%s1509 + $0x38] sm:$0xf]
        %v2053 = vld [vmem:[%s1509 + $0x3c] sm:$0xf]
        %v2054 = vld [vmem:[%s1803] sm:$0x1]
        %v2056 = vperm.slane %v2054, 0
        %v2074 = vunpack.c.l.b16 %v2038
        %v2075 = vunpack.c.l.b16 %v2039
        %v2076 = vunpack.c.l.b16 %v2040
        %v2077 = vunpack.c.l.b16 %v2041
        %v2078 = vunpack.c.l.b16 %v2042
        %v2079 = vunpack.c.l.b16 %v2043
        %v2080 = vunpack.c.l.b16 %v2044
        %v2081 = vunpack.c.l.b16 %v2045
        %v2082 = vunpack.c.l.b16 %v2046
        %v2083 = vunpack.c.l.b16 %v2047
        %v2084 = vunpack.c.l.b16 %v2048
        %v2085 = vunpack.c.l.b16 %v2049
        %v2086 = vunpack.c.l.b16 %v2050
        %v2087 = vunpack.c.l.b16 %v2051
        %v2088 = vunpack.c.l.b16 %v2052
        %v2089 = vunpack.c.l.b16 %v2053
        %v2090 = vpack.c.b16 %v2075, %v2074
        %v2091 = vpack.c.b16 %v2077, %v2076
        %v2092 = vpack.c.b16 %v2079, %v2078
        %v2093 = vpack.c.b16 %v2081, %v2080
        %v2094 = vpack.c.b16 %v2083, %v2082
        %v2095 = vpack.c.b16 %v2085, %v2084
        %v2096 = vpack.c.b16 %v2087, %v2086
        %v2097 = vpack.c.b16 %v2089, %v2088
        %2106 = vmatpush.bf16.msra.mxu0 %v2097
        %2107 = vmatpush.bf16.msra.mxu0 %v2096
        %2108 = vmatpush.bf16.msra.mxu0 %v2095
        %2109 = vmatpush.bf16.msra.mxu0 %v2094
        %2110 = vmatpush.bf16.msra.mxu0 %v2093
        %2111 = vmatpush.bf16.msra.mxu0 %v2092
        %2112 = vmatpush.bf16.msra.mxu0 %v2091
        %2113 = vmatpush.bf16.msra.mxu0 %v2090
        %2114 = vmatmul.bf16.gmra.mxu0 %v1828
        %v2115 = vpop.f32.mrf.mxu0
        %v2116 = vadd.f32 %v2056, %v2115
        %v2117 = vpop.f32.mrf.mxu0
        %2118 = vdwg.mxu0
        %v2119 = vld [vmem:[%s1519] sm:$0xf]
        %v2120 = vld [vmem:[%s1519 + $0x4] sm:$0xf]
        %v2121 = vld [vmem:[%s1519 + $0x8] sm:$0xf]
        %v2122 = vld [vmem:[%s1519 + $0xc] sm:$0xf]
        %v2123 = vld [vmem:[%s1519 + $0x10] sm:$0xf]
        %v2124 = vld [vmem:[%s1519 + $0x14] sm:$0xf]
        %v2125 = vld [vmem:[%s1519 + $0x18] sm:$0xf]
        %v2126 = vld [vmem:[%s1519 + $0x1c] sm:$0xf]
        %v2127 = vld [vmem:[%s1519 + $0x20] sm:$0xf]
        %v2128 = vld [vmem:[%s1519 + $0x24] sm:$0xf]
        %v2129 = vld [vmem:[%s1519 + $0x28] sm:$0xf]
        %v2130 = vld [vmem:[%s1519 + $0x2c] sm:$0xf]
        %v2131 = vld [vmem:[%s1519 + $0x30] sm:$0xf]
        %v2132 = vld [vmem:[%s1519 + $0x34] sm:$0xf]
        %v2133 = vld [vmem:[%s1519 + $0x38] sm:$0xf]
        %v2134 = vld [vmem:[%s1519 + $0x3c] sm:$0xf]
        %v2135 = vld [vmem:[%s1806] sm:$0x1]
        %v2137 = vperm.slane %v2135, 0
        %v2155 = vunpack.c.l.b16 %v2119
        %v2156 = vunpack.c.l.b16 %v2120
        %v2157 = vunpack.c.l.b16 %v2121
        %v2158 = vunpack.c.l.b16 %v2122
        %v2159 = vunpack.c.l.b16 %v2123
        %v2160 = vunpack.c.l.b16 %v2124
        %v2161 = vunpack.c.l.b16 %v2125
        %v2162 = vunpack.c.l.b16 %v2126
        %v2163 = vunpack.c.l.b16 %v2127
        %v2164 = vunpack.c.l.b16 %v2128
        %v2165 = vunpack.c.l.b16 %v2129
        %v2166 = vunpack.c.l.b16 %v2130
        %v2167 = vunpack.c.l.b16 %v2131
        %v2168 = vunpack.c.l.b16 %v2132
        %v2169 = vunpack.c.l.b16 %v2133
        %v2170 = vunpack.c.l.b16 %v2134
        %v2171 = vpack.c.b16 %v2156, %v2155
        %v2172 = vpack.c.b16 %v2158, %v2157
        %v2173 = vpack.c.b16 %v2160, %v2159
        %v2174 = vpack.c.b16 %v2162, %v2161
        %v2175 = vpack.c.b16 %v2164, %v2163
        %v2176 = vpack.c.b16 %v2166, %v2165
        %v2177 = vpack.c.b16 %v2168, %v2167
        %v2178 = vpack.c.b16 %v2170, %v2169
        %2187 = vmatpush.bf16.msra.mxu0 %v2178
        %2188 = vmatpush.bf16.msra.mxu0 %v2177
        %2189 = vmatpush.bf16.msra.mxu0 %v2176
        %2190 = vmatpush.bf16.msra.mxu0 %v2175
        %2191 = vmatpush.bf16.msra.mxu0 %v2174
        %2192 = vmatpush.bf16.msra.mxu0 %v2173
        %2193 = vmatpush.bf16.msra.mxu0 %v2172
        %2194 = vmatpush.bf16.msra.mxu0 %v2171
        %2195 = vmatmul.bf16.gmra.mxu0 %v1828
        %v2196 = vpop.f32.mrf.mxu0
        %v2197 = vadd.f32 %v2137, %v2196
        %v2198 = vpop.f32.mrf.mxu0
        %2199 = vdwg.mxu0
        %v2200 = vld [vmem:[%s1529] sm:$0xf]
        %v2201 = vld [vmem:[%s1529 + $0x4] sm:$0xf]
        %v2202 = vld [vmem:[%s1529 + $0x8] sm:$0xf]
        %v2203 = vld [vmem:[%s1529 + $0xc] sm:$0xf]
        %v2204 = vld [vmem:[%s1529 + $0x10] sm:$0xf]
        %v2205 = vld [vmem:[%s1529 + $0x14] sm:$0xf]
        %v2206 = vld [vmem:[%s1529 + $0x18] sm:$0xf]
        %v2207 = vld [vmem:[%s1529 + $0x1c] sm:$0xf]
        %v2208 = vld [vmem:[%s1529 + $0x20] sm:$0xf]
        %v2209 = vld [vmem:[%s1529 + $0x24] sm:$0xf]
        %v2210 = vld [vmem:[%s1529 + $0x28] sm:$0xf]
        %v2211 = vld [vmem:[%s1529 + $0x2c] sm:$0xf]
        %v2212 = vld [vmem:[%s1529 + $0x30] sm:$0xf]
        %v2213 = vld [vmem:[%s1529 + $0x34] sm:$0xf]
        %v2214 = vld [vmem:[%s1529 + $0x38] sm:$0xf]
        %v2215 = vld [vmem:[%s1529 + $0x3c] sm:$0xf]
        %v2216 = vld [vmem:[%s1538] sm:$0x1]
        %v2218 = vperm.slane %v2216, 0
        %v2236 = vunpack.c.l.b16 %v2200
        %v2237 = vunpack.c.l.b16 %v2201
        %v2238 = vunpack.c.l.b16 %v2202
        %v2239 = vunpack.c.l.b16 %v2203
        %v2240 = vunpack.c.l.b16 %v2204
        %v2241 = vunpack.c.l.b16 %v2205
        %v2242 = vunpack.c.l.b16 %v2206
        %v2243 = vunpack.c.l.b16 %v2207
        %v2244 = vunpack.c.l.b16 %v2208
        %v2245 = vunpack.c.l.b16 %v2209
        %v2246 = vunpack.c.l.b16 %v2210
        %v2247 = vunpack.c.l.b16 %v2211
        %v2248 = vunpack.c.l.b16 %v2212
        %v2249 = vunpack.c.l.b16 %v2213
        %v2250 = vunpack.c.l.b16 %v2214
        %v2251 = vunpack.c.l.b16 %v2215
        %v2252 = vpack.c.b16 %v2237, %v2236
        %v2253 = vpack.c.b16 %v2239, %v2238
        %v2254 = vpack.c.b16 %v2241, %v2240
        %v2255 = vpack.c.b16 %v2243, %v2242
        %v2256 = vpack.c.b16 %v2245, %v2244
        %v2257 = vpack.c.b16 %v2247, %v2246
        %v2258 = vpack.c.b16 %v2249, %v2248
        %v2259 = vpack.c.b16 %v2251, %v2250
        %2268 = vmatpush.bf16.msra.mxu0 %v2259
        %2269 = vmatpush.bf16.msra.mxu0 %v2258
        %2270 = vmatpush.bf16.msra.mxu0 %v2257
        %2271 = vmatpush.bf16.msra.mxu0 %v2256
        %2272 = vmatpush.bf16.msra.mxu0 %v2255
        %2273 = vmatpush.bf16.msra.mxu0 %v2254
        %2274 = vmatpush.bf16.msra.mxu0 %v2253
        %2275 = vmatpush.bf16.msra.mxu0 %v2252
        %2276 = vmatmul.bf16.gmra.mxu0 %v1828
        %v2277 = vpop.f32.mrf.mxu0
        %v2278 = vadd.f32 %v2218, %v2277
        %v2279 = vpop.f32.mrf.mxu0
        %2280 = vdwg.mxu0
        %v2281 = vmul.f32 %v2116, 0.17677669
        %v2282 = vld [vmem:[#allocation8] sm:$0xf]
        %v2284 = vrot.slane %v2282, 1
        %v2285 = vrot.slane %v2282, 2
        %v2286 = vrot.slane %v2282, 3
        %v2287 = vperm.slane %v2282, 0
        %v2288 = vperm.slane %v2284, 0
        %v2289 = vperm.slane %v2285, 0
        %v2290 = vperm.slane %v2286, 0
        %v2295 = vmul.f32 %v2281, %v2287
        %v2296 = vmul.f32 %v2281, %v2288
        %v2297 = vmul.f32 %v2281, %v2289
        %v2298 = vmul.f32 %v2281, %v2290
        %v2299 = vmul.f32 %v2197, %v2287
        %v2300 = vmul.f32 %v2197, %v2288
        %v2301 = vmul.f32 %v2197, %v2289
        %v2302 = vmul.f32 %v2197, %v2290
        %v2303 = vmul.f32 %v2278, %v2287
        %v2304 = vmul.f32 %v2278, %v2288
        %v2305 = vmul.f32 %v2278, %v2289
        %v2306 = vmul.f32 %v2278, %v2290
        %v2307 = vpack.c.bf16 %v2295, %v2295
        %v2308 = vpack.c.bf16 %v2296, %v2296
        %v2309 = vpack.c.bf16 %v2297, %v2297
        %v2310 = vpack.c.bf16 %v2298, %v2298
        %v2311 = vpack.c.bf16 %v2299, %v2299
        %v2312 = vpack.c.bf16 %v2300, %v2300
        %v2313 = vpack.c.bf16 %v2301, %v2301
        %v2314 = vpack.c.bf16 %v2302, %v2302
        %2315 = vmatpush.bf16.xpose.msra.mxu0 0
        %2316 = vmatpush.bf16.xpose.msra.mxu0 0
        %2317 = vmatpush.bf16.xpose.msra.mxu0 0
        %2318 = vmatpush.bf16.xpose.msra.mxu0 0
        %2319 = vmatpush.bf16.xpose.msra.mxu0 0
        %2320 = vmatpush.bf16.xpose.msra.mxu0 0
        %2321 = vmatpush.bf16.xpose.msra.mxu0 0
        %2322 = vmatpush.bf16.xpose.msra.mxu0 %v2311
        %2323 = vmatmul.bf16.gmra.mxu0 %v2307
        %v2324 = vpop.f32.mrf.mxu0
        %v2325 = vadd.f32 %v1839, %v2324
        %v2326 = vpop.f32.mrf.mxu0
        %2327 = vdwg.mxu0
        %2328 = vmatpush.bf16.xpose.msra.mxu0 0
        %2329 = vmatpush.bf16.xpose.msra.mxu0 0
        %2330 = vmatpush.bf16.xpose.msra.mxu0 0
        %2331 = vmatpush.bf16.xpose.msra.mxu0 0
        %2332 = vmatpush.bf16.xpose.msra.mxu0 0
        %2333 = vmatpush.bf16.xpose.msra.mxu0 0
        %2334 = vmatpush.bf16.xpose.msra.mxu0 0
        %2335 = vmatpush.bf16.xpose.msra.mxu0 %v2312
        %2336 = vmatmul.bf16.gmra.mxu0 %v2308
        %v2337 = vpop.f32.mrf.mxu0
        %v2338 = vadd.f32 %v1839, %v2337
        %v2339 = vpop.f32.mrf.mxu0
        %2340 = vdwg.mxu0
        %2341 = vmatpush.bf16.xpose.msra.mxu0 0
        %2342 = vmatpush.bf16.xpose.msra.mxu0 0
        %2343 = vmatpush.bf16.xpose.msra.mxu0 0
        %2344 = vmatpush.bf16.xpose.msra.mxu0 0
        %2345 = vmatpush.bf16.xpose.msra.mxu0 0
        %2346 = vmatpush.bf16.xpose.msra.mxu0 0
        %2347 = vmatpush.bf16.xpose.msra.mxu0 0
        %2348 = vmatpush.bf16.xpose.msra.mxu0 %v2313
        %2349 = vmatmul.bf16.gmra.mxu0 %v2309
        %v2350 = vpop.f32.mrf.mxu0
        %v2351 = vadd.f32 %v1839, %v2350
        %v2352 = vpop.f32.mrf.mxu0
        %2353 = vdwg.mxu0
        %2354 = vmatpush.bf16.xpose.msra.mxu0 0
        %2355 = vmatpush.bf16.xpose.msra.mxu0 0
        %2356 = vmatpush.bf16.xpose.msra.mxu0 0
        %2357 = vmatpush.bf16.xpose.msra.mxu0 0
        %2358 = vmatpush.bf16.xpose.msra.mxu0 0
        %2359 = vmatpush.bf16.xpose.msra.mxu0 0
        %2360 = vmatpush.bf16.xpose.msra.mxu0 0
        %2361 = vmatpush.bf16.xpose.msra.mxu0 %v2314
        %2362 = vmatmul.bf16.gmra.mxu0 %v2310
        %v2363 = vpop.f32.mrf.mxu0
        %v2364 = vadd.f32 %v1839, %v2363
        %v2365 = vpop.f32.mrf.mxu0
        %2366 = vdwg.mxu0
        %v2367 = vsel %vm1841, %v2325, -inf
        %2368 = vmax.xlane.f32.xlu0 %v2367
        %v2369 = vpop.xlane.xlu0 %2368
        %v2370 = vsel %vm1841, %v2338, -inf
        %2371 = vmax.xlane.f32.xlu0 %v2370
        %v2372 = vpop.xlane.xlu0 %2371
        %v2373 = vsel %vm1841, %v2351, -inf
        %2374 = vmax.xlane.f32.xlu0 %v2373
        %v2375 = vpop.xlane.xlu0 %2374
        %v2376 = vsel %vm1841, %v2364, -inf
        %2377 = vmax.xlane.f32.xlu0 %v2376
        %v2378 = vpop.xlane.xlu0 %2377
        %v2379 = vsub.f32 %v2325, %v2369
        %v2380 = vsub.f32 %v2338, %v2372
        %v2381 = vsub.f32 %v2351, %v2375
        %v2382 = vsub.f32 %v2364, %v2378
        %v2383 = vmul.f32 %v2379, 1.442695
        %v2384 = vpow.pop %v2383
        %v2385 = vmul.f32 %v2380, 1.442695
        %v2386 = vpow.pop %v2385
        %v2387 = vmul.f32 %v2381, 1.442695
        %v2388 = vpow.pop %v2387
        %v2389 = vmul.f32 %v2382, 1.442695
        %v2390 = vpow.pop %v2389
        %v2391 = vsel %vm1841, %v2384, 0.0
        %2392 = vadd.xlane.f32.xlu0 %v2391
        %v2393 = vpop.xlane.xlu0 %2392
        %v2394 = vsel %vm1841, %v2386, 0.0
        %2395 = vadd.xlane.f32.xlu0 %v2394
        %v2396 = vpop.xlane.xlu0 %2395
        %v2397 = vsel %vm1841, %v2388, 0.0
        %2398 = vadd.xlane.f32.xlu0 %v2397
        %v2399 = vpop.xlane.xlu0 %2398
        %v2400 = vsel %vm1841, %v2390, 0.0
        %2401 = vadd.xlane.f32.xlu0 %v2400
        %v2402 = vpop.xlane.xlu0 %2401
        %v2403 = vrcp.pop %v2393
        %v2404 = vrcp.pop %v2396
        %v2405 = vrcp.pop %v2399
        %v2406 = vrcp.pop %v2402
        %v2407 = vmul.f32 %v2384, %v2403
        %v2408 = vmul.f32 %v2386, %v2404
        %v2409 = vmul.f32 %v2388, %v2405
        %v2410 = vmul.f32 %v2390, %v2406
        %v2411 = vpack.c.bf16 %v2407, %v2407
        %v2412 = vpack.c.bf16 %v2408, %v2408
        %v2413 = vpack.c.bf16 %v2409, %v2409
        %v2414 = vpack.c.bf16 %v2410, %v2410
        %v2415 = vpack.c.bf16 %v2303, %v2303
        %v2416 = vpack.c.bf16 %v2304, %v2304
        %v2417 = vpack.c.bf16 %v2305, %v2305
        %v2418 = vpack.c.bf16 %v2306, %v2306
        %v2420 = vsel %vm1841, %v2411, 0
        %v2423 = vsel %vm1845, %v2415, 0
        %2425 = vmatpush.bf16.msra.mxu0 0
        %2426 = vmatpush.bf16.msra.mxu0 0
        %2427 = vmatpush.bf16.msra.mxu0 0
        %2428 = vmatpush.bf16.msra.mxu0 0
        %2429 = vmatpush.bf16.msra.mxu0 0
        %2430 = vmatpush.bf16.msra.mxu0 0
        %2431 = vmatpush.bf16.msra.mxu0 0
        %2432 = vmatpush.bf16.msra.mxu0 %v2423
        %2433 = vmatmul.bf16.gmra.mxu0 %v2420
        %v2434 = vpop.f32.mrf.mxu0
        %v2435 = vadd.f32 0.0, %v2434
        %v2436 = vpop.f32.mrf.mxu0
        %2437 = vdwg.mxu0
        %v2439 = vsel %vm1841, %v2412, 0
        %v2442 = vsel %vm1845, %v2416, 0
        %2444 = vmatpush.bf16.msra.mxu0 0
        %2445 = vmatpush.bf16.msra.mxu0 0
        %2446 = vmatpush.bf16.msra.mxu0 0
        %2447 = vmatpush.bf16.msra.mxu0 0
        %2448 = vmatpush.bf16.msra.mxu0 0
        %2449 = vmatpush.bf16.msra.mxu0 0
        %2450 = vmatpush.bf16.msra.mxu0 0
        %2451 = vmatpush.bf16.msra.mxu0 %v2442
        %2452 = vmatmul.bf16.gmra.mxu0 %v2439
        %v2453 = vpop.f32.mrf.mxu0
        %v2454 = vadd.f32 0.0, %v2453
        %v2455 = vpop.f32.mrf.mxu0
        %2456 = vdwg.mxu0
        %v2458 = vsel %vm1841, %v2413, 0
        %v2461 = vsel %vm1845, %v2417, 0
        %2463 = vmatpush.bf16.msra.mxu0 0
        %2464 = vmatpush.bf16.msra.mxu0 0
        %2465 = vmatpush.bf16.msra.mxu0 0
        %2466 = vmatpush.bf16.msra.mxu0 0
        %2467 = vmatpush.bf16.msra.mxu0 0
        %2468 = vmatpush.bf16.msra.mxu0 0
        %2469 = vmatpush.bf16.msra.mxu0 0
        %2470 = vmatpush.bf16.msra.mxu0 %v2461
        %2471 = vmatmul.bf16.gmra.mxu0 %v2458
        %v2472 = vpop.f32.mrf.mxu0
        %v2473 = vadd.f32 0.0, %v2472
        %v2474 = vpop.f32.mrf.mxu0
        %2475 = vdwg.mxu0
        %v2477 = vsel %vm1841, %v2414, 0
        %v2480 = vsel %vm1845, %v2418, 0
        %2482 = vmatpush.bf16.msra.mxu0 0
        %2483 = vmatpush.bf16.msra.mxu0 0
        %2484 = vmatpush.bf16.msra.mxu0 0
        %2485 = vmatpush.bf16.msra.mxu0 0
        %2486 = vmatpush.bf16.msra.mxu0 0
        %2487 = vmatpush.bf16.msra.mxu0 0
        %2488 = vmatpush.bf16.msra.mxu0 0
        %2489 = vmatpush.bf16.msra.mxu0 %v2480
        %2490 = vmatmul.bf16.gmra.mxu0 %v2477
        %v2491 = vpop.f32.mrf.mxu0
        %v2492 = vadd.f32 0.0, %v2491
        %v2493 = vpop.f32.mrf.mxu0
        %2494 = vdwg.mxu0
        %v2495 = vadd.f32 %v2435, %v2454
        %v2496 = vadd.f32 %v2495, %v2473
        %v2497 = vadd.f32 %v2496, %v2492
        %v2498 = vpack.c.bf16 %v2497, %v2497
        %v2499 = vld [vmem:[%s1548] sm:$0xf]
        %v2500 = vld [vmem:[%s1548 + $0x4] sm:$0xf]
        %v2501 = vld [vmem:[%s1548 + $0x8] sm:$0xf]
        %v2502 = vld [vmem:[%s1548 + $0xc] sm:$0xf]
        %v2503 = vld [vmem:[%s1548 + $0x10] sm:$0xf]
        %v2504 = vld [vmem:[%s1548 + $0x14] sm:$0xf]
        %v2505 = vld [vmem:[%s1548 + $0x18] sm:$0xf]
        %v2506 = vld [vmem:[%s1548 + $0x1c] sm:$0xf]
        %v2507 = vld [vmem:[%s1548 + $0x20] sm:$0xf]
        %v2508 = vld [vmem:[%s1548 + $0x24] sm:$0xf]
        %v2509 = vld [vmem:[%s1548 + $0x28] sm:$0xf]
        %v2510 = vld [vmem:[%s1548 + $0x2c] sm:$0xf]
        %v2511 = vld [vmem:[%s1548 + $0x30] sm:$0xf]
        %v2512 = vld [vmem:[%s1548 + $0x34] sm:$0xf]
        %v2513 = vld [vmem:[%s1548 + $0x38] sm:$0xf]
        %v2514 = vld [vmem:[%s1548 + $0x3c] sm:$0xf]
        %v2515 = vld [vmem:[%s1809] sm:$0x1]
        %v2517 = vperm.slane %v2515, 0
        %v2535 = vunpack.c.l.b16 %v2499
        %v2536 = vunpack.c.l.b16 %v2500
        %v2537 = vunpack.c.l.b16 %v2501
        %v2538 = vunpack.c.l.b16 %v2502
        %v2539 = vunpack.c.l.b16 %v2503
        %v2540 = vunpack.c.l.b16 %v2504
        %v2541 = vunpack.c.l.b16 %v2505
        %v2542 = vunpack.c.l.b16 %v2506
        %v2543 = vunpack.c.l.b16 %v2507
        %v2544 = vunpack.c.l.b16 %v2508
        %v2545 = vunpack.c.l.b16 %v2509
        %v2546 = vunpack.c.l.b16 %v2510
        %v2547 = vunpack.c.l.b16 %v2511
        %v2548 = vunpack.c.l.b16 %v2512
        %v2549 = vunpack.c.l.b16 %v2513
        %v2550 = vunpack.c.l.b16 %v2514
        %v2551 = vpack.c.b16 %v2536, %v2535
        %v2552 = vpack.c.b16 %v2538, %v2537
        %v2553 = vpack.c.b16 %v2540, %v2539
        %v2554 = vpack.c.b16 %v2542, %v2541
        %v2555 = vpack.c.b16 %v2544, %v2543
        %v2556 = vpack.c.b16 %v2546, %v2545
        %v2557 = vpack.c.b16 %v2548, %v2547
        %v2558 = vpack.c.b16 %v2550, %v2549
        %2567 = vmatpush.bf16.msra.mxu0 %v2558
        %2568 = vmatpush.bf16.msra.mxu0 %v2557
        %2569 = vmatpush.bf16.msra.mxu0 %v2556
        %2570 = vmatpush.bf16.msra.mxu0 %v2555
        %2571 = vmatpush.bf16.msra.mxu0 %v2554
        %2572 = vmatpush.bf16.msra.mxu0 %v2553
        %2573 = vmatpush.bf16.msra.mxu0 %v2552
        %2574 = vmatpush.bf16.msra.mxu0 %v2551
        %2575 = vmatmul.bf16.gmra.mxu0 %v2498
        %v2576 = vpop.f32.mrf.mxu0
        %v2577 = vadd.f32 %v2517, %v2576
        %v2578 = vpop.f32.mrf.mxu0
        %2579 = vdwg.mxu0
        %v2580 = vadd.f32 %v2577, %v1827
        %v2581 = vld [vmem:[%s1557] sm:$0x1]
        %v2583 = vperm.slane %v2581, 0
        %v2585 = vmul.f32 %v2580, %v2583
        %v2586 = vld [vmem:[%s1812] sm:$0x1]
        %v2588 = vperm.slane %v2586, 0
        %v2590 = vadd.f32 %v2585, %v2588
        %v2591 = vadd.f32 %v2037, %v2590
        %v2592 = vpack.c.bf16 %v2591, %v2591
        %v2593 = vld [vmem:[%s1567] sm:$0xff]
        %v2594 = vld [vmem:[%s1567 + $0x8] sm:$0xff]
        %v2595 = vld [vmem:[%s1567 + $0x10] sm:$0xff]
        %v2596 = vld [vmem:[%s1567 + $0x18] sm:$0xff]
        %v2597 = vld [vmem:[%s1567 + $0x20] sm:$0xff]
        %v2598 = vld [vmem:[%s1567 + $0x28] sm:$0xff]
        %v2599 = vld [vmem:[%s1567 + $0x30] sm:$0xff]
        %v2600 = vld [vmem:[%s1567 + $0x38] sm:$0xff]
        %v2601 = vld [vmem:[%s1567 + $0x40] sm:$0xff]
        %v2602 = vld [vmem:[%s1567 + $0x48] sm:$0xff]
        %v2603 = vld [vmem:[%s1567 + $0x50] sm:$0xff]
        %v2604 = vld [vmem:[%s1567 + $0x58] sm:$0xff]
        %v2605 = vld [vmem:[%s1567 + $0x60] sm:$0xff]
        %v2606 = vld [vmem:[%s1567 + $0x68] sm:$0xff]
        %v2607 = vld [vmem:[%s1567 + $0x70] sm:$0xff]
        %v2608 = vld [vmem:[%s1567 + $0x78] sm:$0xff]
        %v2609 = vld [vmem:[%s1816] sm:$0x3]
        %v2611 = vperm.slane %v2609, 0
        %v2612 = vperm.slane %v2609, 1
        %v2631 = vunpack.c.l.b16 %v2593
        %v2632 = vunpack.c.h.b16 %v2593
        %v2633 = vunpack.c.l.b16 %v2594
        %v2634 = vunpack.c.h.b16 %v2594
        %v2635 = vunpack.c.l.b16 %v2595
        %v2636 = vunpack.c.h.b16 %v2595
        %v2637 = vunpack.c.l.b16 %v2596
        %v2638 = vunpack.c.h.b16 %v2596
        %v2639 = vunpack.c.l.b16 %v2597
        %v2640 = vunpack.c.h.b16 %v2597
        %v2641 = vunpack.c.l.b16 %v2598
        %v2642 = vunpack.c.h.b16 %v2598
        %v2643 = vunpack.c.l.b16 %v2599
        %v2644 = vunpack.c.h.b16 %v2599
        %v2645 = vunpack.c.l.b16 %v2600
        %v2646 = vunpack.c.h.b16 %v2600
        %v2647 = vunpack.c.l.b16 %v2601
        %v2648 = vunpack.c.h.b16 %v2601
        %v2649 = vunpack.c.l.b16 %v2602
        %v2650 = vunpack.c.h.b16 %v2602
        %v2651 = vunpack.c.l.b16 %v2603
        %v2652 = vunpack.c.h.b16 %v2603
        %v2653 = vunpack.c.l.b16 %v2604
        %v2654 = vunpack.c.h.b16 %v2604
        %v2655 = vunpack.c.l.b16 %v2605
        %v2656 = vunpack.c.h.b16 %v2605
        %v2657 = vunpack.c.l.b16 %v2606
        %v2658 = vunpack.c.h.b16 %v2606
        %v2659 = vunpack.c.l.b16 %v2607
        %v2660 = vunpack.c.h.b16 %v2607
        %v2661 = vunpack.c.l.b16 %v2608
        %v2662 = vunpack.c.h.b16 %v2608
        %v2663 = vpack.c.b16 %v2633, %v2631
        %v2664 = vpack.c.b16 %v2634, %v2632
        %v2665 = vpack.c.b16 %v2637, %v2635
        %v2666 = vpack.c.b16 %v2638, %v2636
        %v2667 = vpack.c.b16 %v2641, %v2639
        %v2668 = vpack.c.b16 %v2642, %v2640
        %v2669 = vpack.c.b16 %v2645, %v2643
        %v2670 = vpack.c.b16 %v2646, %v2644
        %v2671 = vpack.c.b16 %v2649, %v2647
        %v2672 = vpack.c.b16 %v2650, %v2648
        %v2673 = vpack.c.b16 %v2653, %v2651
        %v2674 = vpack.c.b16 %v2654, %v2652
        %v2675 = vpack.c.b16 %v2657, %v2655
        %v2676 = vpack.c.b16 %v2658, %v2656
        %v2677 = vpack.c.b16 %v2661, %v2659
        %v2678 = vpack.c.b16 %v2662, %v2660
        %2695 = vmatpush.bf16.msra.mxu0 %v2677
        %2696 = vmatpush.bf16.msra.mxu0 %v2675
        %2697 = vmatpush.bf16.msra.mxu0 %v2673
        %2698 = vmatpush.bf16.msra.mxu0 %v2671
        %2699 = vmatpush.bf16.msra.mxu0 %v2669
        %2700 = vmatpush.bf16.msra.mxu0 %v2667
        %2701 = vmatpush.bf16.msra.mxu0 %v2665
        %2702 = vmatpush.bf16.msra.mxu0 %v2663
        %2703 = vmatmul.bf16.gmra.mxu0 %v2592
        %v2704 = vpop.f32.mrf.mxu0
        %v2705 = vadd.f32 %v2611, %v2704
        %v2706 = vpop.f32.mrf.mxu0
        %2707 = vdwg.mxu0
        %2708 = vmatpush.bf16.msra.mxu0 %v2678
        %2709 = vmatpush.bf16.msra.mxu0 %v2676
        %2710 = vmatpush.bf16.msra.mxu0 %v2674
        %2711 = vmatpush.bf16.msra.mxu0 %v2672
        %2712 = vmatpush.bf16.msra.mxu0 %v2670
        %2713 = vmatpush.bf16.msra.mxu0 %v2668
        %2714 = vmatpush.bf16.msra.mxu0 %v2666
        %2715 = vmatpush.bf16.msra.mxu0 %v2664
        %2716 = vmatmul.bf16.gmra.mxu0 %v2592
        %v2717 = vpop.f32.mrf.mxu0
        %v2718 = vadd.f32 %v2612, %v2717
        %v2719 = vpop.f32.mrf.mxu0
        %2720 = vdwg.mxu0
        %v2721 = vmax.f32 %v2705, 0.0
        %v2722 = vmax.f32 %v2718, 0.0
        %v2723 = vpack.c.bf16 %v2721, %v2721
        %v2724 = vpack.c.bf16 %v2722, %v2722
        %v2725 = vld [vmem:[%s1577] sm:$0xf]
        %v2726 = vld [vmem:[%s1577 + $0x4] sm:$0xf]
        %v2727 = vld [vmem:[%s1577 + $0x8] sm:$0xf]
        %v2728 = vld [vmem:[%s1577 + $0xc] sm:$0xf]
        %v2729 = vld [vmem:[%s1577 + $0x10] sm:$0xf]
        %v2730 = vld [vmem:[%s1577 + $0x14] sm:$0xf]
        %v2731 = vld [vmem:[%s1577 + $0x18] sm:$0xf]
        %v2732 = vld [vmem:[%s1577 + $0x1c] sm:$0xf]
        %v2733 = vld [vmem:[%s1577 + $0x20] sm:$0xf]
        %v2734 = vld [vmem:[%s1577 + $0x24] sm:$0xf]
        %v2735 = vld [vmem:[%s1577 + $0x28] sm:$0xf]
        %v2736 = vld [vmem:[%s1577 + $0x2c] sm:$0xf]
        %v2737 = vld [vmem:[%s1577 + $0x30] sm:$0xf]
        %v2738 = vld [vmem:[%s1577 + $0x34] sm:$0xf]
        %v2739 = vld [vmem:[%s1577 + $0x38] sm:$0xf]
        %v2740 = vld [vmem:[%s1577 + $0x3c] sm:$0xf]
        %v2741 = vld [vmem:[%s1577 + $0x40] sm:$0xf]
        %v2742 = vld [vmem:[%s1577 + $0x44] sm:$0xf]
        %v2743 = vld [vmem:[%s1577 + $0x48] sm:$0xf]
        %v2744 = vld [vmem:[%s1577 + $0x4c] sm:$0xf]
        %v2745 = vld [vmem:[%s1577 + $0x50] sm:$0xf]
        %v2746 = vld [vmem:[%s1577 + $0x54] sm:$0xf]
        %v2747 = vld [vmem:[%s1577 + $0x58] sm:$0xf]
        %v2748 = vld [vmem:[%s1577 + $0x5c] sm:$0xf]
        %v2749 = vld [vmem:[%s1577 + $0x60] sm:$0xf]
        %v2750 = vld [vmem:[%s1577 + $0x64] sm:$0xf]
        %v2751 = vld [vmem:[%s1577 + $0x68] sm:$0xf]
        %v2752 = vld [vmem:[%s1577 + $0x6c] sm:$0xf]
        %v2753 = vld [vmem:[%s1577 + $0x70] sm:$0xf]
        %v2754 = vld [vmem:[%s1577 + $0x74] sm:$0xf]
        %v2755 = vld [vmem:[%s1577 + $0x78] sm:$0xf]
        %v2756 = vld [vmem:[%s1577 + $0x7c] sm:$0xf]
        %v2757 = vld [vmem:[%s1819] sm:$0x1]
        %v2759 = vperm.slane %v2757, 0
        %v2793 = vunpack.c.l.b16 %v2725
        %v2794 = vunpack.c.l.b16 %v2726
        %v2795 = vunpack.c.l.b16 %v2727
        %v2796 = vunpack.c.l.b16 %v2728
        %v2797 = vunpack.c.l.b16 %v2729
        %v2798 = vunpack.c.l.b16 %v2730
        %v2799 = vunpack.c.l.b16 %v2731
        %v2800 = vunpack.c.l.b16 %v2732
        %v2801 = vunpack.c.l.b16 %v2733
        %v2802 = vunpack.c.l.b16 %v2734
        %v2803 = vunpack.c.l.b16 %v2735
        %v2804 = vunpack.c.l.b16 %v2736
        %v2805 = vunpack.c.l.b16 %v2737
        %v2806 = vunpack.c.l.b16 %v2738
        %v2807 = vunpack.c.l.b16 %v2739
        %v2808 = vunpack.c.l.b16 %v2740
        %v2809 = vunpack.c.l.b16 %v2741
        %v2810 = vunpack.c.l.b16 %v2742
        %v2811 = vunpack.c.l.b16 %v2743
        %v2812 = vunpack.c.l.b16 %v2744
        %v2813 = vunpack.c.l.b16 %v2745
        %v2814 = vunpack.c.l.b16 %v2746
        %v2815 = vunpack.c.l.b16 %v2747
        %v2816 = vunpack.c.l.b16 %v2748
        %v2817 = vunpack.c.l.b16 %v2749
        %v2818 = vunpack.c.l.b16 %v2750
        %v2819 = vunpack.c.l.b16 %v2751
        %v2820 = vunpack.c.l.b16 %v2752
        %v2821 = vunpack.c.l.b16 %v2753
        %v2822 = vunpack.c.l.b16 %v2754
        %v2823 = vunpack.c.l.b16 %v2755
        %v2824 = vunpack.c.l.b16 %v2756
        %v2825 = vpack.c.b16 %v2794, %v2793
        %v2826 = vpack.c.b16 %v2796, %v2795
        %v2827 = vpack.c.b16 %v2798, %v2797
        %v2828 = vpack.c.b16 %v2800, %v2799
        %v2829 = vpack.c.b16 %v2802, %v2801
        %v2830 = vpack.c.b16 %v2804, %v2803
        %v2831 = vpack.c.b16 %v2806, %v2805
        %v2832 = vpack.c.b16 %v2808, %v2807
        %v2833 = vpack.c.b16 %v2810, %v2809
        %v2834 = vpack.c.b16 %v2812, %v2811
        %v2835 = vpack.c.b16 %v2814, %v2813
        %v2836 = vpack.c.b16 %v2816, %v2815
        %v2837 = vpack.c.b16 %v2818, %v2817
        %v2838 = vpack.c.b16 %v2820, %v2819
        %v2839 = vpack.c.b16 %v2822, %v2821
        %v2840 = vpack.c.b16 %v2824, %v2823
        %2857 = vmatpush.bf16.msra.mxu0 %v2832
        %2858 = vmatpush.bf16.msra.mxu0 %v2831
        %2859 = vmatpush.bf16.msra.mxu0 %v2830
        %2860 = vmatpush.bf16.msra.mxu0 %v2829
        %2861 = vmatpush.bf16.msra.mxu0 %v2828
        %2862 = vmatpush.bf16.msra.mxu0 %v2827
        %2863 = vmatpush.bf16.msra.mxu0 %v2826
        %2864 = vmatpush.bf16.msra.mxu0 %v2825
        %2865 = vmatmul.bf16.gmra.mxu0 %v2723
        %v2866 = vpop.f32.mrf.mxu0
        %v2867 = vadd.f32 %v2759, %v2866
        %v2868 = vpop.f32.mrf.mxu0
        %2869 = vdwg.mxu0
        %2870 = vmatpush.bf16.msra.mxu0 %v2840
        %2871 = vmatpush.bf16.msra.mxu0 %v2839
        %2872 = vmatpush.bf16.msra.mxu0 %v2838
        %2873 = vmatpush.bf16.msra.mxu0 %v2837
        %2874 = vmatpush.bf16.msra.mxu0 %v2836
        %2875 = vmatpush.bf16.msra.mxu0 %v2835
        %2876 = vmatpush.bf16.msra.mxu0 %v2834
        %2877 = vmatpush.bf16.msra.mxu0 %v2833
        %2878 = vmatmul.bf16.gmra.mxu0 %v2724
        %v2879 = vpop.f32.mrf.mxu0
        %v2880 = vadd.f32 %v2867, %v2879
        %v2881 = vpop.f32.mrf.mxu0
        %2882 = vdwg.mxu0
        %v2883 = vadd.f32 %v2591, %v2880
        %v2884 = vld [vmem:[%s1586] sm:$0x1]
        %v2886 = vperm.slane %v2884, 0
        %v2888 = vmul.f32 %v2883, %v2886
        %v2889 = vld [vmem:[%s1595] sm:$0x1]
        %v2891 = vperm.slane %v2889, 0
        %v2893 = vadd.f32 %v2888, %v2891
        %p2894 = scmp.lt.s32.totalorder %s117, 2
        // Predicated region
        $region237: #{tpu_custom_call.1} parent=151 // pred_check
          %p2895 = pneg %p2894
        $region238: #{tpu_custom_call.1} parent=151 // pred_check_branch
          %2897 = sbr.rel (%p2895) target = $region240
        $region239: #{tpu_custom_call.1} parent=151 // pred_region
          %v2898 = vmax.f32 %v2893, 0.0
          %2899 = vst [vmem:[#allocation2] sm:$0xff] %v2898
        $region240: #{tpu_custom_call.1} parent=151 // pred_fallthru
          _
        %p2900 = scmp.eq.s32.totalorder %s117, 2
        // Predicated region
        $region241: #{tpu_custom_call.1} parent=151 // pred_check
          %p2901 = pneg %p2900
        $region242: #{tpu_custom_call.1} parent=151 // pred_check_branch
          %2903 = sbr.rel (%p2901) target = $region244
        $region243: #{tpu_custom_call.1} parent=151 // pred_region
          %v2904 = vlaneseq
          %v2905 = vshrl.u32 %v2904, 7
          %v2906 = vstv %s116
          %v2907 = vadd.s32 %v2905, %v2906
          %v2908 = vld [vmem:[%s1447] sm:$0x1]
          %vm2909 = vcmp.eq.s32.totalorder %v2907, %v2908
          %v2910 = vsel %vm2909, 1, 0
          %v2911 = vcvt.s32.f32 %v2910
          %v2913 = vsel %vm1841, %v2911, 0
          %2915 = vmatpush.msra.mxu0 0.0
          %2916 = vmatpush.msra.mxu0 0.0
          %2917 = vmatpush.msra.mxu0 0.0
          %2918 = vmatpush.msra.mxu0 0.0
          %2919 = vmatpush.msra.mxu0 0.0
          %2920 = vmatpush.msra.mxu0 0.0
          %2921 = vmatpush.msra.mxu0 0.0
          %2922 = vmatpush.msra.mxu0 0.0
          %2923 = vmatpush.msra.mxu0 0.0
          %2924 = vmatpush.msra.mxu0 0.0
          %2925 = vmatpush.msra.mxu0 0.0
          %2926 = vmatpush.msra.mxu0 0.0
          %2927 = vmatpush.msra.mxu0 0.0
          %2928 = vmatpush.msra.mxu0 0.0
          %2929 = vmatpush.msra.mxu0 0.0
          %2930 = vmatpush.msra.mxu0 %v2893
          %2931 = vmatmul.f32.gmra.mxu0 %v2913
          %v2932 = vpop.f32.mrf.mxu0
          %v2933 = vadd.f32 0.0, %v2932
          %2934 = vdwg.mxu0
          %vm2935 = vcmask 1040384
          %v2936 = vsel %vm2935, %v2933, 0.0
          %2937 = vadd.xlane.f32.xlu0 %v2936
          %v2938 = vpop.xlane.xlu0 %2937
          %v2939 = vrcp.pop 128.0
          %v2940 = vmul.f32 128.0, %v2939
          %v2941 = vsub.f32 1.0, %v2940
          %v2942 = vmul.f32 %v2939, %v2941
          %v2943 = vadd.f32 %v2939, %v2942
          %vm2944 = vweird.f32 %v2939
          %v2945 = vsel %vm2944, %v2939, %v2943
          %v2946 = vmul.f32 %v2938, %v2945
          %v2947 = vsub.f32 %v2933, %v2946
          %v2948 = vmul.f32 %v2947, %v2947
          %v2949 = vsel %vm2935, %v2948, 0.0
          %2950 = vadd.xlane.f32.xlu0 %v2949
          %v2951 = vpop.xlane.xlu0 %2950
          %v2952 = vmul.f32 %v2951, %v2945
          %v2953 = vadd.f32 %v2952, 1e-05
          %v2954 = vrsqrt.pop %v2953
          %v2955 = vmul.f32 %v2954, %v2953
          %v2956 = vmul.f32 %v2955, %v2954
          %v2957 = vmul.f32 0.5, %v2956
          %v2958 = vsub.f32 1.5, %v2957
          %v2959 = vmul.f32 %v2954, %v2958
          %vm2960 = vweird.f32 %v2953
          %vm2961 = vweird.f32 %v2954
          %vm2962 = vmor %vm2960, %vm2961
          %v2963 = vsel %vm2962, %v2954, %v2959
          %v2964 = vmul.f32 %v2947, %v2963
          %v2965 = vld [vmem:[%s55] sm:$0x1]
          %v2966 = vmul.f32 %v2964, %v2965
          %v2967 = vld [vmem:[%s57] sm:$0x1]
          %v2968 = vadd.f32 %v2966, %v2967
          %v2969 = vpack.c.bf16 %v2968, %v2968
          %v2970 = vld [vmem:[#allocation32] sm:$0xf]
          %v2971 = vld [vmem:[#allocation32 + $0x4] sm:$0xf]
          %v2972 = vld [vmem:[#allocation32 + $0x8] sm:$0xf]
          %v2973 = vld [vmem:[#allocation32 + $0xc] sm:$0xf]
          %v2974 = vld [vmem:[#allocation32 + $0x10] sm:$0xf]
          %v2975 = vld [vmem:[#allocation32 + $0x14] sm:$0xf]
          %v2976 = vld [vmem:[#allocation32 + $0x18] sm:$0xf]
          %v2977 = vld [vmem:[#allocation32 + $0x1c] sm:$0xf]
          %v2978 = vld [vmem:[#allocation32 + $0x20] sm:$0xf]
          %v2979 = vld [vmem:[#allocation32 + $0x24] sm:$0xf]
          %v2980 = vld [vmem:[#allocation32 + $0x28] sm:$0xf]
          %v2981 = vld [vmem:[#allocation32 + $0x2c] sm:$0xf]
          %v2982 = vld [vmem:[#allocation32 + $0x30] sm:$0xf]
          %v2983 = vld [vmem:[#allocation32 + $0x34] sm:$0xf]
          %v2984 = vld [vmem:[#allocation32 + $0x38] sm:$0xf]
          %v2985 = vld [vmem:[#allocation32 + $0x3c] sm:$0xf]
          %v2986 = vld [vmem:[%s61] sm:$0x1]
          %v3003 = vunpack.c.l.b16 %v2970
          %v3004 = vunpack.c.l.b16 %v2971
          %v3005 = vunpack.c.l.b16 %v2972
          %v3006 = vunpack.c.l.b16 %v2973
          %v3007 = vunpack.c.l.b16 %v2974
          %v3008 = vunpack.c.l.b16 %v2975
          %v3009 = vunpack.c.l.b16 %v2976
          %v3010 = vunpack.c.l.b16 %v2977
          %v3011 = vunpack.c.l.b16 %v2978
          %v3012 = vunpack.c.l.b16 %v2979
          %v3013 = vunpack.c.l.b16 %v2980
          %v3014 = vunpack.c.l.b16 %v2981
          %v3015 = vunpack.c.l.b16 %v2982
          %v3016 = vunpack.c.l.b16 %v2983
          %v3017 = vunpack.c.l.b16 %v2984
          %v3018 = vunpack.c.l.b16 %v2985
          %v3019 = vpack.c.b16 %v3004, %v3003
          %v3020 = vpack.c.b16 %v3006, %v3005
          %v3021 = vpack.c.b16 %v3008, %v3007
          %v3022 = vpack.c.b16 %v3010, %v3009
          %v3023 = vpack.c.b16 %v3012, %v3011
          %v3024 = vpack.c.b16 %v3014, %v3013
          %v3025 = vpack.c.b16 %v3016, %v3015
          %v3026 = vpack.c.b16 %v3018, %v3017
          %3035 = vmatpush.bf16.msra.mxu0 %v3026
          %3036 = vmatpush.bf16.msra.mxu0 %v3025
          %3037 = vmatpush.bf16.msra.mxu0 %v3024
          %3038 = vmatpush.bf16.msra.mxu0 %v3023
          %3039 = vmatpush.bf16.msra.mxu0 %v3022
          %3040 = vmatpush.bf16.msra.mxu0 %v3021
          %3041 = vmatpush.bf16.msra.mxu0 %v3020
          %3042 = vmatpush.bf16.msra.mxu0 %v3019
          %3043 = vmatmul.bf16.gmra.mxu0 %v2969
          %v3044 = vpop.f32.mrf.mxu0
          %v3045 = vadd.f32 %v2986, %v3044
          %v3046 = vpop.f32.mrf.mxu0
          %3047 = vdwg.mxu0
          %v3048 = vmax.f32 %v3045, 0.0
          %v3049 = vpack.c.bf16 %v3048, %v3048
          %v3050 = vld [vmem:[#allocation33] sm:$0xf]
          %v3051 = vld [vmem:[#allocation33 + $0x4] sm:$0xf]
          %v3052 = vld [vmem:[#allocation33 + $0x8] sm:$0xf]
          %v3053 = vld [vmem:[#allocation33 + $0xc] sm:$0xf]
          %v3054 = vld [vmem:[#allocation33 + $0x10] sm:$0xf]
          %v3055 = vld [vmem:[#allocation33 + $0x14] sm:$0xf]
          %v3056 = vld [vmem:[#allocation33 + $0x18] sm:$0xf]
          %v3057 = vld [vmem:[#allocation33 + $0x1c] sm:$0xf]
          %v3058 = vld [vmem:[#allocation33 + $0x20] sm:$0xf]
          %v3059 = vld [vmem:[#allocation33 + $0x24] sm:$0xf]
          %v3060 = vld [vmem:[#allocation33 + $0x28] sm:$0xf]
          %v3061 = vld [vmem:[#allocation33 + $0x2c] sm:$0xf]
          %v3062 = vld [vmem:[#allocation33 + $0x30] sm:$0xf]
          %v3063 = vld [vmem:[#allocation33 + $0x34] sm:$0xf]
          %v3064 = vld [vmem:[#allocation33 + $0x38] sm:$0xf]
          %v3065 = vld [vmem:[#allocation33 + $0x3c] sm:$0xf]
          %v3066 = vld [vmem:[%s65] sm:$0x1]
          %v3083 = vunpack.c.l.b16 %v3050
          %v3084 = vunpack.c.l.b16 %v3051
          %v3085 = vunpack.c.l.b16 %v3052
          %v3086 = vunpack.c.l.b16 %v3053
          %v3087 = vunpack.c.l.b16 %v3054
          %v3088 = vunpack.c.l.b16 %v3055
          %v3089 = vunpack.c.l.b16 %v3056
          %v3090 = vunpack.c.l.b16 %v3057
          %v3091 = vunpack.c.l.b16 %v3058
          %v3092 = vunpack.c.l.b16 %v3059
          %v3093 = vunpack.c.l.b16 %v3060
          %v3094 = vunpack.c.l.b16 %v3061
          %v3095 = vunpack.c.l.b16 %v3062
          %v3096 = vunpack.c.l.b16 %v3063
          %v3097 = vunpack.c.l.b16 %v3064
          %v3098 = vunpack.c.l.b16 %v3065
          %v3099 = vpack.c.b16 %v3084, %v3083
          %v3100 = vpack.c.b16 %v3086, %v3085
          %v3101 = vpack.c.b16 %v3088, %v3087
          %v3102 = vpack.c.b16 %v3090, %v3089
          %v3103 = vpack.c.b16 %v3092, %v3091
          %v3104 = vpack.c.b16 %v3094, %v3093
          %v3105 = vpack.c.b16 %v3096, %v3095
          %v3106 = vpack.c.b16 %v3098, %v3097
          %3115 = vmatpush.bf16.msra.mxu0 %v3106
          %3116 = vmatpush.bf16.msra.mxu0 %v3105
          %3117 = vmatpush.bf16.msra.mxu0 %v3104
          %3118 = vmatpush.bf16.msra.mxu0 %v3103
          %3119 = vmatpush.bf16.msra.mxu0 %v3102
          %3120 = vmatpush.bf16.msra.mxu0 %v3101
          %3121 = vmatpush.bf16.msra.mxu0 %v3100
          %3122 = vmatpush.bf16.msra.mxu0 %v3099
          %3123 = vmatmul.bf16.gmra.mxu0 %v3049
          %v3124 = vpop.f32.mrf.mxu0
          %v3125 = vadd.f32 %v3066, %v3124
          %v3126 = vpop.f32.mrf.mxu0
          %3127 = vdwg.mxu0
          %3128 = vst [vmem:[%s1789] sm:$0x1] %v3125
        $region244: #{tpu_custom_call.1} parent=151 // pred_fallthru
          _
        %s3129 = sand.u32 %s955, 1
        %s3130 = scalar_lea.sflag [#allocation5], %s3129
        %s3131 = sand.u32 %s955, 1
        %s3132 = scalar_lea.vmem [#allocation35], %s3131
        // Predicated region
        $region245: #{tpu_custom_call.1} parent=151 // pred_check
          %p3133 = pneg %p965
        $region246: #{tpu_custom_call.1} parent=151 // pred_check_branch
          %3135 = sbr.rel (%p3133) target = $region248
        $region247: #{tpu_custom_call.1} parent=151 // pred_region
          %3137 = vsyncadd %s3130, 0
          %s3138 = scalar_lea.hbm %s67, %s116
          %s3140 = sshll.u32 %s3132, 4
          %s3141 = int_to_ptr.vmem [resolvable:$true] %s3140
          %s3142 = sshll.u32 %s3138, 4
          %s3143 = int_to_ptr.hbm [resolvable:$true] %s3142
          %3145 = dma.vmem_to_hbm [thread:$0]  %s3141, 16, %s3143, %s3130
        $region248: #{tpu_custom_call.1} parent=151 // pred_fallthru
          _
      $region152: #{tpu_custom_call.1} parent=5 // pred_fallthru
        _
      %p3146 = scmp.le.s32.totalorder 2, %s107
      // Predicated region
      $region249: #{tpu_custom_call.1} parent=5 // pred_check
        %p3147 = pneg %p3146
      $region250: #{tpu_custom_call.1} parent=5 // pred_check_branch
        %3149 = sbr.rel (%p3147) target = $region252
      $region251: #{tpu_custom_call.1} parent=5 // pred_region
        %s3150 = ssub.s32 %s107, 2
        // Predicated region
        $region253: #{tpu_custom_call.1} parent=251 // pred_check
          %p3151 = pneg %p971
        $region254: #{tpu_custom_call.1} parent=251 // pred_check_branch
          %3153 = sbr.rel (%p3151) target = $region256
        $region255: #{tpu_custom_call.1} parent=251 // pred_region
          %s3154 = sand.u32 %s956, 1
          %s3155 = scalar_lea.sflag [#allocation5], %s3154
          %s3156 = sand.u32 %s956, 1
          %s3157 = scalar_lea.vmem [#allocation35], %s3156
          %3159 = dma.done %s3155, 16
        $region256: #{tpu_custom_call.1} parent=251 // pred_fallthru
          _
      $region252: #{tpu_custom_call.1} parent=5 // pred_fallthru
        _
    $region6: #{tpu_custom_call.1} parent=1 // loop_footer
      %s111 = sadd.s32 1, %s107
    $region7: #{tpu_custom_call.1} parent=1 // loop_footer_branch
      %106 = sbr.rel target = $region3
    $region8: #{tpu_custom_call.1} parent=1 // loop_exit
      _
    %3160 = vsyncpa [#allocation4], 1
    %s3161 = scalar_lea.sflag [#allocation4], 1
    %3162 = vsyncpa %s3161, 1
    %3163 = vsyncpa [#allocation7], 1
    %s3164 = scalar_lea.sflag [#allocation7], 1
    %3165 = vsyncpa %s3164, 1
    %3166 = vsyncpa [#allocation10], 1
    %s3167 = scalar_lea.sflag [#allocation10], 1
    %3168 = vsyncpa %s3167, 1
    %3169 = vsyncpa [#allocation13], 1
    %s3170 = scalar_lea.sflag [#allocation13], 1
    %3171 = vsyncpa %s3170, 1
    %3172 = vsyncpa [#allocation16], 1
    %s3173 = scalar_lea.sflag [#allocation16], 1
    %3174 = vsyncpa %s3173, 1
    %3175 = vsyncpa [#allocation19], 1
    %s3176 = scalar_lea.sflag [#allocation19], 1
    %3177 = vsyncpa %s3176, 1
    %3178 = vsyncpa [#allocation22], 1
    %s3179 = scalar_lea.sflag [#allocation22], 1
    %3180 = vsyncpa %s3179, 1
    %3181 = vsyncpa [#allocation25], 1
    %s3182 = scalar_lea.sflag [#allocation25], 1
    %3183 = vsyncpa %s3182, 1
    %3184 = vsyncpa [#allocation28], 1
    %s3185 = scalar_lea.sflag [#allocation28], 1
    %3186 = vsyncpa %s3185, 1
    %3187 = vsyncpa [#allocation31], 1
    %s3188 = scalar_lea.sflag [#allocation31], 1
    %3189 = vsyncpa %s3188, 1
    %3190 = vsyncpa [#allocation34], 1
    %3191 = vsyncpa [#allocation5], 1
    %s3192 = scalar_lea.sflag [#allocation5], 1
    %3193 = vsyncpa %s3192, 1

</llo_original>
